<compile_context>
chip_gen: v7x
topology: tpu7x:2x2x1
jax: 0.10.0
libtpu: 0.0.40
codegen_flags: <defaults>
</compile_context>

<pallas_src>
import functools

import jax
import jax.numpy as jnp
import numpy as np
from jax.experimental import pallas as pl
from jax.experimental.pallas import tpu as pltpu

LANE = 128          # TPU lane width
STATS_ROWS = 8      # sublane-padded stats slab: row 0 = sum/mean, row 1 = sumsq/inv_std


def _round_up(x, m):
    return ((x + m - 1) // m) * m


# --------------------------------------------------------------------------- phase 1
def _make_phase1_kernel(N, H, W, K, Cp):
    P = K // 2
    HW = H * W
    inv_total = 1.0 / float(N * HW)

    def kernel(xin_ref, wproj_ref, bproj_ref, wconv_ref, bconv_ref,
               x1_ref, conv_ref, stats_ref, pad_ref):
        n = pl.program_id(0)

        # First step: zero the stats accumulator (output block resident across the
        # "arbitrary" grid axis) and the conv halo frame.  The interior of pad_ref
        # is fully overwritten every step, so only the halo must persist as zero.
        @pl.when(n == 0)
        def _():
            stats_ref[...] = jnp.zeros_like(stats_ref)
            pad_ref[...] = jnp.zeros_like(pad_ref)

        # ---- input_proj: 1x1 conv as one lane-dense bf16 MXU matmul + ReLU -------
        x1 = jnp.dot(xin_ref[0], wproj_ref[...],
                     preferred_element_type=jnp.float32) + bproj_ref[...]
        x1 = jnp.maximum(x1, 0.0)                        # [HW, Cp] f32
        x1_ref[0] = x1.astype(jnp.bfloat16)              # residual branch (bf16 in HBM)

        # ---- conv1: KxK conv (padding=K//2) as K*K accumulating matmuls -----------
        # (no materialized [HW, K*K*Cp] im2col buffer; weight slab is pre-laid-out
        # so tap idx uses rows [idx*Cp, (idx+1)*Cp) -- aligned static slices)
        pad_ref[P:P + H, P:P + W, :] = x1.reshape(H, W, Cp)
        acc = None
        for idx in range(K * K):
            dy, dx = idx // K, idx % K
            tap = pad_ref[dy:dy + H, dx:dx + W, :].reshape(HW, Cp).astype(jnp.bfloat16)
            part = jnp.dot(tap, wconv_ref[idx * Cp:(idx + 1) * Cp, :],
                           preferred_element_type=jnp.float32)
            acc = part if acc is None else acc + part
        conv = acc + bconv_ref[...]                      # [HW, Cp] f32 (pre-BN)
        conv_ref[0] = conv.astype(jnp.bfloat16)

        # ---- single-pass BatchNorm statistics: sum and sum-of-squares (f32) ------
        stats_ref[0:1, :] += jnp.sum(conv, axis=0, keepdims=True)
        stats_ref[1:2, :] += jnp.sum(conv * conv, axis=0, keepdims=True)

        # Last step: convert (sum, sumsq) -> (mean, inv_std).  var = E[x^2]-mean^2
        # in f32; activations are O(1) so cancellation is benign (guarded anyway).
        @pl.when(n == pl.num_programs(0) - 1)
        def _():
            mean = stats_ref[0:1, :] * inv_total
            var = jnp.maximum(stats_ref[1:2, :] * inv_total - mean * mean, 0.0)
            stats_ref[0:1, :] = mean
            stats_ref[1:2, :] = jax.lax.rsqrt(var + 1e-5)

    return kernel


# --------------------------------------------------------------------------- phase 2
def _phase2_kernel(conv_ref, x1_ref, stats_ref, gam_ref, bet_ref, out_ref):
    mean = stats_ref[0:1, :]                             # [1, Cp] f32
    inv_std = stats_ref[1:2, :]
    y = (conv_ref[0].astype(jnp.float32) - mean) * inv_std   # BatchNorm2d(affine=False)
    y = gam_ref[0] * y + bet_ref[0]                      # FiLM (broadcast in-kernel)
    out_ref[0] = x1_ref[0].astype(jnp.float32) + jnp.maximum(y, 0.0)  # ReLU + residual


# --------------------------------------------------------------------------- wrapper
@functools.partial(jax.jit, static_argnums=(5,))
def filmed_resblock(x, gammas, betas, extra_channels, params, kernel_size):
    """x: [N, Cin, H, W]; gammas/betas: [N, Cout]; extra_channels: [N, 2, H, W]."""
    w_proj, b_proj, w_conv, b_conv = params
    N, Cin, H, W = x.shape
    Cext = extra_channels.shape[1]
    Cout = w_conv.shape[0]
    K = kernel_size
    P = K // 2
    HW = H * W
    assert Cin == Cout  # required by the residual add in the module

    Cpi = _round_up(Cin + Cext, LANE)   # padded concat-input channel width
    Cp = _round_up(Cout, LANE)          # padded hidden / output channel width
    f32, bf16 = jnp.float32, jnp.bfloat16

    # glue: concat + NCHW -> NHWC rows + zero-pad channels to the lane width (bf16)
    xcat = jnp.concatenate([x, extra_channels], axis=1)
    xin = jnp.transpose(xcat, (0, 2, 3, 1)).reshape(N, HW, Cin + Cext)
    xin = jnp.pad(xin, ((0, 0), (0, 0), (0, Cpi - (Cin + Cext)))).astype(bf16)

    # weights in matmul layout (bf16 MXU operands, f32 biases)
    wproj = jnp.transpose(w_proj.reshape(Cin, Cin + Cext), (1, 0))
    wproj = jnp.pad(wproj, ((0, Cpi - (Cin + Cext)), (0, Cp - Cin))).astype(bf16)
    bproj = jnp.pad(b_proj.reshape(1, Cin), ((0, 0), (0, Cp - Cin)))
    wconv = jnp.transpose(w_conv, (2, 3, 1, 0))                       # [K,K,I,O]
    wconv = jnp.pad(wconv, ((0, 0), (0, 0), (0, Cp - Cin), (0, Cp - Cout)))
    wconv = wconv.reshape(K * K * Cp, Cp).astype(bf16)                # tap-major slab
    bconv = jnp.pad(b_conv.reshape(1, Cout), ((0, 0), (0, Cp - Cout)))

    # FiLM params stay [N, 1, Cp]; broadcast inside the kernel (no jnp.repeat)
    gam = jnp.pad(gammas, ((0, 0), (0, Cp - Cout))).reshape(N, 1, Cp)
    bet = jnp.pad(betas, ((0, 0), (0, Cp - Cout))).reshape(N, 1, Cp)

    # ---- phase 1: input_proj + ReLU + KxK conv + BN sum/sumsq ------------------
    x1_all, conv_all, stats = pl.pallas_call(
        _make_phase1_kernel(N, H, W, K, Cp),
        out_shape=(jax.ShapeDtypeStruct((N, HW, Cp), bf16),
                   jax.ShapeDtypeStruct((N, HW, Cp), bf16),
                   jax.ShapeDtypeStruct((STATS_ROWS, Cp), f32)),
        grid_spec=pltpu.PrefetchScalarGridSpec(
            num_scalar_prefetch=0,
            grid=(N,),
            in_specs=[
                pl.BlockSpec((1, HW, Cpi), lambda n: (n, 0, 0)),
                pl.BlockSpec((Cpi, Cp), lambda n: (0, 0)),
                pl.BlockSpec((1, Cp), lambda n: (0, 0)),
                pl.BlockSpec((K * K * Cp, Cp), lambda n: (0, 0)),
                pl.BlockSpec((1, Cp), lambda n: (0, 0)),
            ],
            out_specs=(
                pl.BlockSpec((1, HW, Cp), lambda n: (n, 0, 0)),
                pl.BlockSpec((1, HW, Cp), lambda n: (n, 0, 0)),
                pl.BlockSpec((STATS_ROWS, Cp), lambda n: (0, 0)),
            ),
            scratch_shapes=[pltpu.VMEM((H + 2 * P, W + 2 * P, Cp), f32)],
        ),
        compiler_params=pltpu.CompilerParams(
            dimension_semantics=("arbitrary",),
            vmem_limit_bytes=32 * 1024 * 1024),
    )(xin, wproj, bproj, wconv, bconv)

    # ---- phase 2: normalize + FiLM + ReLU + residual (independent per sample) --
    out_p = pl.pallas_call(
        _phase2_kernel,
        out_shape=jax.ShapeDtypeStruct((N, HW, Cp), f32),
        grid_spec=pltpu.PrefetchScalarGridSpec(
            num_scalar_prefetch=0,
            grid=(N,),
            in_specs=[
                pl.BlockSpec((1, HW, Cp), lambda n: (n, 0, 0)),
                pl.BlockSpec((1, HW, Cp), lambda n: (n, 0, 0)),
                pl.BlockSpec((STATS_ROWS, Cp), lambda n: (0, 0)),
                pl.BlockSpec((1, 1, Cp), lambda n: (n, 0, 0)),
                pl.BlockSpec((1, 1, Cp), lambda n: (n, 0, 0)),
            ],
            out_specs=pl.BlockSpec((1, HW, Cp), lambda n: (n, 0, 0)),
        ),
        compiler_params=pltpu.CompilerParams(
            dimension_semantics=("parallel",),
            vmem_limit_bytes=32 * 1024 * 1024),
    )(conv_all, x1_all, stats, gam, bet)

    # back to NCHW for the caller (drop channel padding)
    out = out_p[:, :, :Cout].reshape(N, H, W, Cout)
    return jnp.transpose(out, (0, 3, 1, 2))


# --------------------------------------------------------------------------- reference
def _reference(x, gammas, betas, extra_channels, params, k):
    w_proj, b_proj, w_conv, b_conv = params
    dn = ("NCHW", "OIHW", "NCHW")
    hp = jax.lax.Precision.HIGHEST
    xcat = jnp.concatenate([x, extra_channels], axis=1)
    x1 = jax.nn.relu(
        jax.lax.conv_general_dilated(xcat, w_proj, (1, 1), "VALID",
                                     dimension_numbers=dn, precision=hp)
        + b_proj[None, :, None, None])
    out = jax.lax.conv_general_dilated(x1, w_conv, (1, 1),
                                       [(k // 2, k // 2)] * 2,
                                       dimension_numbers=dn, precision=hp)
    out = out + b_conv[None, :, None, None]
    mean = out.mean(axis=(0, 2, 3), keepdims=True)
    var = ((out - mean) ** 2).mean(axis=(0, 2, 3), keepdims=True)
    out = (out - mean) * jax.lax.rsqrt(var + 1e-5)
    out = gammas[:, :, None, None] * out + betas[:, :, None, None]
    return x1 + jax.nn.relu(out)


# --------------------------------------------------------------------------- params
def _kaiming_uniform(key, shape):
    fan_in = int(np.prod(shape[1:]))
    bound = float(np.sqrt(6.0 / fan_in))
    return jax.random.uniform(key, shape, jnp.float32, -bound, bound)


def _conv_bias(key, out_ch, fan_in):
    bound = 1.0 / float(np.sqrt(fan_in))
    return jax.random.uniform(key, (out_ch,), jnp.float32, -bound, bound)


if __name__ == "__main__":
    # in_dim == out_dim (required by the residual add), dropout = 0 (Dropout2d
    # branch is never taken in the PyTorch forward).
    # TODO(synk): Dropout2d for dropout > 0 (stochastic channel masking) is not
    # implemented; the module is instantiated with dropout = 0.
    N, in_dim, out_dim, H, W, K = 2, 4, 4, 16, 16, 3

    key = jax.random.PRNGKey(0)
    ks = jax.random.split(key, 8)
    x = jax.random.normal(ks[0], (N, in_dim, H, W), jnp.float32)
    extra = jax.random.normal(ks[1], (N, 2, H, W), jnp.float32)
    gammas = jax.random.normal(ks[2], (N, out_dim), jnp.float32)
    betas = jax.random.normal(ks[3], (N, out_dim), jnp.float32)

    w_proj = _kaiming_uniform(ks[4], (in_dim, in_dim + 2, 1, 1))
    b_proj = _conv_bias(ks[5], in_dim, in_dim + 2)
    w_conv = _kaiming_uniform(ks[6], (out_dim, in_dim, K, K))
    b_conv = _conv_bias(ks[7], out_dim, in_dim * K * K)
    params = (w_proj, b_proj, w_conv, b_conv)

    out = jax.block_until_ready(filmed_resblock(x, gammas, betas, extra, params, K))
    ref = jax.block_until_ready(_reference(x, gammas, betas, extra, params, K))

    # Kernel uses bf16 MXU operands / bf16 inter-phase intermediates (f32
    # accumulation and f32 BN statistics); the reference is full f32, so allow
    # ~1%-level tolerance.
    np.testing.assert_allclose(np.asarray(out), np.asarray(ref),
                               rtol=5e-2, atol=5e-2)
    print("KERNEL_OK")
</pallas_src>

<mosaic_0001>
module attributes {stable_mosaic.version = 11 : i64} {
  func.func @kernel(%arg0: i32, %arg1: memref<1x256x128xbf16, #tpu.memory_space<vmem>>, %arg2: memref<128x128xbf16, #tpu.memory_space<vmem>>, %arg3: memref<1x128xf32, #tpu.memory_space<vmem>>, %arg4: memref<1152x128xbf16, #tpu.memory_space<vmem>>, %arg5: memref<1x128xf32, #tpu.memory_space<vmem>>, %arg6: memref<1x256x128xbf16, #tpu.memory_space<vmem>>, %arg7: memref<1x256x128xbf16, #tpu.memory_space<vmem>>, %arg8: memref<8x128xf32, #tpu.memory_space<vmem>>, %arg9: memref<18x18x128xf32, #tpu.memory_space<vmem>>) attributes {dimension_semantics = [#tpu.dimension_semantics<arbitrary>], iteration_bounds = array<i64: 2>, scalar_prefetch = 0 : i64, scratch_operands = 1 : i64, tpu.core_type = #tpu.core_type<tc>, window_params = [{transform_indices = @transform_0, window_bounds = array<i64: 1, 256, 128>}, {pipeline_mode = #tpu.pipeline_mode<synchronous>, transform_indices = @transform_1, window_bounds = array<i64: 128, 128>}, {pipeline_mode = #tpu.pipeline_mode<synchronous>, transform_indices = @transform_2, window_bounds = array<i64: 1, 128>}, {pipeline_mode = #tpu.pipeline_mode<synchronous>, transform_indices = @transform_3, window_bounds = array<i64: 1152, 128>}, {pipeline_mode = #tpu.pipeline_mode<synchronous>, transform_indices = @transform_4, window_bounds = array<i64: 1, 128>}, {transform_indices = @transform_5, window_bounds = array<i64: 1, 256, 128>}, {transform_indices = @transform_6, window_bounds = array<i64: 1, 256, 128>}, {pipeline_mode = #tpu.pipeline_mode<synchronous>, transform_indices = @transform_7, window_bounds = array<i64: 8, 128>}]} {
    %c0_i32 = arith.constant 0 : i32
    %0 = arith.cmpi eq, %arg0, %c0_i32 : i32
    %1 = arith.extui %0 : i1 to i32
    %c0_i32_0 = arith.constant 0 : i32
    %2 = arith.cmpi ne, %1, %c0_i32_0 : i32
    scf.if %2 {
      %cst_74 = arith.constant 0.000000e+00 : f32
      %92 = vector.broadcast %cst_74 : f32 to vector<8x128xf32>
      %c0_75 = arith.constant 0 : index
      %c0_76 = arith.constant 0 : index
      %93 = vector.load %arg8[%c0_75, %c0_76] : memref<8x128xf32, #tpu.memory_space<vmem>>, vector<8x128xf32>
      tpu.vector_store %arg8[%c0_75, %c0_76], %92 {strides = array<i32>} : memref<8x128xf32, #tpu.memory_space<vmem>>, vector<8x128xf32>,
      %cst_77 = arith.constant 0.000000e+00 : f32
      %94 = vector.broadcast %cst_77 : f32 to vector<18x18x128xf32>
      %c0_78 = arith.constant 0 : index
      %c0_79 = arith.constant 0 : index
      %c0_80 = arith.constant 0 : index
      %95 = vector.load %arg9[%c0_78, %c0_79, %c0_80] : memref<18x18x128xf32, #tpu.memory_space<vmem>>, vector<18x18x128xf32>
      tpu.vector_store %arg9[%c0_78, %c0_79, %c0_80], %94 {strides = array<i32>} : memref<18x18x128xf32, #tpu.memory_space<vmem>>, vector<18x18x128xf32>,
    } else {
    }
    %c0 = arith.constant 0 : index
    %c0_1 = arith.constant 0 : index
    %c0_2 = arith.constant 0 : index
    %3 = vector.load %arg1[%c0, %c0_1, %c0_2] : memref<1x256x128xbf16, #tpu.memory_space<vmem>>, vector<1x256x128xbf16>
    %4 = vector.shape_cast %3 : vector<1x256x128xbf16> to vector<256x128xbf16>
    %c0_3 = arith.constant 0 : index
    %c0_4 = arith.constant 0 : index
    %5 = vector.load %arg2[%c0_3, %c0_4] : memref<128x128xbf16, #tpu.memory_space<vmem>>, vector<128x128xbf16>
    %cst = arith.constant dense<0.000000e+00> : vector<256x128xf32>
    %6 = tpu.matmul %4, %5, %cst {dimension_numbers = #tpu.dot_dimension_numbers<[1], [0], [0], [1], [0, 0, 1, 1], [], []>} : vector<256x128xbf16>, vector<128x128xbf16>, vector<256x128xf32> -> vector<256x128xf32>
    %c0_5 = arith.constant 0 : index
    %c0_6 = arith.constant 0 : index
    %7 = vector.load %arg3[%c0_5, %c0_6] : memref<1x128xf32, #tpu.memory_space<vmem>>, vector<1x128xf32>
    %8 = vector.broadcast %7 : vector<1x128xf32> to vector<256x128xf32>
    %9 = arith.addf %6, %8 : vector<256x128xf32>
    %cst_7 = arith.constant 0.000000e+00 : f32
    %10 = vector.broadcast %cst_7 : f32 to vector<256x128xf32>
    %11 = arith.maximumf %9, %10 : vector<256x128xf32>
    %12 = arith.truncf %11 : vector<256x128xf32> to vector<256x128xbf16>
    %c0_8 = arith.constant 0 : index
    %c0_9 = arith.constant 0 : index
    %c0_10 = arith.constant 0 : index
    %13 = vector.load %arg6[%c0_8, %c0_9, %c0_10] : memref<1x256x128xbf16, #tpu.memory_space<vmem>>, vector<1x256x128xbf16>
    %14 = vector.shape_cast %13 : vector<1x256x128xbf16> to vector<256x128xbf16>
    %15 = vector.shape_cast %12 : vector<256x128xbf16> to vector<1x256x128xbf16>
    tpu.vector_store %arg6[%c0_8, %c0_9, %c0_10], %15 {strides = array<i32>} : memref<1x256x128xbf16, #tpu.memory_space<vmem>>, vector<1x256x128xbf16>,
    %16 = vector.shape_cast %11 : vector<256x128xf32> to vector<16x16x128xf32>
    %c1 = arith.constant 1 : index
    %c1_11 = arith.constant 1 : index
    %c0_12 = arith.constant 0 : index
    %17 = vector.load %arg9[%c1, %c1_11, %c0_12] : memref<18x18x128xf32, #tpu.memory_space<vmem>>, vector<16x16x128xf32>
    tpu.vector_store %arg9[%c1, %c1_11, %c0_12], %16 {strides = array<i32>} : memref<18x18x128xf32, #tpu.memory_space<vmem>>, vector<16x16x128xf32>,
    %c0_13 = arith.constant 0 : index
    %c0_14 = arith.constant 0 : index
    %c0_15 = arith.constant 0 : index
    %18 = vector.load %arg9[%c0_13, %c0_14, %c0_15] : memref<18x18x128xf32, #tpu.memory_space<vmem>>, vector<16x16x128xf32>
    %19 = vector.shape_cast %18 : vector<16x16x128xf32> to vector<256x128xf32>
    %20 = arith.truncf %19 : vector<256x128xf32> to vector<256x128xbf16>
    %c0_16 = arith.constant 0 : index
    %c0_17 = arith.constant 0 : index
    %21 = vector.load %arg4[%c0_16, %c0_17] : memref<1152x128xbf16, #tpu.memory_space<vmem>>, vector<128x128xbf16>
    %cst_18 = arith.constant dense<0.000000e+00> : vector<256x128xf32>
    %22 = tpu.matmul %20, %21, %cst_18 {dimension_numbers = #tpu.dot_dimension_numbers<[1], [0], [0], [1], [0, 0, 1, 1], [], []>} : vector<256x128xbf16>, vector<128x128xbf16>, vector<256x128xf32> -> vector<256x128xf32>
    %c0_19 = arith.constant 0 : index
    %c1_20 = arith.constant 1 : index
    %c0_21 = arith.constant 0 : index
    %23 = vector.load %arg9[%c0_19, %c1_20, %c0_21] : memref<18x18x128xf32, #tpu.memory_space<vmem>>, vector<16x16x128xf32>
    %24 = vector.shape_cast %23 : vector<16x16x128xf32> to vector<256x128xf32>
    %25 = arith.truncf %24 : vector<256x128xf32> to vector<256x128xbf16>
    %c128 = arith.constant 128 : index
    %c0_22 = arith.constant 0 : index
    %26 = vector.load %arg4[%c128, %c0_22] : memref<1152x128xbf16, #tpu.memory_space<vmem>>, vector<128x128xbf16>
    %cst_23 = arith.constant dense<0.000000e+00> : vector<256x128xf32>
    %27 = tpu.matmul %25, %26, %cst_23 {dimension_numbers = #tpu.dot_dimension_numbers<[1], [0], [0], [1], [0, 0, 1, 1], [], []>} : vector<256x128xbf16>, vector<128x128xbf16>, vector<256x128xf32> -> vector<256x128xf32>
    %28 = arith.addf %22, %27 : vector<256x128xf32>
    %c0_24 = arith.constant 0 : index
    %c2 = arith.constant 2 : index
    %c0_25 = arith.constant 0 : index
    %29 = vector.load %arg9[%c0_24, %c2, %c0_25] : memref<18x18x128xf32, #tpu.memory_space<vmem>>, vector<16x16x128xf32>
    %30 = vector.shape_cast %29 : vector<16x16x128xf32> to vector<256x128xf32>
    %31 = arith.truncf %30 : vector<256x128xf32> to vector<256x128xbf16>
    %c256 = arith.constant 256 : index
    %c0_26 = arith.constant 0 : index
    %32 = vector.load %arg4[%c256, %c0_26] : memref<1152x128xbf16, #tpu.memory_space<vmem>>, vector<128x128xbf16>
    %cst_27 = arith.constant dense<0.000000e+00> : vector<256x128xf32>
    %33 = tpu.matmul %31, %32, %cst_27 {dimension_numbers = #tpu.dot_dimension_numbers<[1], [0], [0], [1], [0, 0, 1, 1], [], []>} : vector<256x128xbf16>, vector<128x128xbf16>, vector<256x128xf32> -> vector<256x128xf32>
    %34 = arith.addf %28, %33 : vector<256x128xf32>
    %c1_28 = arith.constant 1 : index
    %c0_29 = arith.constant 0 : index
    %c0_30 = arith.constant 0 : index
    %35 = vector.load %arg9[%c1_28, %c0_29, %c0_30] : memref<18x18x128xf32, #tpu.memory_space<vmem>>, vector<16x16x128xf32>
    %36 = vector.shape_cast %35 : vector<16x16x128xf32> to vector<256x128xf32>
    %37 = arith.truncf %36 : vector<256x128xf32> to vector<256x128xbf16>
    %c384 = arith.constant 384 : index
    %c0_31 = arith.constant 0 : index
    %38 = vector.load %arg4[%c384, %c0_31] : memref<1152x128xbf16, #tpu.memory_space<vmem>>, vector<128x128xbf16>
    %cst_32 = arith.constant dense<0.000000e+00> : vector<256x128xf32>
    %39 = tpu.matmul %37, %38, %cst_32 {dimension_numbers = #tpu.dot_dimension_numbers<[1], [0], [0], [1], [0, 0, 1, 1], [], []>} : vector<256x128xbf16>, vector<128x128xbf16>, vector<256x128xf32> -> vector<256x128xf32>
    %40 = arith.addf %34, %39 : vector<256x128xf32>
    %c1_33 = arith.constant 1 : index
    %c1_34 = arith.constant 1 : index
    %c0_35 = arith.constant 0 : index
    %41 = vector.load %arg9[%c1_33, %c1_34, %c0_35] : memref<18x18x128xf32, #tpu.memory_space<vmem>>, vector<16x16x128xf32>
    %42 = vector.shape_cast %41 : vector<16x16x128xf32> to vector<256x128xf32>
    %43 = arith.truncf %42 : vector<256x128xf32> to vector<256x128xbf16>
    %c512 = arith.constant 512 : index
    %c0_36 = arith.constant 0 : index
    %44 = vector.load %arg4[%c512, %c0_36] : memref<1152x128xbf16, #tpu.memory_space<vmem>>, vector<128x128xbf16>
    %cst_37 = arith.constant dense<0.000000e+00> : vector<256x128xf32>
    %45 = tpu.matmul %43, %44, %cst_37 {dimension_numbers = #tpu.dot_dimension_numbers<[1], [0], [0], [1], [0, 0, 1, 1], [], []>} : vector<256x128xbf16>, vector<128x128xbf16>, vector<256x128xf32> -> vector<256x128xf32>
    %46 = arith.addf %40, %45 : vector<256x128xf32>
    %c1_38 = arith.constant 1 : index
    %c2_39 = arith.constant 2 : index
    %c0_40 = arith.constant 0 : index
    %47 = vector.load %arg9[%c1_38, %c2_39, %c0_40] : memref<18x18x128xf32, #tpu.memory_space<vmem>>, vector<16x16x128xf32>
    %48 = vector.shape_cast %47 : vector<16x16x128xf32> to vector<256x128xf32>
    %49 = arith.truncf %48 : vector<256x128xf32> to vector<256x128xbf16>
    %c640 = arith.constant 640 : index
    %c0_41 = arith.constant 0 : index
    %50 = vector.load %arg4[%c640, %c0_41] : memref<1152x128xbf16, #tpu.memory_space<vmem>>, vector<128x128xbf16>
    %cst_42 = arith.constant dense<0.000000e+00> : vector<256x128xf32>
    %51 = tpu.matmul %49, %50, %cst_42 {dimension_numbers = #tpu.dot_dimension_numbers<[1], [0], [0], [1], [0, 0, 1, 1], [], []>} : vector<256x128xbf16>, vector<128x128xbf16>, vector<256x128xf32> -> vector<256x128xf32>
    %52 = arith.addf %46, %51 : vector<256x128xf32>
    %c2_43 = arith.constant 2 : index
    %c0_44 = arith.constant 0 : index
    %c0_45 = arith.constant 0 : index
    %53 = vector.load %arg9[%c2_43, %c0_44, %c0_45] : memref<18x18x128xf32, #tpu.memory_space<vmem>>, vector<16x16x128xf32>
    %54 = vector.shape_cast %53 : vector<16x16x128xf32> to vector<256x128xf32>
    %55 = arith.truncf %54 : vector<256x128xf32> to vector<256x128xbf16>
    %c768 = arith.constant 768 : index
    %c0_46 = arith.constant 0 : index
    %56 = vector.load %arg4[%c768, %c0_46] : memref<1152x128xbf16, #tpu.memory_space<vmem>>, vector<128x128xbf16>
    %cst_47 = arith.constant dense<0.000000e+00> : vector<256x128xf32>
    %57 = tpu.matmul %55, %56, %cst_47 {dimension_numbers = #tpu.dot_dimension_numbers<[1], [0], [0], [1], [0, 0, 1, 1], [], []>} : vector<256x128xbf16>, vector<128x128xbf16>, vector<256x128xf32> -> vector<256x128xf32>
    %58 = arith.addf %52, %57 : vector<256x128xf32>
    %c2_48 = arith.constant 2 : index
    %c1_49 = arith.constant 1 : index
    %c0_50 = arith.constant 0 : index
    %59 = vector.load %arg9[%c2_48, %c1_49, %c0_50] : memref<18x18x128xf32, #tpu.memory_space<vmem>>, vector<16x16x128xf32>
    %60 = vector.shape_cast %59 : vector<16x16x128xf32> to vector<256x128xf32>
    %61 = arith.truncf %60 : vector<256x128xf32> to vector<256x128xbf16>
    %c896 = arith.constant 896 : index
    %c0_51 = arith.constant 0 : index
    %62 = vector.load %arg4[%c896, %c0_51] : memref<1152x128xbf16, #tpu.memory_space<vmem>>, vector<128x128xbf16>
    %cst_52 = arith.constant dense<0.000000e+00> : vector<256x128xf32>
    %63 = tpu.matmul %61, %62, %cst_52 {dimension_numbers = #tpu.dot_dimension_numbers<[1], [0], [0], [1], [0, 0, 1, 1], [], []>} : vector<256x128xbf16>, vector<128x128xbf16>, vector<256x128xf32> -> vector<256x128xf32>
    %64 = arith.addf %58, %63 : vector<256x128xf32>
    %c2_53 = arith.constant 2 : index
    %c2_54 = arith.constant 2 : index
    %c0_55 = arith.constant 0 : index
    %65 = vector.load %arg9[%c2_53, %c2_54, %c0_55] : memref<18x18x128xf32, #tpu.memory_space<vmem>>, vector<16x16x128xf32>
    %66 = vector.shape_cast %65 : vector<16x16x128xf32> to vector<256x128xf32>
    %67 = arith.truncf %66 : vector<256x128xf32> to vector<256x128xbf16>
    %c1024 = arith.constant 1024 : index
    %c0_56 = arith.constant 0 : index
    %68 = vector.load %arg4[%c1024, %c0_56] : memref<1152x128xbf16, #tpu.memory_space<vmem>>, vector<128x128xbf16>
    %cst_57 = arith.constant dense<0.000000e+00> : vector<256x128xf32>
    %69 = tpu.matmul %67, %68, %cst_57 {dimension_numbers = #tpu.dot_dimension_numbers<[1], [0], [0], [1], [0, 0, 1, 1], [], []>} : vector<256x128xbf16>, vector<128x128xbf16>, vector<256x128xf32> -> vector<256x128xf32>
    %70 = arith.addf %64, %69 : vector<256x128xf32>
    %c0_58 = arith.constant 0 : index
    %c0_59 = arith.constant 0 : index
    %71 = vector.load %arg5[%c0_58, %c0_59] : memref<1x128xf32, #tpu.memory_space<vmem>>, vector<1x128xf32>
    %72 = vector.broadcast %71 : vector<1x128xf32> to vector<256x128xf32>
    %73 = arith.addf %70, %72 : vector<256x128xf32>
    %74 = arith.truncf %73 : vector<256x128xf32> to vector<256x128xbf16>
    %c0_60 = arith.constant 0 : index
    %c0_61 = arith.constant 0 : index
    %c0_62 = arith.constant 0 : index
    %75 = vector.load %arg7[%c0_60, %c0_61, %c0_62] : memref<1x256x128xbf16, #tpu.memory_space<vmem>>, vector<1x256x128xbf16>
    %76 = vector.shape_cast %75 : vector<1x256x128xbf16> to vector<256x128xbf16>
    %77 = vector.shape_cast %74 : vector<256x128xbf16> to vector<1x256x128xbf16>
    tpu.vector_store %arg7[%c0_60, %c0_61, %c0_62], %77 {strides = array<i32>} : memref<1x256x128xbf16, #tpu.memory_space<vmem>>, vector<1x256x128xbf16>,
    %c0_63 = arith.constant 0 : index
    %c0_64 = arith.constant 0 : index
    %78 = vector.load %arg8[%c0_63, %c0_64] : memref<8x128xf32, #tpu.memory_space<vmem>>, vector<1x128xf32>
    %cst_65 = arith.constant dense<0.000000e+00> : vector<128xf32>
    %79 = vector.multi_reduction <add>, %73, %cst_65 [0] : vector<256x128xf32> to vector<128xf32>
    %80 = vector.shape_cast %79 : vector<128xf32> to vector<1x128xf32>
    %81 = arith.addf %78, %80 : vector<1x128xf32>
    %c0_66 = arith.constant 0 : index
    %c0_67 = arith.constant 0 : index
    %82 = vector.load %arg8[%c0_66, %c0_67] : memref<8x128xf32, #tpu.memory_space<vmem>>, vector<1x128xf32>
    tpu.vector_store %arg8[%c0_66, %c0_67], %81 {strides = array<i32>} : memref<8x128xf32, #tpu.memory_space<vmem>>, vector<1x128xf32>,
    %c1_68 = arith.constant 1 : index
    %c0_69 = arith.constant 0 : index
    %83 = vector.load %arg8[%c1_68, %c0_69] : memref<8x128xf32, #tpu.memory_space<vmem>>, vector<1x128xf32>
    %84 = arith.mulf %73, %73 : vector<256x128xf32>
    %cst_70 = arith.constant dense<0.000000e+00> : vector<128xf32>
    %85 = vector.multi_reduction <add>, %84, %cst_70 [0] : vector<256x128xf32> to vector<128xf32>
    %86 = vector.shape_cast %85 : vector<128xf32> to vector<1x128xf32>
    %87 = arith.addf %83, %86 : vector<1x128xf32>
    %c1_71 = arith.constant 1 : index
    %c0_72 = arith.constant 0 : index
    %88 = vector.load %arg8[%c1_71, %c0_72] : memref<8x128xf32, #tpu.memory_space<vmem>>, vector<1x128xf32>
    tpu.vector_store %arg8[%c1_71, %c0_72], %87 {strides = array<i32>} : memref<8x128xf32, #tpu.memory_space<vmem>>, vector<1x128xf32>,
    %c1_i32 = arith.constant 1 : i32
    %89 = arith.cmpi eq, %arg0, %c1_i32 : i32
    %90 = arith.extui %89 : i1 to i32
    %c0_i32_73 = arith.constant 0 : i32
    %91 = arith.cmpi ne, %90, %c0_i32_73 : i32
    scf.if %91 {
      %c0_74 = arith.constant 0 : index
      %c0_75 = arith.constant 0 : index
      %92 = vector.load %arg8[%c0_74, %c0_75] : memref<8x128xf32, #tpu.memory_space<vmem>>, vector<1x128xf32>
      %cst_76 = arith.constant 0.001953125 : f32
      %93 = vector.broadcast %cst_76 : f32 to vector<1x128xf32>
      %94 = arith.mulf %92, %93 : vector<1x128xf32>
      %c1_77 = arith.constant 1 : index
      %c0_78 = arith.constant 0 : index
      %95 = vector.load %arg8[%c1_77, %c0_78] : memref<8x128xf32, #tpu.memory_space<vmem>>, vector<1x128xf32>
      %cst_79 = arith.constant 0.001953125 : f32
      %96 = vector.broadcast %cst_79 : f32 to vector<1x128xf32>
      %97 = arith.mulf %95, %96 : vector<1x128xf32>
      %98 = arith.mulf %94, %94 : vector<1x128xf32>
      %99 = arith.subf %97, %98 : vector<1x128xf32>
      %cst_80 = arith.constant 0.000000e+00 : f32
      %100 = vector.broadcast %cst_80 : f32 to vector<1x128xf32>
      %101 = arith.maximumf %99, %100 : vector<1x128xf32>
      %c0_81 = arith.constant 0 : index
      %c0_82 = arith.constant 0 : index
      %102 = vector.load %arg8[%c0_81, %c0_82] : memref<8x128xf32, #tpu.memory_space<vmem>>, vector<1x128xf32>
      tpu.vector_store %arg8[%c0_81, %c0_82], %94 {strides = array<i32>} : memref<8x128xf32, #tpu.memory_space<vmem>>, vector<1x128xf32>,
      %cst_83 = arith.constant 9.99999974E-6 : f32
      %103 = vector.broadcast %cst_83 : f32 to vector<1x128xf32>
      %104 = arith.addf %101, %103 : vector<1x128xf32>
      %105 = math.rsqrt %104 : vector<1x128xf32>
      %c1_84 = arith.constant 1 : index
      %c0_85 = arith.constant 0 : index
      %106 = vector.load %arg8[%c1_84, %c0_85] : memref<8x128xf32, #tpu.memory_space<vmem>>, vector<1x128xf32>
      tpu.vector_store %arg8[%c1_84, %c0_85], %105 {strides = array<i32>} : memref<8x128xf32, #tpu.memory_space<vmem>>, vector<1x128xf32>,
    } else {
    }
    return
  }
  func.func @transform_0(%arg0: i32) -> (i32, i32, i32) {
    %c0_i32 = arith.constant 0 : i32
    %c0_i32_0 = arith.constant 0 : i32
    %c0_i32_1 = arith.constant 0 : i32
    return %arg0, %c0_i32, %c0_i32_0 : i32, i32, i32
  }
  func.func @transform_1(%arg0: i32) -> (i32, i32) {
    %c0_i32 = arith.constant 0 : i32
    %c0_i32_0 = arith.constant 0 : i32
    %c0_i32_1 = arith.constant 0 : i32
    return %c0_i32, %c0_i32_0 : i32, i32
  }
  func.func @transform_2(%arg0: i32) -> (i32, i32) {
    %c0_i32 = arith.constant 0 : i32
    %c0_i32_0 = arith.constant 0 : i32
    %c0_i32_1 = arith.constant 0 : i32
    return %c0_i32, %c0_i32_0 : i32, i32
  }
  func.func @transform_3(%arg0: i32) -> (i32, i32) {
    %c0_i32 = arith.constant 0 : i32
    %c0_i32_0 = arith.constant 0 : i32
    %c0_i32_1 = arith.constant 0 : i32
    return %c0_i32, %c0_i32_0 : i32, i32
  }
  func.func @transform_4(%arg0: i32) -> (i32, i32) {
    %c0_i32 = arith.constant 0 : i32
    %c0_i32_0 = arith.constant 0 : i32
    %c0_i32_1 = arith.constant 0 : i32
    return %c0_i32, %c0_i32_0 : i32, i32
  }
  func.func @transform_5(%arg0: i32) -> (i32, i32, i32) {
    %c0_i32 = arith.constant 0 : i32
    %c0_i32_0 = arith.constant 0 : i32
    %c0_i32_1 = arith.constant 0 : i32
    return %arg0, %c0_i32, %c0_i32_0 : i32, i32, i32
  }
  func.func @transform_6(%arg0: i32) -> (i32, i32, i32) {
    %c0_i32 = arith.constant 0 : i32
    %c0_i32_0 = arith.constant 0 : i32
    %c0_i32_1 = arith.constant 0 : i32
    return %arg0, %c0_i32, %c0_i32_0 : i32, i32, i32
  }
  func.func @transform_7(%arg0: i32) -> (i32, i32) {
    %c0_i32 = arith.constant 0 : i32
    %c0_i32_0 = arith.constant 0 : i32
    %c0_i32_1 = arith.constant 0 : i32
    return %c0_i32, %c0_i32_0 : i32, i32
  }
}

module attributes {stable_mosaic.version = 11 : i64} {
  func.func @_phase2_kernel(%arg0: i32, %arg1: memref<1x256x128xbf16, #tpu.memory_space<vmem>>, %arg2: memref<1x256x128xbf16, #tpu.memory_space<vmem>>, %arg3: memref<8x128xf32, #tpu.memory_space<vmem>>, %arg4: memref<1x1x128xf32, #tpu.memory_space<vmem>>, %arg5: memref<1x1x128xf32, #tpu.memory_space<vmem>>, %arg6: memref<1x256x128xf32, #tpu.memory_space<vmem>>) attributes {dimension_semantics = [#tpu.dimension_semantics<parallel>], iteration_bounds = array<i64: 2>, scalar_prefetch = 0 : i64, scratch_operands = 0 : i64, tpu.core_type = #tpu.core_type<tc>, window_params = [{transform_indices = @transform_0, window_bounds = array<i64: 1, 256, 128>}, {transform_indices = @transform_1, window_bounds = array<i64: 1, 256, 128>}, {pipeline_mode = #tpu.pipeline_mode<synchronous>, transform_indices = @transform_2, window_bounds = array<i64: 8, 128>}, {transform_indices = @transform_3, window_bounds = array<i64: 1, 1, 128>}, {transform_indices = @transform_4, window_bounds = array<i64: 1, 1, 128>}, {transform_indices = @transform_5, window_bounds = array<i64: 1, 256, 128>}]} {
    %c0 = arith.constant 0 : index
    %c0_0 = arith.constant 0 : index
    %0 = vector.load %arg3[%c0, %c0_0] : memref<8x128xf32, #tpu.memory_space<vmem>>, vector<1x128xf32>
    %c1 = arith.constant 1 : index
    %c0_1 = arith.constant 0 : index
    %1 = vector.load %arg3[%c1, %c0_1] : memref<8x128xf32, #tpu.memory_space<vmem>>, vector<1x128xf32>
    %c0_2 = arith.constant 0 : index
    %c0_3 = arith.constant 0 : index
    %c0_4 = arith.constant 0 : index
    %2 = vector.load %arg1[%c0_2, %c0_3, %c0_4] : memref<1x256x128xbf16, #tpu.memory_space<vmem>>, vector<1x256x128xbf16>
    %3 = vector.shape_cast %2 : vector<1x256x128xbf16> to vector<256x128xbf16>
    %4 = arith.extf %3 : vector<256x128xbf16> to vector<256x128xf32>
    %5 = vector.broadcast %0 : vector<1x128xf32> to vector<256x128xf32>
    %6 = arith.subf %4, %5 : vector<256x128xf32>
    %7 = vector.broadcast %1 : vector<1x128xf32> to vector<256x128xf32>
    %8 = arith.mulf %6, %7 : vector<256x128xf32>
    %c0_5 = arith.constant 0 : index
    %c0_6 = arith.constant 0 : index
    %c0_7 = arith.constant 0 : index
    %9 = vector.load %arg4[%c0_5, %c0_6, %c0_7] : memref<1x1x128xf32, #tpu.memory_space<vmem>>, vector<1x1x128xf32>
    %10 = vector.shape_cast %9 : vector<1x1x128xf32> to vector<1x128xf32>
    %11 = vector.broadcast %10 : vector<1x128xf32> to vector<256x128xf32>
    %12 = arith.mulf %11, %8 : vector<256x128xf32>
    %c0_8 = arith.constant 0 : index
    %c0_9 = arith.constant 0 : index
    %c0_10 = arith.constant 0 : index
    %13 = vector.load %arg5[%c0_8, %c0_9, %c0_10] : memref<1x1x128xf32, #tpu.memory_space<vmem>>, vector<1x1x128xf32>
    %14 = vector.shape_cast %13 : vector<1x1x128xf32> to vector<1x128xf32>
    %15 = vector.broadcast %14 : vector<1x128xf32> to vector<256x128xf32>
    %16 = arith.addf %12, %15 : vector<256x128xf32>
    %c0_11 = arith.constant 0 : index
    %c0_12 = arith.constant 0 : index
    %c0_13 = arith.constant 0 : index
    %17 = vector.load %arg2[%c0_11, %c0_12, %c0_13] : memref<1x256x128xbf16, #tpu.memory_space<vmem>>, vector<1x256x128xbf16>
    %18 = vector.shape_cast %17 : vector<1x256x128xbf16> to vector<256x128xbf16>
    %19 = arith.extf %18 : vector<256x128xbf16> to vector<256x128xf32>
    %cst = arith.constant 0.000000e+00 : f32
    %20 = vector.broadcast %cst : f32 to vector<256x128xf32>
    %21 = arith.maximumf %16, %20 : vector<256x128xf32>
    %22 = arith.addf %19, %21 : vector<256x128xf32>
    %c0_14 = arith.constant 0 : index
    %c0_15 = arith.constant 0 : index
    %c0_16 = arith.constant 0 : index
    %23 = vector.load %arg6[%c0_14, %c0_15, %c0_16] : memref<1x256x128xf32, #tpu.memory_space<vmem>>, vector<1x256x128xf32>
    %24 = vector.shape_cast %23 : vector<1x256x128xf32> to vector<256x128xf32>
    %25 = vector.shape_cast %22 : vector<256x128xf32> to vector<1x256x128xf32>
    tpu.vector_store %arg6[%c0_14, %c0_15, %c0_16], %25 {strides = array<i32>} : memref<1x256x128xf32, #tpu.memory_space<vmem>>, vector<1x256x128xf32>,
    return
  }
  func.func @transform_0(%arg0: i32) -> (i32, i32, i32) {
    %c0_i32 = arith.constant 0 : i32
    %c0_i32_0 = arith.constant 0 : i32
    %c0_i32_1 = arith.constant 0 : i32
    return %arg0, %c0_i32, %c0_i32_0 : i32, i32, i32
  }
  func.func @transform_1(%arg0: i32) -> (i32, i32, i32) {
    %c0_i32 = arith.constant 0 : i32
    %c0_i32_0 = arith.constant 0 : i32
    %c0_i32_1 = arith.constant 0 : i32
    return %arg0, %c0_i32, %c0_i32_0 : i32, i32, i32
  }
  func.func @transform_2(%arg0: i32) -> (i32, i32) {
    %c0_i32 = arith.constant 0 : i32
    %c0_i32_0 = arith.constant 0 : i32
    %c0_i32_1 = arith.constant 0 : i32
    return %c0_i32, %c0_i32_0 : i32, i32
  }
  func.func @transform_3(%arg0: i32) -> (i32, i32, i32) {
    %c0_i32 = arith.constant 0 : i32
    %c0_i32_0 = arith.constant 0 : i32
    %c0_i32_1 = arith.constant 0 : i32
    return %arg0, %c0_i32, %c0_i32_0 : i32, i32, i32
  }
  func.func @transform_4(%arg0: i32) -> (i32, i32, i32) {
    %c0_i32 = arith.constant 0 : i32
    %c0_i32_0 = arith.constant 0 : i32
    %c0_i32_1 = arith.constant 0 : i32
    return %arg0, %c0_i32, %c0_i32_0 : i32, i32, i32
  }
  func.func @transform_5(%arg0: i32) -> (i32, i32, i32) {
    %c0_i32 = arith.constant 0 : i32
    %c0_i32_0 = arith.constant 0 : i32
    %c0_i32_1 = arith.constant 0 : i32
    return %arg0, %c0_i32, %c0_i32_0 : i32, i32, i32
  }
}

</mosaic_0001>

<llo_original>
// kernel: filmed_resblock.3
$region0: #{filmed_resblock.3}
  #allocation0 [shape = 'u32[]', space=smem, size = 0x4, offset = 0x4, fixed_abs, tag = 'smem constant byte address 0x4 - core index']
  #allocation1 [shape = 'u32[144,128]{1,0:T(1,128)}', space=vmem, size = 0x12000, scoped, tag = 'internal scratch']
  %s0 = inlined_call_operand.vmem [shape: bf16[2,256,128], index: 0, kind: input, shape index: {}]
  %s1 = inlined_call_operand.vmem [shape: bf16[2,256,128], index: 1, kind: input, shape index: {}]
  %s2 = inlined_call_operand.vmem [shape: f32[8,128], index: 2, kind: input, shape index: {}]
  %s3 = inlined_call_operand.vmem [shape: f32[2,1,128], index: 3, kind: input, shape index: {}]
  %s4 = inlined_call_operand.vmem [shape: f32[2,1,128], index: 4, kind: input, shape index: {}]
  %s5 = inlined_call_operand.vmem [shape: f32[2,256,128], index: 5, kind: output, shape index: {}]
  %s6 = sld [smem:[#allocation0]]
  $region53: #{filmed_resblock.3} parent=0
    _
  %s8 = ssub.s32 1, %s6
  %s9 = scalar_select 0, %s8, %s6
  loop: start=0, step=1, limit=4
  $region2: #{filmed_resblock.3} parent=0 // loop_pre_header
    _
  $region3: #{filmed_resblock.3} parent=0 // loop_header
    %s11 = sphi 0, %s15
    %p12 = scmp.ge.s32.totalorder %s11, 4
    %s21 = sphi 0, %s23
    %s24 = sphi 0, %s21
    %s25 = sphi 0, %s24
    %s41 = sphi 0, %s25
    %s47 = sphi 0, %s49
    %s50 = sphi 0, %s47
    %s51 = sphi 0, %s50
    %s67 = sphi 0, %s51
    %s71 = sphi 0, %s71
    %s73 = sphi 0, %s71
    %s74 = sphi 0, %s73
    %s88 = sphi 0, %s74
    %s94 = sphi 0, %s96
    %s97 = sphi 0, %s94
    %s98 = sphi 0, %s97
    %s114 = sphi 0, %s98
    %s120 = sphi 0, %s122
    %s123 = sphi 0, %s120
    %s124 = sphi 0, %s123
    %s140 = sphi 0, %s124
    %s146 = sphi 0, %s148
    %s149 = sphi 0, %s146
    %s150 = sphi 0, %s149
    %s166 = sphi 0, %s150
  $region4: #{filmed_resblock.3} parent=0 // loop_header_branch
    %14 = sbr.rel (%p12) target = $region8
  $region5: #{filmed_resblock.3} parent=0 // loop_body
    %s16 = ssub.s32 %s11, 1
    %s17 = ssub.s32 %s11, 2
    %s18 = sadd.s32 %s11, 1
    %s19 = ssub.s32 %s11, %s18
    %p20 = scmp.eq.s32.totalorder %s19, 0
    %s22 = sadd.s32 %s21, 1
    %s23 = scalar_select %p20, %s21, %s22
    %p26 = pneg %p20
    %p27 = scmp.eq.s32.totalorder %s11, 1
    %p28 = por %p26, %p27
    %p29 = scmp.ne.s32.totalorder %s21, %s24
    %p30 = scmp.eq.s32.totalorder %s11, 0
    %p31 = por %p29, %p30
    %p32 = scmp.ne.s32.totalorder %s21, %s24
    %p33 = scmp.eq.s32.totalorder %s16, 1
    %p34 = por %p32, %p33
    %p35 = scmp.ne.s32.totalorder %s24, %s25
    %p36 = scmp.eq.s32.totalorder %s16, 0
    %p37 = por %p35, %p36
    %p38 = scmp.ne.s32.totalorder %s24, %s25
    %p39 = scmp.eq.s32.totalorder %s17, 1
    %p40 = por %p38, %p39
    %p42 = scmp.ne.s32.totalorder %s25, %s41
    %p43 = scmp.eq.s32.totalorder %s17, 0
    %p44 = por %p42, %p43
    %s45 = ssub.s32 %s11, %s18
    %p46 = scmp.eq.s32.totalorder %s45, 0
    %s48 = sadd.s32 %s47, 1
    %s49 = scalar_select %p46, %s47, %s48
    %p52 = pneg %p46
    %p53 = scmp.eq.s32.totalorder %s11, 1
    %p54 = por %p52, %p53
    %p55 = scmp.ne.s32.totalorder %s47, %s50
    %p56 = scmp.eq.s32.totalorder %s11, 0
    %p57 = por %p55, %p56
    %p58 = scmp.ne.s32.totalorder %s47, %s50
    %p59 = scmp.eq.s32.totalorder %s16, 1
    %p60 = por %p58, %p59
    %p61 = scmp.ne.s32.totalorder %s50, %s51
    %p62 = scmp.eq.s32.totalorder %s16, 0
    %p63 = por %p61, %p62
    %p64 = scmp.ne.s32.totalorder %s50, %s51
    %p65 = scmp.eq.s32.totalorder %s17, 1
    %p66 = por %p64, %p65
    %p68 = scmp.ne.s32.totalorder %s51, %s67
    %p69 = scmp.eq.s32.totalorder %s17, 0
    %p70 = por %p68, %p69
    %s72 = sadd.s32 %s71, 1
    %p75 = scmp.eq.s32.totalorder %s11, 1
    %p76 = scmp.ne.s32.totalorder %s71, %s73
    %p77 = scmp.eq.s32.totalorder %s11, 0
    %p78 = por %p76, %p77
    %p79 = scmp.ne.s32.totalorder %s71, %s73
    %p80 = scmp.eq.s32.totalorder %s16, 1
    %p81 = por %p79, %p80
    %p82 = scmp.ne.s32.totalorder %s73, %s74
    %p83 = scmp.eq.s32.totalorder %s16, 0
    %p84 = por %p82, %p83
    %p85 = scmp.ne.s32.totalorder %s73, %s74
    %p86 = scmp.eq.s32.totalorder %s17, 1
    %p87 = por %p85, %p86
    %p89 = scmp.ne.s32.totalorder %s74, %s88
    %p90 = scmp.eq.s32.totalorder %s17, 0
    %p91 = por %p89, %p90
    %s92 = ssub.s32 %s11, %s18
    %p93 = scmp.eq.s32.totalorder %s92, 0
    %s95 = sadd.s32 %s94, 1
    %s96 = scalar_select %p93, %s94, %s95
    %p99 = pneg %p93
    %p100 = scmp.eq.s32.totalorder %s11, 1
    %p101 = por %p99, %p100
    %p102 = scmp.ne.s32.totalorder %s94, %s97
    %p103 = scmp.eq.s32.totalorder %s11, 0
    %p104 = por %p102, %p103
    %p105 = scmp.ne.s32.totalorder %s94, %s97
    %p106 = scmp.eq.s32.totalorder %s16, 1
    %p107 = por %p105, %p106
    %p108 = scmp.ne.s32.totalorder %s97, %s98
    %p109 = scmp.eq.s32.totalorder %s16, 0
    %p110 = por %p108, %p109
    %p111 = scmp.ne.s32.totalorder %s97, %s98
    %p112 = scmp.eq.s32.totalorder %s17, 1
    %p113 = por %p111, %p112
    %p115 = scmp.ne.s32.totalorder %s98, %s114
    %p116 = scmp.eq.s32.totalorder %s17, 0
    %p117 = por %p115, %p116
    %s118 = ssub.s32 %s11, %s18
    %p119 = scmp.eq.s32.totalorder %s118, 0
    %s121 = sadd.s32 %s120, 1
    %s122 = scalar_select %p119, %s120, %s121
    %p125 = pneg %p119
    %p126 = scmp.eq.s32.totalorder %s11, 1
    %p127 = por %p125, %p126
    %p128 = scmp.ne.s32.totalorder %s120, %s123
    %p129 = scmp.eq.s32.totalorder %s11, 0
    %p130 = por %p128, %p129
    %p131 = scmp.ne.s32.totalorder %s120, %s123
    %p132 = scmp.eq.s32.totalorder %s16, 1
    %p133 = por %p131, %p132
    %p134 = scmp.ne.s32.totalorder %s123, %s124
    %p135 = scmp.eq.s32.totalorder %s16, 0
    %p136 = por %p134, %p135
    %p137 = scmp.ne.s32.totalorder %s123, %s124
    %p138 = scmp.eq.s32.totalorder %s17, 1
    %p139 = por %p137, %p138
    %p141 = scmp.ne.s32.totalorder %s124, %s140
    %p142 = scmp.eq.s32.totalorder %s17, 0
    %p143 = por %p141, %p142
    %s144 = ssub.s32 %s11, %s18
    %p145 = scmp.eq.s32.totalorder %s144, 0
    %s147 = sadd.s32 %s146, 1
    %s148 = scalar_select %p145, %s146, %s147
    %p151 = pneg %p145
    %p152 = scmp.eq.s32.totalorder %s11, 1
    %p153 = por %p151, %p152
    %p154 = scmp.ne.s32.totalorder %s146, %s149
    %p155 = scmp.eq.s32.totalorder %s11, 0
    %p156 = por %p154, %p155
    %p157 = scmp.ne.s32.totalorder %s146, %s149
    %p158 = scmp.eq.s32.totalorder %s16, 1
    %p159 = por %p157, %p158
    %p160 = scmp.ne.s32.totalorder %s149, %s150
    %p161 = scmp.eq.s32.totalorder %s16, 0
    %p162 = por %p160, %p161
    %p163 = scmp.ne.s32.totalorder %s149, %s150
    %p164 = scmp.eq.s32.totalorder %s17, 1
    %p165 = por %p163, %p164
    %p167 = scmp.ne.s32.totalorder %s150, %s166
    %p168 = scmp.eq.s32.totalorder %s17, 0
    %p169 = por %p167, %p168
    %p170 = scmp.le.s32.totalorder 1, %s11
    %p171 = scmp.lt.s32.totalorder %s11, 3
    %p172 = pnand %p170, %p171
    %p173 = pneg %p172
    // Predicated region
    $region9: #{filmed_resblock.3} parent=5 // pred_check
      _
    $region10: #{filmed_resblock.3} parent=5 // pred_check_branch
      %175 = sbr.rel (%p172) target = $region12
    $region11: #{filmed_resblock.3} parent=5 // pred_region
      %s176 = ssub.s32 %s11, 1
      // Predicated region
      $region13: #{filmed_resblock.3} parent=11 // pred_check
        %p177 = pneg %p84
      $region14: #{filmed_resblock.3} parent=11 // pred_check_branch
        %179 = sbr.rel (%p177) target = $region16
      $region15: #{filmed_resblock.3} parent=11 // pred_region
        _
      $region16: #{filmed_resblock.3} parent=11 // pred_fallthru
        _
    $region12: #{filmed_resblock.3} parent=5 // pred_fallthru
      _
    %p180 = scmp.lt.s32.totalorder %s11, 2
    // Predicated region
    $region17: #{filmed_resblock.3} parent=5 // pred_check
      %p181 = pneg %p180
    $region18: #{filmed_resblock.3} parent=5 // pred_check_branch
      %183 = sbr.rel (%p181) target = $region20
    $region19: #{filmed_resblock.3} parent=5 // pred_region
      // Predicated region
      $region21: #{filmed_resblock.3} parent=19 // pred_check
        %p184 = pneg %p31
      $region22: #{filmed_resblock.3} parent=19 // pred_check_branch
        %186 = sbr.rel (%p184) target = $region24
      $region23: #{filmed_resblock.3} parent=19 // pred_region
        %p187 = scmp.lt.s32.totalorder %s11, 1
        %s188 = scalar_select %p187, %s11, 1
        %s189 = smul.addr %s188, 32
        %s190 = smul.addr %s189, 4
        %s191 = scalar_lea.vmem %s0, %s190
      $region24: #{filmed_resblock.3} parent=19 // pred_fallthru
        _
      // Predicated region
      $region25: #{filmed_resblock.3} parent=19 // pred_check
        %p192 = pneg %p57
      $region26: #{filmed_resblock.3} parent=19 // pred_check_branch
        %194 = sbr.rel (%p192) target = $region28
      $region27: #{filmed_resblock.3} parent=19 // pred_region
        %p195 = scmp.lt.s32.totalorder %s11, 1
        %s196 = scalar_select %p195, %s11, 1
        %s197 = smul.addr %s196, 32
        %s198 = smul.addr %s197, 4
        %s199 = scalar_lea.vmem %s1, %s198
      $region28: #{filmed_resblock.3} parent=19 // pred_fallthru
        _
      // Predicated region
      $region29: #{filmed_resblock.3} parent=19 // pred_check
        %p200 = pneg %p104
      $region30: #{filmed_resblock.3} parent=19 // pred_check_branch
        %202 = sbr.rel (%p200) target = $region32
      $region31: #{filmed_resblock.3} parent=19 // pred_region
        %p203 = scmp.lt.s32.totalorder %s11, 1
        %s204 = scalar_select %p203, %s11, 1
        %s205 = scalar_lea.vmem %s3, %s204
      $region32: #{filmed_resblock.3} parent=19 // pred_fallthru
        _
      // Predicated region
      $region33: #{filmed_resblock.3} parent=19 // pred_check
        %p206 = pneg %p130
      $region34: #{filmed_resblock.3} parent=19 // pred_check_branch
        %208 = sbr.rel (%p206) target = $region36
      $region35: #{filmed_resblock.3} parent=19 // pred_region
        %p209 = scmp.lt.s32.totalorder %s11, 1
        %s210 = scalar_select %p209, %s11, 1
        %s211 = scalar_lea.vmem %s4, %s210
      $region36: #{filmed_resblock.3} parent=19 // pred_fallthru
        _
    $region20: #{filmed_resblock.3} parent=5 // pred_fallthru
      _
    %p212 = scmp.le.s32.totalorder 1, %s11
    %p213 = scmp.lt.s32.totalorder %s11, 3
    %p214 = pnand %p212, %p213
    %p215 = pneg %p214
    // Predicated region
    $region37: #{filmed_resblock.3} parent=5 // pred_check
      _
    $region38: #{filmed_resblock.3} parent=5 // pred_check_branch
      %217 = sbr.rel (%p214) target = $region40
    $region39: #{filmed_resblock.3} parent=5 // pred_region
      %s218 = ssub.s32 %s11, 1
      %p219 = scmp.lt.s32.totalorder %s16, 1
      %s220 = scalar_select %p219, %s16, 1
      %s221 = smul.addr %s220, 32
      %s222 = smul.addr %s221, 4
      %s223 = scalar_lea.vmem %s0, %s222
      %p224 = pneg %p37
      %p225 = pneg %p34
      %p226 = scmp.lt.s32.totalorder %s16, 1
      %s227 = scalar_select %p226, %s16, 1
      %s228 = smul.addr %s227, 32
      %s229 = smul.addr %s228, 4
      %s230 = scalar_lea.vmem %s1, %s229
      %p231 = pneg %p63
      %p232 = pneg %p60
      %p233 = pneg %p84
      %p234 = pneg %p81
      %p235 = scmp.lt.s32.totalorder %s16, 1
      %s236 = scalar_select %p235, %s16, 1
      %s237 = scalar_lea.vmem %s3, %s236
      %p238 = pneg %p110
      %p239 = pneg %p107
      %p240 = scmp.lt.s32.totalorder %s16, 1
      %s241 = scalar_select %p240, %s16, 1
      %s242 = scalar_lea.vmem %s4, %s241
      %p243 = pneg %p136
      %p244 = pneg %p133
      %p245 = pneg %p162
      %p246 = pneg %p159
      %p247 = scmp.lt.s32.totalorder %s16, 1
      %s248 = scalar_select %p247, %s16, 1
      %s249 = smul.addr %s248, 32
      %s250 = smul.addr %s249, 8
      %s251 = scalar_lea.vmem %s5, %s250
      %p252 = scmp.lt.s32.totalorder %s16, 1
      %s253 = scalar_select %p252, %s16, 1
      %s254 = smul.addr %s253, 32
      %s255 = smul.addr %s254, 4
      %s256 = scalar_lea.vmem %s0, %s255
      %p257 = scmp.lt.s32.totalorder %s16, 1
      %s258 = scalar_select %p257, %s16, 1
      %s259 = smul.addr %s258, 32
      %s260 = smul.addr %s259, 4
      %s261 = scalar_lea.vmem %s1, %s260
      %p262 = scmp.lt.s32.totalorder %s16, 1
      %s263 = scalar_select %p262, %s16, 1
      %s264 = scalar_lea.vmem %s3, %s263
      %p265 = scmp.lt.s32.totalorder %s16, 1
      %s266 = scalar_select %p265, %s16, 1
      %s267 = scalar_lea.vmem %s4, %s266
      %p268 = scmp.lt.s32.totalorder %s16, 1
      %s269 = scalar_select %p268, %s16, 1
      %s270 = smul.addr %s269, 32
      %s271 = smul.addr %s270, 8
      %s272 = scalar_lea.vmem %s5, %s271
      %v273 = vld [vmem:[%s2] sm:$0x1]
      %v274 = vld [vmem:[%s2 + $0x1] sm:$0x1]
      %v275 = vld [vmem:[%s256] sm:$0xf]
      %v276 = vld [vmem:[%s256 + $0x4] sm:$0xf]
      %v277 = vld [vmem:[%s256 + $0x8] sm:$0xf]
      %v278 = vld [vmem:[%s256 + $0xc] sm:$0xf]
      %v279 = vld [vmem:[%s256 + $0x10] sm:$0xf]
      %v280 = vld [vmem:[%s256 + $0x14] sm:$0xf]
      %v281 = vld [vmem:[%s256 + $0x18] sm:$0xf]
      %v282 = vld [vmem:[%s256 + $0x1c] sm:$0xf]
      %v283 = vld [vmem:[%s256 + $0x20] sm:$0xf]
      %v284 = vld [vmem:[%s256 + $0x24] sm:$0xf]
      %v285 = vld [vmem:[%s256 + $0x28] sm:$0xf]
      %v286 = vld [vmem:[%s256 + $0x2c] sm:$0xf]
      %v287 = vld [vmem:[%s256 + $0x30] sm:$0xf]
      %v288 = vld [vmem:[%s256 + $0x34] sm:$0xf]
      %v289 = vld [vmem:[%s256 + $0x38] sm:$0xf]
      %v290 = vld [vmem:[%s256 + $0x3c] sm:$0xf]
      %v291 = vld [vmem:[%s256 + $0x40] sm:$0xf]
      %v292 = vld [vmem:[%s256 + $0x44] sm:$0xf]
      %v293 = vld [vmem:[%s256 + $0x48] sm:$0xf]
      %v294 = vld [vmem:[%s256 + $0x4c] sm:$0xf]
      %v295 = vld [vmem:[%s256 + $0x50] sm:$0xf]
      %v296 = vld [vmem:[%s256 + $0x54] sm:$0xf]
      %v297 = vld [vmem:[%s256 + $0x58] sm:$0xf]
      %v298 = vld [vmem:[%s256 + $0x5c] sm:$0xf]
      %v299 = vld [vmem:[%s256 + $0x60] sm:$0xf]
      %v300 = vld [vmem:[%s256 + $0x64] sm:$0xf]
      %v301 = vld [vmem:[%s256 + $0x68] sm:$0xf]
      %v302 = vld [vmem:[%s256 + $0x6c] sm:$0xf]
      %v303 = vld [vmem:[%s256 + $0x70] sm:$0xf]
      %v304 = vld [vmem:[%s256 + $0x74] sm:$0xf]
      %v305 = vld [vmem:[%s256 + $0x78] sm:$0xf]
      %v306 = vld [vmem:[%s256 + $0x7c] sm:$0xf]
      %v307 = vunpack.c.l.bf16 %v275
      %v308 = vunpack.c.l.bf16 %v276
      %v309 = vunpack.c.l.bf16 %v277
      %v310 = vunpack.c.l.bf16 %v278
      %v311 = vunpack.c.l.bf16 %v279
      %v312 = vunpack.c.l.bf16 %v280
      %v313 = vunpack.c.l.bf16 %v281
      %v314 = vunpack.c.l.bf16 %v282
      %v315 = vunpack.c.l.bf16 %v283
      %v316 = vunpack.c.l.bf16 %v284
      %v317 = vunpack.c.l.bf16 %v285
      %v318 = vunpack.c.l.bf16 %v286
      %v319 = vunpack.c.l.bf16 %v287
      %v320 = vunpack.c.l.bf16 %v288
      %v321 = vunpack.c.l.bf16 %v289
      %v322 = vunpack.c.l.bf16 %v290
      %v323 = vunpack.c.l.bf16 %v291
      %v324 = vunpack.c.l.bf16 %v292
      %v325 = vunpack.c.l.bf16 %v293
      %v326 = vunpack.c.l.bf16 %v294
      %v327 = vunpack.c.l.bf16 %v295
      %v328 = vunpack.c.l.bf16 %v296
      %v329 = vunpack.c.l.bf16 %v297
      %v330 = vunpack.c.l.bf16 %v298
      %v331 = vunpack.c.l.bf16 %v299
      %v332 = vunpack.c.l.bf16 %v300
      %v333 = vunpack.c.l.bf16 %v301
      %v334 = vunpack.c.l.bf16 %v302
      %v335 = vunpack.c.l.bf16 %v303
      %v336 = vunpack.c.l.bf16 %v304
      %v337 = vunpack.c.l.bf16 %v305
      %v338 = vunpack.c.l.bf16 %v306
      %v339 = vlaneseq
      %v340 = vshrl.u32 %v339, 7
      %v341 = vsub.s32 0, %v340
      %v342 = vrot.slane %v273, %v341
      %v343 = vsub.f32 %v307, %v342
      %v344 = vsub.f32 %v308, %v342
      %v345 = vsub.f32 %v309, %v342
      %v346 = vsub.f32 %v310, %v342
      %v347 = vsub.f32 %v311, %v342
      %v348 = vsub.f32 %v312, %v342
      %v349 = vsub.f32 %v313, %v342
      %v350 = vsub.f32 %v314, %v342
      %v351 = vsub.f32 %v315, %v342
      %v352 = vsub.f32 %v316, %v342
      %v353 = vsub.f32 %v317, %v342
      %v354 = vsub.f32 %v318, %v342
      %v355 = vsub.f32 %v319, %v342
      %v356 = vsub.f32 %v320, %v342
      %v357 = vsub.f32 %v321, %v342
      %v358 = vsub.f32 %v322, %v342
      %v359 = vsub.f32 %v323, %v342
      %v360 = vsub.f32 %v324, %v342
      %v361 = vsub.f32 %v325, %v342
      %v362 = vsub.f32 %v326, %v342
      %v363 = vsub.f32 %v327, %v342
      %v364 = vsub.f32 %v328, %v342
      %v365 = vsub.f32 %v329, %v342
      %v366 = vsub.f32 %v330, %v342
      %v367 = vsub.f32 %v331, %v342
      %v368 = vsub.f32 %v332, %v342
      %v369 = vsub.f32 %v333, %v342
      %v370 = vsub.f32 %v334, %v342
      %v371 = vsub.f32 %v335, %v342
      %v372 = vsub.f32 %v336, %v342
      %v373 = vsub.f32 %v337, %v342
      %v374 = vsub.f32 %v338, %v342
      %v375 = vlaneseq
      %v376 = vshrl.u32 %v375, 7
      %v377 = vsub.s32 0, %v376
      %v378 = vrot.slane %v274, %v377
      %v379 = vmul.f32 %v343, %v378
      %v380 = vmul.f32 %v344, %v378
      %v381 = vmul.f32 %v345, %v378
      %v382 = vmul.f32 %v346, %v378
      %v383 = vmul.f32 %v347, %v378
      %v384 = vmul.f32 %v348, %v378
      %v385 = vmul.f32 %v349, %v378
      %v386 = vmul.f32 %v350, %v378
      %v387 = vmul.f32 %v351, %v378
      %v388 = vmul.f32 %v352, %v378
      %v389 = vmul.f32 %v353, %v378
      %v390 = vmul.f32 %v354, %v378
      %v391 = vmul.f32 %v355, %v378
      %v392 = vmul.f32 %v356, %v378
      %v393 = vmul.f32 %v357, %v378
      %v394 = vmul.f32 %v358, %v378
      %v395 = vmul.f32 %v359, %v378
      %v396 = vmul.f32 %v360, %v378
      %v397 = vmul.f32 %v361, %v378
      %v398 = vmul.f32 %v362, %v378
      %v399 = vmul.f32 %v363, %v378
      %v400 = vmul.f32 %v364, %v378
      %v401 = vmul.f32 %v365, %v378
      %v402 = vmul.f32 %v366, %v378
      %v403 = vmul.f32 %v367, %v378
      %v404 = vmul.f32 %v368, %v378
      %v405 = vmul.f32 %v369, %v378
      %v406 = vmul.f32 %v370, %v378
      %v407 = vmul.f32 %v371, %v378
      %v408 = vmul.f32 %v372, %v378
      %v409 = vmul.f32 %v373, %v378
      %v410 = vmul.f32 %v374, %v378
      %v411 = vld [vmem:[%s264] sm:$0x1]
      %v413 = vlaneseq
      %v414 = vshrl.u32 %v413, 7
      %v415 = vsub.s32 0, %v414
      %v416 = vrot.slane %v411, %v415
      %v418 = vmul.f32 %v416, %v379
      %v419 = vmul.f32 %v416, %v380
      %v420 = vmul.f32 %v416, %v381
      %v421 = vmul.f32 %v416, %v382
      %v422 = vmul.f32 %v416, %v383
      %v423 = vmul.f32 %v416, %v384
      %v424 = vmul.f32 %v416, %v385
      %v425 = vmul.f32 %v416, %v386
      %v426 = vmul.f32 %v416, %v387
      %v427 = vmul.f32 %v416, %v388
      %v428 = vmul.f32 %v416, %v389
      %v429 = vmul.f32 %v416, %v390
      %v430 = vmul.f32 %v416, %v391
      %v431 = vmul.f32 %v416, %v392
      %v432 = vmul.f32 %v416, %v393
      %v433 = vmul.f32 %v416, %v394
      %v434 = vmul.f32 %v416, %v395
      %v435 = vmul.f32 %v416, %v396
      %v436 = vmul.f32 %v416, %v397
      %v437 = vmul.f32 %v416, %v398
      %v438 = vmul.f32 %v416, %v399
      %v439 = vmul.f32 %v416, %v400
      %v440 = vmul.f32 %v416, %v401
      %v441 = vmul.f32 %v416, %v402
      %v442 = vmul.f32 %v416, %v403
      %v443 = vmul.f32 %v416, %v404
      %v444 = vmul.f32 %v416, %v405
      %v445 = vmul.f32 %v416, %v406
      %v446 = vmul.f32 %v416, %v407
      %v447 = vmul.f32 %v416, %v408
      %v448 = vmul.f32 %v416, %v409
      %v449 = vmul.f32 %v416, %v410
      %v450 = vld [vmem:[%s267] sm:$0x1]
      %v452 = vlaneseq
      %v453 = vshrl.u32 %v452, 7
      %v454 = vsub.s32 0, %v453
      %v455 = vrot.slane %v450, %v454
      %v457 = vadd.f32 %v418, %v455
      %v458 = vadd.f32 %v419, %v455
      %v459 = vadd.f32 %v420, %v455
      %v460 = vadd.f32 %v421, %v455
      %v461 = vadd.f32 %v422, %v455
      %v462 = vadd.f32 %v423, %v455
      %v463 = vadd.f32 %v424, %v455
      %v464 = vadd.f32 %v425, %v455
      %v465 = vadd.f32 %v426, %v455
      %v466 = vadd.f32 %v427, %v455
      %v467 = vadd.f32 %v428, %v455
      %v468 = vadd.f32 %v429, %v455
      %v469 = vadd.f32 %v430, %v455
      %v470 = vadd.f32 %v431, %v455
      %v471 = vadd.f32 %v432, %v455
      %v472 = vadd.f32 %v433, %v455
      %v473 = vadd.f32 %v434, %v455
      %v474 = vadd.f32 %v435, %v455
      %v475 = vadd.f32 %v436, %v455
      %v476 = vadd.f32 %v437, %v455
      %v477 = vadd.f32 %v438, %v455
      %v478 = vadd.f32 %v439, %v455
      %v479 = vadd.f32 %v440, %v455
      %v480 = vadd.f32 %v441, %v455
      %v481 = vadd.f32 %v442, %v455
      %v482 = vadd.f32 %v443, %v455
      %v483 = vadd.f32 %v444, %v455
      %v484 = vadd.f32 %v445, %v455
      %v485 = vadd.f32 %v446, %v455
      %v486 = vadd.f32 %v447, %v455
      %v487 = vadd.f32 %v448, %v455
      %v488 = vadd.f32 %v449, %v455
      %v489 = vld [vmem:[%s261] sm:$0xf]
      %v490 = vld [vmem:[%s261 + $0x4] sm:$0xf]
      %v491 = vld [vmem:[%s261 + $0x8] sm:$0xf]
      %v492 = vld [vmem:[%s261 + $0xc] sm:$0xf]
      %v493 = vld [vmem:[%s261 + $0x10] sm:$0xf]
      %v494 = vld [vmem:[%s261 + $0x14] sm:$0xf]
      %v495 = vld [vmem:[%s261 + $0x18] sm:$0xf]
      %v496 = vld [vmem:[%s261 + $0x1c] sm:$0xf]
      %v497 = vld [vmem:[%s261 + $0x20] sm:$0xf]
      %v498 = vld [vmem:[%s261 + $0x24] sm:$0xf]
      %v499 = vld [vmem:[%s261 + $0x28] sm:$0xf]
      %v500 = vld [vmem:[%s261 + $0x2c] sm:$0xf]
      %v501 = vld [vmem:[%s261 + $0x30] sm:$0xf]
      %v502 = vld [vmem:[%s261 + $0x34] sm:$0xf]
      %v503 = vld [vmem:[%s261 + $0x38] sm:$0xf]
      %v504 = vld [vmem:[%s261 + $0x3c] sm:$0xf]
      %v505 = vld [vmem:[%s261 + $0x40] sm:$0xf]
      %v506 = vld [vmem:[%s261 + $0x44] sm:$0xf]
      %v507 = vld [vmem:[%s261 + $0x48] sm:$0xf]
      %v508 = vld [vmem:[%s261 + $0x4c] sm:$0xf]
      %v509 = vld [vmem:[%s261 + $0x50] sm:$0xf]
      %v510 = vld [vmem:[%s261 + $0x54] sm:$0xf]
      %v511 = vld [vmem:[%s261 + $0x58] sm:$0xf]
      %v512 = vld [vmem:[%s261 + $0x5c] sm:$0xf]
      %v513 = vld [vmem:[%s261 + $0x60] sm:$0xf]
      %v514 = vld [vmem:[%s261 + $0x64] sm:$0xf]
      %v515 = vld [vmem:[%s261 + $0x68] sm:$0xf]
      %v516 = vld [vmem:[%s261 + $0x6c] sm:$0xf]
      %v517 = vld [vmem:[%s261 + $0x70] sm:$0xf]
      %v518 = vld [vmem:[%s261 + $0x74] sm:$0xf]
      %v519 = vld [vmem:[%s261 + $0x78] sm:$0xf]
      %v520 = vld [vmem:[%s261 + $0x7c] sm:$0xf]
      %v521 = vunpack.c.l.bf16 %v489
      %v522 = vunpack.c.l.bf16 %v490
      %v523 = vunpack.c.l.bf16 %v491
      %v524 = vunpack.c.l.bf16 %v492
      %v525 = vunpack.c.l.bf16 %v493
      %v526 = vunpack.c.l.bf16 %v494
      %v527 = vunpack.c.l.bf16 %v495
      %v528 = vunpack.c.l.bf16 %v496
      %v529 = vunpack.c.l.bf16 %v497
      %v530 = vunpack.c.l.bf16 %v498
      %v531 = vunpack.c.l.bf16 %v499
      %v532 = vunpack.c.l.bf16 %v500
      %v533 = vunpack.c.l.bf16 %v501
      %v534 = vunpack.c.l.bf16 %v502
      %v535 = vunpack.c.l.bf16 %v503
      %v536 = vunpack.c.l.bf16 %v504
      %v537 = vunpack.c.l.bf16 %v505
      %v538 = vunpack.c.l.bf16 %v506
      %v539 = vunpack.c.l.bf16 %v507
      %v540 = vunpack.c.l.bf16 %v508
      %v541 = vunpack.c.l.bf16 %v509
      %v542 = vunpack.c.l.bf16 %v510
      %v543 = vunpack.c.l.bf16 %v511
      %v544 = vunpack.c.l.bf16 %v512
      %v545 = vunpack.c.l.bf16 %v513
      %v546 = vunpack.c.l.bf16 %v514
      %v547 = vunpack.c.l.bf16 %v515
      %v548 = vunpack.c.l.bf16 %v516
      %v549 = vunpack.c.l.bf16 %v517
      %v550 = vunpack.c.l.bf16 %v518
      %v551 = vunpack.c.l.bf16 %v519
      %v552 = vunpack.c.l.bf16 %v520
      %v553 = vmax.f32 %v457, 0.0
      %v554 = vmax.f32 %v458, 0.0
      %v555 = vmax.f32 %v459, 0.0
      %v556 = vmax.f32 %v460, 0.0
      %v557 = vmax.f32 %v461, 0.0
      %v558 = vmax.f32 %v462, 0.0
      %v559 = vmax.f32 %v463, 0.0
      %v560 = vmax.f32 %v464, 0.0
      %v561 = vmax.f32 %v465, 0.0
      %v562 = vmax.f32 %v466, 0.0
      %v563 = vmax.f32 %v467, 0.0
      %v564 = vmax.f32 %v468, 0.0
      %v565 = vmax.f32 %v469, 0.0
      %v566 = vmax.f32 %v470, 0.0
      %v567 = vmax.f32 %v471, 0.0
      %v568 = vmax.f32 %v472, 0.0
      %v569 = vmax.f32 %v473, 0.0
      %v570 = vmax.f32 %v474, 0.0
      %v571 = vmax.f32 %v475, 0.0
      %v572 = vmax.f32 %v476, 0.0
      %v573 = vmax.f32 %v477, 0.0
      %v574 = vmax.f32 %v478, 0.0
      %v575 = vmax.f32 %v479, 0.0
      %v576 = vmax.f32 %v480, 0.0
      %v577 = vmax.f32 %v481, 0.0
      %v578 = vmax.f32 %v482, 0.0
      %v579 = vmax.f32 %v483, 0.0
      %v580 = vmax.f32 %v484, 0.0
      %v581 = vmax.f32 %v485, 0.0
      %v582 = vmax.f32 %v486, 0.0
      %v583 = vmax.f32 %v487, 0.0
      %v584 = vmax.f32 %v488, 0.0
      %v585 = vadd.f32 %v521, %v553
      %v586 = vadd.f32 %v522, %v554
      %v587 = vadd.f32 %v523, %v555
      %v588 = vadd.f32 %v524, %v556
      %v589 = vadd.f32 %v525, %v557
      %v590 = vadd.f32 %v526, %v558
      %v591 = vadd.f32 %v527, %v559
      %v592 = vadd.f32 %v528, %v560
      %v593 = vadd.f32 %v529, %v561
      %v594 = vadd.f32 %v530, %v562
      %v595 = vadd.f32 %v531, %v563
      %v596 = vadd.f32 %v532, %v564
      %v597 = vadd.f32 %v533, %v565
      %v598 = vadd.f32 %v534, %v566
      %v599 = vadd.f32 %v535, %v567
      %v600 = vadd.f32 %v536, %v568
      %v601 = vadd.f32 %v537, %v569
      %v602 = vadd.f32 %v538, %v570
      %v603 = vadd.f32 %v539, %v571
      %v604 = vadd.f32 %v540, %v572
      %v605 = vadd.f32 %v541, %v573
      %v606 = vadd.f32 %v542, %v574
      %v607 = vadd.f32 %v543, %v575
      %v608 = vadd.f32 %v544, %v576
      %v609 = vadd.f32 %v545, %v577
      %v610 = vadd.f32 %v546, %v578
      %v611 = vadd.f32 %v547, %v579
      %v612 = vadd.f32 %v548, %v580
      %v613 = vadd.f32 %v549, %v581
      %v614 = vadd.f32 %v550, %v582
      %v615 = vadd.f32 %v551, %v583
      %v616 = vadd.f32 %v552, %v584
      %617 = vst [vmem:[%s272] sm:$0xff] %v585
      %618 = vst [vmem:[%s272 + $0x8] sm:$0xff] %v586
      %619 = vst [vmem:[%s272 + $0x10] sm:$0xff] %v587
      %620 = vst [vmem:[%s272 + $0x18] sm:$0xff] %v588
      %621 = vst [vmem:[%s272 + $0x20] sm:$0xff] %v589
      %622 = vst [vmem:[%s272 + $0x28] sm:$0xff] %v590
      %623 = vst [vmem:[%s272 + $0x30] sm:$0xff] %v591
      %624 = vst [vmem:[%s272 + $0x38] sm:$0xff] %v592
      %625 = vst [vmem:[%s272 + $0x40] sm:$0xff] %v593
      %626 = vst [vmem:[%s272 + $0x48] sm:$0xff] %v594
      %627 = vst [vmem:[%s272 + $0x50] sm:$0xff] %v595
      %628 = vst [vmem:[%s272 + $0x58] sm:$0xff] %v596
      %629 = vst [vmem:[%s272 + $0x60] sm:$0xff] %v597
      %630 = vst [vmem:[%s272 + $0x68] sm:$0xff] %v598
      %631 = vst [vmem:[%s272 + $0x70] sm:$0xff] %v599
      %632 = vst [vmem:[%s272 + $0x78] sm:$0xff] %v600
      %633 = vst [vmem:[%s272 + $0x80] sm:$0xff] %v601
      %634 = vst [vmem:[%s272 + $0x88] sm:$0xff] %v602
      %635 = vst [vmem:[%s272 + $0x90] sm:$0xff] %v603
      %636 = vst [vmem:[%s272 + $0x98] sm:$0xff] %v604
      %637 = vst [vmem:[%s272 + $0xa0] sm:$0xff] %v605
      %638 = vst [vmem:[%s272 + $0xa8] sm:$0xff] %v606
      %639 = vst [vmem:[%s272 + $0xb0] sm:$0xff] %v607
      %640 = vst [vmem:[%s272 + $0xb8] sm:$0xff] %v608
      %641 = vst [vmem:[%s272 + $0xc0] sm:$0xff] %v609
      %642 = vst [vmem:[%s272 + $0xc8] sm:$0xff] %v610
      %643 = vst [vmem:[%s272 + $0xd0] sm:$0xff] %v611
      %644 = vst [vmem:[%s272 + $0xd8] sm:$0xff] %v612
      %645 = vst [vmem:[%s272 + $0xe0] sm:$0xff] %v613
      %646 = vst [vmem:[%s272 + $0xe8] sm:$0xff] %v614
      %647 = vst [vmem:[%s272 + $0xf0] sm:$0xff] %v615
      %648 = vst [vmem:[%s272 + $0xf8] sm:$0xff] %v616
      %p649 = scmp.lt.s32.totalorder %s16, 1
      %s650 = scalar_select %p649, %s16, 1
      %s651 = smul.addr %s650, 32
      %s652 = smul.addr %s651, 8
      %s653 = scalar_lea.vmem %s5, %s652
      // Predicated region
      $region41: #{filmed_resblock.3} parent=39 // pred_check
        %p654 = pneg %p159
      $region42: #{filmed_resblock.3} parent=39 // pred_check_branch
        %656 = sbr.rel (%p654) target = $region44
      $region43: #{filmed_resblock.3} parent=39 // pred_region
        _
      $region44: #{filmed_resblock.3} parent=39 // pred_fallthru
        _
    $region40: #{filmed_resblock.3} parent=5 // pred_fallthru
      _
    %p657 = scmp.le.s32.totalorder 2, %s11
    // Predicated region
    $region45: #{filmed_resblock.3} parent=5 // pred_check
      %p658 = pneg %p657
    $region46: #{filmed_resblock.3} parent=5 // pred_check_branch
      %660 = sbr.rel (%p658) target = $region48
    $region47: #{filmed_resblock.3} parent=5 // pred_region
      %s661 = ssub.s32 %s11, 2
      // Predicated region
      $region49: #{filmed_resblock.3} parent=47 // pred_check
        %p662 = pneg %p165
      $region50: #{filmed_resblock.3} parent=47 // pred_check_branch
        %664 = sbr.rel (%p662) target = $region52
      $region51: #{filmed_resblock.3} parent=47 // pred_region
        %p665 = scmp.lt.s32.totalorder %s17, 1
        %s666 = scalar_select %p665, %s17, 1
        %s667 = smul.addr %s666, 32
        %s668 = smul.addr %s667, 8
        %s669 = scalar_lea.vmem %s5, %s668
      $region52: #{filmed_resblock.3} parent=47 // pred_fallthru
        _
    $region48: #{filmed_resblock.3} parent=5 // pred_fallthru
      _
  $region6: #{filmed_resblock.3} parent=0 // loop_footer
    %s15 = sadd.s32 1, %s11
  $region7: #{filmed_resblock.3} parent=0 // loop_footer_branch
    %10 = sbr.rel target = $region3
  $region8: #{filmed_resblock.3} parent=0 // loop_exit
    _

// kernel: filmed_resblock.2
$region0: #{filmed_resblock.2}
  #allocation0 [shape = 'u32[]', space=smem, size = 0x4, offset = 0x4, fixed_abs, tag = 'smem constant byte address 0x4 - core index']
  #allocation1 [shape = 'u32[144,128]{1,0:T(1,128)}', space=vmem, size = 0x12000, scoped, tag = 'internal scratch']
  #allocation2 [shape = 'f32[18,18,128]{2,1,0:T(8,128)}', space=vmem, size = 0x36000, scoped, tag = 'scratch operand']
  %s0 = inlined_call_operand.vmem [shape: bf16[2,256,128], index: 0, kind: input, shape index: {}]
  %s1 = inlined_call_operand.vmem [shape: bf16[128,128], index: 1, kind: input, shape index: {}]
  %s2 = inlined_call_operand.vmem [shape: f32[1,128], index: 2, kind: input, shape index: {}]
  %s3 = inlined_call_operand.vmem [shape: bf16[1152,128], index: 3, kind: input, shape index: {}]
  %s4 = inlined_call_operand.vmem [shape: f32[1,128], index: 4, kind: input, shape index: {}]
  %s5 = inlined_call_operand.vmem [shape: bf16[2,256,128], index: 5, kind: output, shape index: {0}]
  %s6 = inlined_call_operand.vmem [shape: bf16[2,256,128], index: 6, kind: output, shape index: {1}]
  %s7 = inlined_call_operand.vmem [shape: f32[8,128], index: 7, kind: output, shape index: {2}]
  %8 = xla_tuple %s5, %s6, %s7
  %s9 = sld [smem:[#allocation0]]
  $region77: #{filmed_resblock.2} parent=0
    _
  %s11 = ssub.s32 1, %s9
  %s12 = scalar_select 0, %s11, %s9
  loop: start=0, step=1, limit=4
  $region2: #{filmed_resblock.2} parent=0 // loop_pre_header
    _
  $region3: #{filmed_resblock.2} parent=0 // loop_header
    %s14 = sphi 0, %s18
    %p15 = scmp.ge.s32.totalorder %s14, 4
    %s24 = sphi 0, %s26
    %s27 = sphi 0, %s24
    %s28 = sphi 0, %s27
    %s44 = sphi 0, %s28
    %s48 = sphi 0, %s48
    %s50 = sphi 0, %s48
    %s51 = sphi 0, %s50
    %s65 = sphi 0, %s51
    %s69 = sphi 0, %s69
    %s71 = sphi 0, %s69
    %s72 = sphi 0, %s71
    %s86 = sphi 0, %s72
    %s90 = sphi 0, %s90
    %s92 = sphi 0, %s90
    %s93 = sphi 0, %s92
    %s107 = sphi 0, %s93
    %s111 = sphi 0, %s111
    %s113 = sphi 0, %s111
    %s114 = sphi 0, %s113
    %s128 = sphi 0, %s114
    %s134 = sphi 0, %s136
    %s137 = sphi 0, %s134
    %s138 = sphi 0, %s137
    %s154 = sphi 0, %s138
    %s160 = sphi 0, %s162
    %s163 = sphi 0, %s160
    %s164 = sphi 0, %s163
    %s180 = sphi 0, %s164
    %s184 = sphi 0, %s184
    %s186 = sphi 0, %s184
    %s187 = sphi 0, %s186
    %s201 = sphi 0, %s187
  $region4: #{filmed_resblock.2} parent=0 // loop_header_branch
    %17 = sbr.rel (%p15) target = $region8
  $region5: #{filmed_resblock.2} parent=0 // loop_body
    %s19 = ssub.s32 %s14, 1
    %s20 = ssub.s32 %s14, 2
    %s21 = sadd.s32 %s14, 1
    %s22 = ssub.s32 %s14, %s21
    %p23 = scmp.eq.s32.totalorder %s22, 0
    %s25 = sadd.s32 %s24, 1
    %s26 = scalar_select %p23, %s24, %s25
    %p29 = pneg %p23
    %p30 = scmp.eq.s32.totalorder %s14, 1
    %p31 = por %p29, %p30
    %p32 = scmp.ne.s32.totalorder %s24, %s27
    %p33 = scmp.eq.s32.totalorder %s14, 0
    %p34 = por %p32, %p33
    %p35 = scmp.ne.s32.totalorder %s24, %s27
    %p36 = scmp.eq.s32.totalorder %s19, 1
    %p37 = por %p35, %p36
    %p38 = scmp.ne.s32.totalorder %s27, %s28
    %p39 = scmp.eq.s32.totalorder %s19, 0
    %p40 = por %p38, %p39
    %p41 = scmp.ne.s32.totalorder %s27, %s28
    %p42 = scmp.eq.s32.totalorder %s20, 1
    %p43 = por %p41, %p42
    %p45 = scmp.ne.s32.totalorder %s28, %s44
    %p46 = scmp.eq.s32.totalorder %s20, 0
    %p47 = por %p45, %p46
    %s49 = sadd.s32 %s48, 1
    %p52 = scmp.eq.s32.totalorder %s14, 1
    %p53 = scmp.ne.s32.totalorder %s48, %s50
    %p54 = scmp.eq.s32.totalorder %s14, 0
    %p55 = por %p53, %p54
    %p56 = scmp.ne.s32.totalorder %s48, %s50
    %p57 = scmp.eq.s32.totalorder %s19, 1
    %p58 = por %p56, %p57
    %p59 = scmp.ne.s32.totalorder %s50, %s51
    %p60 = scmp.eq.s32.totalorder %s19, 0
    %p61 = por %p59, %p60
    %p62 = scmp.ne.s32.totalorder %s50, %s51
    %p63 = scmp.eq.s32.totalorder %s20, 1
    %p64 = por %p62, %p63
    %p66 = scmp.ne.s32.totalorder %s51, %s65
    %p67 = scmp.eq.s32.totalorder %s20, 0
    %p68 = por %p66, %p67
    %s70 = sadd.s32 %s69, 1
    %p73 = scmp.eq.s32.totalorder %s14, 1
    %p74 = scmp.ne.s32.totalorder %s69, %s71
    %p75 = scmp.eq.s32.totalorder %s14, 0
    %p76 = por %p74, %p75
    %p77 = scmp.ne.s32.totalorder %s69, %s71
    %p78 = scmp.eq.s32.totalorder %s19, 1
    %p79 = por %p77, %p78
    %p80 = scmp.ne.s32.totalorder %s71, %s72
    %p81 = scmp.eq.s32.totalorder %s19, 0
    %p82 = por %p80, %p81
    %p83 = scmp.ne.s32.totalorder %s71, %s72
    %p84 = scmp.eq.s32.totalorder %s20, 1
    %p85 = por %p83, %p84
    %p87 = scmp.ne.s32.totalorder %s72, %s86
    %p88 = scmp.eq.s32.totalorder %s20, 0
    %p89 = por %p87, %p88
    %s91 = sadd.s32 %s90, 1
    %p94 = scmp.eq.s32.totalorder %s14, 1
    %p95 = scmp.ne.s32.totalorder %s90, %s92
    %p96 = scmp.eq.s32.totalorder %s14, 0
    %p97 = por %p95, %p96
    %p98 = scmp.ne.s32.totalorder %s90, %s92
    %p99 = scmp.eq.s32.totalorder %s19, 1
    %p100 = por %p98, %p99
    %p101 = scmp.ne.s32.totalorder %s92, %s93
    %p102 = scmp.eq.s32.totalorder %s19, 0
    %p103 = por %p101, %p102
    %p104 = scmp.ne.s32.totalorder %s92, %s93
    %p105 = scmp.eq.s32.totalorder %s20, 1
    %p106 = por %p104, %p105
    %p108 = scmp.ne.s32.totalorder %s93, %s107
    %p109 = scmp.eq.s32.totalorder %s20, 0
    %p110 = por %p108, %p109
    %s112 = sadd.s32 %s111, 1
    %p115 = scmp.eq.s32.totalorder %s14, 1
    %p116 = scmp.ne.s32.totalorder %s111, %s113
    %p117 = scmp.eq.s32.totalorder %s14, 0
    %p118 = por %p116, %p117
    %p119 = scmp.ne.s32.totalorder %s111, %s113
    %p120 = scmp.eq.s32.totalorder %s19, 1
    %p121 = por %p119, %p120
    %p122 = scmp.ne.s32.totalorder %s113, %s114
    %p123 = scmp.eq.s32.totalorder %s19, 0
    %p124 = por %p122, %p123
    %p125 = scmp.ne.s32.totalorder %s113, %s114
    %p126 = scmp.eq.s32.totalorder %s20, 1
    %p127 = por %p125, %p126
    %p129 = scmp.ne.s32.totalorder %s114, %s128
    %p130 = scmp.eq.s32.totalorder %s20, 0
    %p131 = por %p129, %p130
    %s132 = ssub.s32 %s14, %s21
    %p133 = scmp.eq.s32.totalorder %s132, 0
    %s135 = sadd.s32 %s134, 1
    %s136 = scalar_select %p133, %s134, %s135
    %p139 = pneg %p133
    %p140 = scmp.eq.s32.totalorder %s14, 1
    %p141 = por %p139, %p140
    %p142 = scmp.ne.s32.totalorder %s134, %s137
    %p143 = scmp.eq.s32.totalorder %s14, 0
    %p144 = por %p142, %p143
    %p145 = scmp.ne.s32.totalorder %s134, %s137
    %p146 = scmp.eq.s32.totalorder %s19, 1
    %p147 = por %p145, %p146
    %p148 = scmp.ne.s32.totalorder %s137, %s138
    %p149 = scmp.eq.s32.totalorder %s19, 0
    %p150 = por %p148, %p149
    %p151 = scmp.ne.s32.totalorder %s137, %s138
    %p152 = scmp.eq.s32.totalorder %s20, 1
    %p153 = por %p151, %p152
    %p155 = scmp.ne.s32.totalorder %s138, %s154
    %p156 = scmp.eq.s32.totalorder %s20, 0
    %p157 = por %p155, %p156
    %s158 = ssub.s32 %s14, %s21
    %p159 = scmp.eq.s32.totalorder %s158, 0
    %s161 = sadd.s32 %s160, 1
    %s162 = scalar_select %p159, %s160, %s161
    %p165 = pneg %p159
    %p166 = scmp.eq.s32.totalorder %s14, 1
    %p167 = por %p165, %p166
    %p168 = scmp.ne.s32.totalorder %s160, %s163
    %p169 = scmp.eq.s32.totalorder %s14, 0
    %p170 = por %p168, %p169
    %p171 = scmp.ne.s32.totalorder %s160, %s163
    %p172 = scmp.eq.s32.totalorder %s19, 1
    %p173 = por %p171, %p172
    %p174 = scmp.ne.s32.totalorder %s163, %s164
    %p175 = scmp.eq.s32.totalorder %s19, 0
    %p176 = por %p174, %p175
    %p177 = scmp.ne.s32.totalorder %s163, %s164
    %p178 = scmp.eq.s32.totalorder %s20, 1
    %p179 = por %p177, %p178
    %p181 = scmp.ne.s32.totalorder %s164, %s180
    %p182 = scmp.eq.s32.totalorder %s20, 0
    %p183 = por %p181, %p182
    %s185 = sadd.s32 %s184, 1
    %p188 = scmp.eq.s32.totalorder %s14, 1
    %p189 = scmp.ne.s32.totalorder %s184, %s186
    %p190 = scmp.eq.s32.totalorder %s14, 0
    %p191 = por %p189, %p190
    %p192 = scmp.ne.s32.totalorder %s184, %s186
    %p193 = scmp.eq.s32.totalorder %s19, 1
    %p194 = por %p192, %p193
    %p195 = scmp.ne.s32.totalorder %s186, %s187
    %p196 = scmp.eq.s32.totalorder %s19, 0
    %p197 = por %p195, %p196
    %p198 = scmp.ne.s32.totalorder %s186, %s187
    %p199 = scmp.eq.s32.totalorder %s20, 1
    %p200 = por %p198, %p199
    %p202 = scmp.ne.s32.totalorder %s187, %s201
    %p203 = scmp.eq.s32.totalorder %s20, 0
    %p204 = por %p202, %p203
    %p205 = scmp.le.s32.totalorder 1, %s14
    %p206 = scmp.lt.s32.totalorder %s14, 3
    %p207 = pnand %p205, %p206
    %p208 = pneg %p207
    // Predicated region
    $region9: #{filmed_resblock.2} parent=5 // pred_check
      _
    $region10: #{filmed_resblock.2} parent=5 // pred_check_branch
      %210 = sbr.rel (%p207) target = $region12
    $region11: #{filmed_resblock.2} parent=5 // pred_region
      %s211 = ssub.s32 %s14, 1
      // Predicated region
      $region13: #{filmed_resblock.2} parent=11 // pred_check
        %p212 = pneg %p61
      $region14: #{filmed_resblock.2} parent=11 // pred_check_branch
        %214 = sbr.rel (%p212) target = $region16
      $region15: #{filmed_resblock.2} parent=11 // pred_region
        _
      $region16: #{filmed_resblock.2} parent=11 // pred_fallthru
        _
      // Predicated region
      $region17: #{filmed_resblock.2} parent=11 // pred_check
        %p215 = pneg %p82
      $region18: #{filmed_resblock.2} parent=11 // pred_check_branch
        %217 = sbr.rel (%p215) target = $region20
      $region19: #{filmed_resblock.2} parent=11 // pred_region
        _
      $region20: #{filmed_resblock.2} parent=11 // pred_fallthru
        _
      // Predicated region
      $region21: #{filmed_resblock.2} parent=11 // pred_check
        %p218 = pneg %p103
      $region22: #{filmed_resblock.2} parent=11 // pred_check_branch
        %220 = sbr.rel (%p218) target = $region24
      $region23: #{filmed_resblock.2} parent=11 // pred_region
        _
      $region24: #{filmed_resblock.2} parent=11 // pred_fallthru
        _
      // Predicated region
      $region25: #{filmed_resblock.2} parent=11 // pred_check
        %p221 = pneg %p124
      $region26: #{filmed_resblock.2} parent=11 // pred_check_branch
        %223 = sbr.rel (%p221) target = $region28
      $region27: #{filmed_resblock.2} parent=11 // pred_region
        _
      $region28: #{filmed_resblock.2} parent=11 // pred_fallthru
        _
    $region12: #{filmed_resblock.2} parent=5 // pred_fallthru
      _
    %p224 = scmp.lt.s32.totalorder %s14, 2
    // Predicated region
    $region29: #{filmed_resblock.2} parent=5 // pred_check
      %p225 = pneg %p224
    $region30: #{filmed_resblock.2} parent=5 // pred_check_branch
      %227 = sbr.rel (%p225) target = $region32
    $region31: #{filmed_resblock.2} parent=5 // pred_region
      // Predicated region
      $region33: #{filmed_resblock.2} parent=31 // pred_check
        %p228 = pneg %p34
      $region34: #{filmed_resblock.2} parent=31 // pred_check_branch
        %230 = sbr.rel (%p228) target = $region36
      $region35: #{filmed_resblock.2} parent=31 // pred_region
        %p231 = scmp.lt.s32.totalorder %s14, 1
        %s232 = scalar_select %p231, %s14, 1
        %s233 = smul.addr %s232, 32
        %s234 = smul.addr %s233, 4
        %s235 = scalar_lea.vmem %s0, %s234
      $region36: #{filmed_resblock.2} parent=31 // pred_fallthru
        _
    $region32: #{filmed_resblock.2} parent=5 // pred_fallthru
      _
    %p236 = scmp.le.s32.totalorder 1, %s14
    %p237 = scmp.lt.s32.totalorder %s14, 3
    %p238 = pnand %p236, %p237
    %p239 = pneg %p238
    // Predicated region
    $region37: #{filmed_resblock.2} parent=5 // pred_check
      _
    $region38: #{filmed_resblock.2} parent=5 // pred_check_branch
      %241 = sbr.rel (%p238) target = $region40
    $region39: #{filmed_resblock.2} parent=5 // pred_region
      %s242 = ssub.s32 %s14, 1
      %p243 = scmp.lt.s32.totalorder %s19, 1
      %s244 = scalar_select %p243, %s19, 1
      %s245 = smul.addr %s244, 32
      %s246 = smul.addr %s245, 4
      %s247 = scalar_lea.vmem %s0, %s246
      %p248 = pneg %p40
      %p249 = pneg %p37
      %p250 = pneg %p61
      %p251 = pneg %p58
      %p252 = pneg %p82
      %p253 = pneg %p79
      %p254 = pneg %p103
      %p255 = pneg %p100
      %p256 = pneg %p124
      %p257 = pneg %p121
      %p258 = pneg %p150
      %p259 = pneg %p147
      %p260 = scmp.lt.s32.totalorder %s19, 1
      %s261 = scalar_select %p260, %s19, 1
      %s262 = smul.addr %s261, 32
      %s263 = smul.addr %s262, 4
      %s264 = scalar_lea.vmem %s5, %s263
      %p265 = pneg %p176
      %p266 = pneg %p173
      %p267 = scmp.lt.s32.totalorder %s19, 1
      %s268 = scalar_select %p267, %s19, 1
      %s269 = smul.addr %s268, 32
      %s270 = smul.addr %s269, 4
      %s271 = scalar_lea.vmem %s6, %s270
      %p272 = pneg %p197
      %p273 = pneg %p194
      %p274 = scmp.lt.s32.totalorder %s19, 1
      %s275 = scalar_select %p274, %s19, 1
      %s276 = smul.addr %s275, 32
      %s277 = smul.addr %s276, 4
      %s278 = scalar_lea.vmem %s0, %s277
      %p279 = scmp.lt.s32.totalorder %s19, 1
      %s280 = scalar_select %p279, %s19, 1
      %s281 = smul.addr %s280, 32
      %s282 = smul.addr %s281, 4
      %s283 = scalar_lea.vmem %s5, %s282
      %p284 = scmp.lt.s32.totalorder %s19, 1
      %s285 = scalar_select %p284, %s19, 1
      %s286 = smul.addr %s285, 32
      %s287 = smul.addr %s286, 4
      %s288 = scalar_lea.vmem %s6, %s287
      %p290 = scmp.eq.s32.totalorder %s19, 0
      // Predicated region
      $region41: #{filmed_resblock.2} parent=39 // pred_check
        %p291 = pneg %p290
      $region42: #{filmed_resblock.2} parent=39 // pred_check_branch
        %293 = sbr.rel (%p291) target = $region44
      $region43: #{filmed_resblock.2} parent=39 // pred_region
        %294 = vst [vmem:[%s7] sm:$0xff] 0.0
        %295 = vst [vmem:[#allocation2] sm:$0xff] 0.0
        %296 = vst [vmem:[#allocation2 + $0x8] sm:$0xff] 0.0
        %297 = vst [vmem:[#allocation2 + $0x10] sm:$0x3] 0.0
        %298 = vst [vmem:[#allocation2 + $0x18] sm:$0xff] 0.0
        %299 = vst [vmem:[#allocation2 + $0x20] sm:$0xff] 0.0
        %300 = vst [vmem:[#allocation2 + $0x28] sm:$0x3] 0.0
        %301 = vst [vmem:[#allocation2 + $0x30] sm:$0xff] 0.0
        %302 = vst [vmem:[#allocation2 + $0x38] sm:$0xff] 0.0
        %303 = vst [vmem:[#allocation2 + $0x40] sm:$0x3] 0.0
        %304 = vst [vmem:[#allocation2 + $0x48] sm:$0xff] 0.0
        %305 = vst [vmem:[#allocation2 + $0x50] sm:$0xff] 0.0
        %306 = vst [vmem:[#allocation2 + $0x58] sm:$0x3] 0.0
        %307 = vst [vmem:[#allocation2 + $0x60] sm:$0xff] 0.0
        %308 = vst [vmem:[#allocation2 + $0x68] sm:$0xff] 0.0
        %309 = vst [vmem:[#allocation2 + $0x70] sm:$0x3] 0.0
        %310 = vst [vmem:[#allocation2 + $0x78] sm:$0xff] 0.0
        %311 = vst [vmem:[#allocation2 + $0x80] sm:$0xff] 0.0
        %312 = vst [vmem:[#allocation2 + $0x88] sm:$0x3] 0.0
        %313 = vst [vmem:[#allocation2 + $0x90] sm:$0xff] 0.0
        %314 = vst [vmem:[#allocation2 + $0x98] sm:$0xff] 0.0
        %315 = vst [vmem:[#allocation2 + $0xa0] sm:$0x3] 0.0
        %316 = vst [vmem:[#allocation2 + $0xa8] sm:$0xff] 0.0
        %317 = vst [vmem:[#allocation2 + $0xb0] sm:$0xff] 0.0
        %318 = vst [vmem:[#allocation2 + $0xb8] sm:$0x3] 0.0
        %319 = vst [vmem:[#allocation2 + $0xc0] sm:$0xff] 0.0
        %320 = vst [vmem:[#allocation2 + $0xc8] sm:$0xff] 0.0
        %321 = vst [vmem:[#allocation2 + $0xd0] sm:$0x3] 0.0
        %322 = vst [vmem:[#allocation2 + $0xd8] sm:$0xff] 0.0
        %323 = vst [vmem:[#allocation2 + $0xe0] sm:$0xff] 0.0
        %324 = vst [vmem:[#allocation2 + $0xe8] sm:$0x3] 0.0
        %325 = vst [vmem:[#allocation2 + $0xf0] sm:$0xff] 0.0
        %326 = vst [vmem:[#allocation2 + $0xf8] sm:$0xff] 0.0
        %327 = vst [vmem:[#allocation2 + $0x100] sm:$0x3] 0.0
        %328 = vst [vmem:[#allocation2 + $0x108] sm:$0xff] 0.0
        %329 = vst [vmem:[#allocation2 + $0x110] sm:$0xff] 0.0
        %330 = vst [vmem:[#allocation2 + $0x118] sm:$0x3] 0.0
        %331 = vst [vmem:[#allocation2 + $0x120] sm:$0xff] 0.0
        %332 = vst [vmem:[#allocation2 + $0x128] sm:$0xff] 0.0
        %333 = vst [vmem:[#allocation2 + $0x130] sm:$0x3] 0.0
        %334 = vst [vmem:[#allocation2 + $0x138] sm:$0xff] 0.0
        %335 = vst [vmem:[#allocation2 + $0x140] sm:$0xff] 0.0
        %336 = vst [vmem:[#allocation2 + $0x148] sm:$0x3] 0.0
        %337 = vst [vmem:[#allocation2 + $0x150] sm:$0xff] 0.0
        %338 = vst [vmem:[#allocation2 + $0x158] sm:$0xff] 0.0
        %339 = vst [vmem:[#allocation2 + $0x160] sm:$0x3] 0.0
        %340 = vst [vmem:[#allocation2 + $0x168] sm:$0xff] 0.0
        %341 = vst [vmem:[#allocation2 + $0x170] sm:$0xff] 0.0
        %342 = vst [vmem:[#allocation2 + $0x178] sm:$0x3] 0.0
        %343 = vst [vmem:[#allocation2 + $0x180] sm:$0xff] 0.0
        %344 = vst [vmem:[#allocation2 + $0x188] sm:$0xff] 0.0
        %345 = vst [vmem:[#allocation2 + $0x190] sm:$0x3] 0.0
        %346 = vst [vmem:[#allocation2 + $0x198] sm:$0xff] 0.0
        %347 = vst [vmem:[#allocation2 + $0x1a0] sm:$0xff] 0.0
        %348 = vst [vmem:[#allocation2 + $0x1a8] sm:$0x3] 0.0
      $region44: #{filmed_resblock.2} parent=39 // pred_fallthru
        _
      %v349 = vld [vmem:[%s278] sm:$0xf]
      %v350 = vld [vmem:[%s278 + $0x4] sm:$0xf]
      %v351 = vld [vmem:[%s278 + $0x8] sm:$0xf]
      %v352 = vld [vmem:[%s278 + $0xc] sm:$0xf]
      %v353 = vld [vmem:[%s278 + $0x10] sm:$0xf]
      %v354 = vld [vmem:[%s278 + $0x14] sm:$0xf]
      %v355 = vld [vmem:[%s278 + $0x18] sm:$0xf]
      %v356 = vld [vmem:[%s278 + $0x1c] sm:$0xf]
      %v357 = vld [vmem:[%s278 + $0x20] sm:$0xf]
      %v358 = vld [vmem:[%s278 + $0x24] sm:$0xf]
      %v359 = vld [vmem:[%s278 + $0x28] sm:$0xf]
      %v360 = vld [vmem:[%s278 + $0x2c] sm:$0xf]
      %v361 = vld [vmem:[%s278 + $0x30] sm:$0xf]
      %v362 = vld [vmem:[%s278 + $0x34] sm:$0xf]
      %v363 = vld [vmem:[%s278 + $0x38] sm:$0xf]
      %v364 = vld [vmem:[%s278 + $0x3c] sm:$0xf]
      %v365 = vld [vmem:[%s278 + $0x40] sm:$0xf]
      %v366 = vld [vmem:[%s278 + $0x44] sm:$0xf]
      %v367 = vld [vmem:[%s278 + $0x48] sm:$0xf]
      %v368 = vld [vmem:[%s278 + $0x4c] sm:$0xf]
      %v369 = vld [vmem:[%s278 + $0x50] sm:$0xf]
      %v370 = vld [vmem:[%s278 + $0x54] sm:$0xf]
      %v371 = vld [vmem:[%s278 + $0x58] sm:$0xf]
      %v372 = vld [vmem:[%s278 + $0x5c] sm:$0xf]
      %v373 = vld [vmem:[%s278 + $0x60] sm:$0xf]
      %v374 = vld [vmem:[%s278 + $0x64] sm:$0xf]
      %v375 = vld [vmem:[%s278 + $0x68] sm:$0xf]
      %v376 = vld [vmem:[%s278 + $0x6c] sm:$0xf]
      %v377 = vld [vmem:[%s278 + $0x70] sm:$0xf]
      %v378 = vld [vmem:[%s278 + $0x74] sm:$0xf]
      %v379 = vld [vmem:[%s278 + $0x78] sm:$0xf]
      %v380 = vld [vmem:[%s278 + $0x7c] sm:$0xf]
      %v381 = vld [vmem:[%s1] sm:$0xf]
      %v382 = vld [vmem:[%s1 + $0x4] sm:$0xf]
      %v383 = vld [vmem:[%s1 + $0x8] sm:$0xf]
      %v384 = vld [vmem:[%s1 + $0xc] sm:$0xf]
      %v385 = vld [vmem:[%s1 + $0x10] sm:$0xf]
      %v386 = vld [vmem:[%s1 + $0x14] sm:$0xf]
      %v387 = vld [vmem:[%s1 + $0x18] sm:$0xf]
      %v388 = vld [vmem:[%s1 + $0x1c] sm:$0xf]
      %v389 = vld [vmem:[%s1 + $0x20] sm:$0xf]
      %v390 = vld [vmem:[%s1 + $0x24] sm:$0xf]
      %v391 = vld [vmem:[%s1 + $0x28] sm:$0xf]
      %v392 = vld [vmem:[%s1 + $0x2c] sm:$0xf]
      %v393 = vld [vmem:[%s1 + $0x30] sm:$0xf]
      %v394 = vld [vmem:[%s1 + $0x34] sm:$0xf]
      %v395 = vld [vmem:[%s1 + $0x38] sm:$0xf]
      %v396 = vld [vmem:[%s1 + $0x3c] sm:$0xf]
      %v397 = vld [vmem:[%s2] sm:$0x1]
      %v399 = vlaneseq
      %v400 = vshrl.u32 %v399, 7
      %v401 = vsub.s32 0, %v400
      %v402 = vrot.slane %v397, %v401
      %v436 = vunpack.c.l.b16 %v349
      %v437 = vunpack.c.l.b16 %v350
      %v438 = vunpack.c.l.b16 %v351
      %v439 = vunpack.c.l.b16 %v352
      %v440 = vunpack.c.l.b16 %v353
      %v441 = vunpack.c.l.b16 %v354
      %v442 = vunpack.c.l.b16 %v355
      %v443 = vunpack.c.l.b16 %v356
      %v444 = vunpack.c.l.b16 %v357
      %v445 = vunpack.c.l.b16 %v358
      %v446 = vunpack.c.l.b16 %v359
      %v447 = vunpack.c.l.b16 %v360
      %v448 = vunpack.c.l.b16 %v361
      %v449 = vunpack.c.l.b16 %v362
      %v450 = vunpack.c.l.b16 %v363
      %v451 = vunpack.c.l.b16 %v364
      %v452 = vunpack.c.l.b16 %v365
      %v453 = vunpack.c.l.b16 %v366
      %v454 = vunpack.c.l.b16 %v367
      %v455 = vunpack.c.l.b16 %v368
      %v456 = vunpack.c.l.b16 %v369
      %v457 = vunpack.c.l.b16 %v370
      %v458 = vunpack.c.l.b16 %v371
      %v459 = vunpack.c.l.b16 %v372
      %v460 = vunpack.c.l.b16 %v373
      %v461 = vunpack.c.l.b16 %v374
      %v462 = vunpack.c.l.b16 %v375
      %v463 = vunpack.c.l.b16 %v376
      %v464 = vunpack.c.l.b16 %v377
      %v465 = vunpack.c.l.b16 %v378
      %v466 = vunpack.c.l.b16 %v379
      %v467 = vunpack.c.l.b16 %v380
      %v468 = vpack.c.b16 %v437, %v436
      %v469 = vpack.c.b16 %v439, %v438
      %v470 = vpack.c.b16 %v441, %v440
      %v471 = vpack.c.b16 %v443, %v442
      %v472 = vpack.c.b16 %v445, %v444
      %v473 = vpack.c.b16 %v447, %v446
      %v474 = vpack.c.b16 %v449, %v448
      %v475 = vpack.c.b16 %v451, %v450
      %v476 = vpack.c.b16 %v453, %v452
      %v477 = vpack.c.b16 %v455, %v454
      %v478 = vpack.c.b16 %v457, %v456
      %v479 = vpack.c.b16 %v459, %v458
      %v480 = vpack.c.b16 %v461, %v460
      %v481 = vpack.c.b16 %v463, %v462
      %v482 = vpack.c.b16 %v465, %v464
      %v483 = vpack.c.b16 %v467, %v466
      %v516 = vunpack.c.l.b16 %v381
      %v517 = vunpack.c.l.b16 %v382
      %v518 = vunpack.c.l.b16 %v383
      %v519 = vunpack.c.l.b16 %v384
      %v520 = vunpack.c.l.b16 %v385
      %v521 = vunpack.c.l.b16 %v386
      %v522 = vunpack.c.l.b16 %v387
      %v523 = vunpack.c.l.b16 %v388
      %v524 = vunpack.c.l.b16 %v389
      %v525 = vunpack.c.l.b16 %v390
      %v526 = vunpack.c.l.b16 %v391
      %v527 = vunpack.c.l.b16 %v392
      %v528 = vunpack.c.l.b16 %v393
      %v529 = vunpack.c.l.b16 %v394
      %v530 = vunpack.c.l.b16 %v395
      %v531 = vunpack.c.l.b16 %v396
      %v532 = vpack.c.b16 %v517, %v516
      %v533 = vpack.c.b16 %v519, %v518
      %v534 = vpack.c.b16 %v521, %v520
      %v535 = vpack.c.b16 %v523, %v522
      %v536 = vpack.c.b16 %v525, %v524
      %v537 = vpack.c.b16 %v527, %v526
      %v538 = vpack.c.b16 %v529, %v528
      %v539 = vpack.c.b16 %v531, %v530
      %548 = vmatprep.subr.bf16.mxu0 0
      %549 = vmatpush1.bf16.msra.mxu0 %v532
      %550 = vmatprep.subr.bf16.mxu0 0
      %551 = vmatpush1.bf16.msra.mxu0 %v533
      %552 = vmatprep.subr.bf16.mxu0 0
      %553 = vmatpush1.bf16.msra.mxu0 %v534
      %554 = vmatprep.subr.bf16.mxu0 0
      %555 = vmatpush1.bf16.msra.mxu0 %v535
      %556 = vmatprep.subr.bf16.mxu0 0
      %557 = vmatpush1.bf16.msra.mxu0 %v536
      %558 = vmatprep.subr.bf16.mxu0 0
      %559 = vmatpush1.bf16.msra.mxu0 %v537
      %560 = vmatprep.subr.bf16.mxu0 0
      %561 = vmatpush1.bf16.msra.mxu0 %v538
      %562 = vmatprep.subr.bf16.mxu0 0
      %563 = vmatpush1.bf16.msra.mxu0 %v539
      %564 = vmatprep.subr.bf16.mxu0 0
      %565 = vmatpush1.bf16.msra.mxu0 0
      %566 = vmatprep.subr.bf16.mxu0 0
      %567 = vmatpush1.bf16.msra.mxu0 0
      %568 = vmatprep.subr.bf16.mxu0 0
      %569 = vmatpush1.bf16.msra.mxu0 0
      %570 = vmatprep.subr.bf16.mxu0 0
      %571 = vmatpush1.bf16.msra.mxu0 0
      %572 = vmatprep.subr.bf16.mxu0 0
      %573 = vmatpush1.bf16.msra.mxu0 0
      %574 = vmatprep.subr.bf16.mxu0 0
      %575 = vmatpush1.bf16.msra.mxu0 0
      %576 = vmatprep.subr.bf16.mxu0 0
      %577 = vmatpush1.bf16.msra.mxu0 0
      %578 = vmatprep.subr.bf16.mxu0 0
      %579 = vmatpush1.bf16.msra.mxu0 0
      %580 = vmatprep.mubr.bf16.mxu0 0
      %581 = vmatmul.mubr.bf16.gmra.mrb[0].mxu0 %v468
      %v582 = vpop.f32.mrb[0].mxu0
      %v583 = vadd.f32 %v402, %v582
      %v584 = vpop.f32.mrb[0].mxu0
      %v585 = vpop.f32.mrb[0].mxu0
      %v586 = vadd.f32 %v402, %v585
      %v587 = vpop.f32.mrb[0].mxu0
      %588 = vmatprep.mubr.bf16.mxu0 0
      %589 = vmatmul.mubr.bf16.gmra.mrb[0].mxu0 %v469
      %v590 = vpop.f32.mrb[0].mxu0
      %v591 = vadd.f32 %v402, %v590
      %v592 = vpop.f32.mrb[0].mxu0
      %v593 = vpop.f32.mrb[0].mxu0
      %v594 = vadd.f32 %v402, %v593
      %v595 = vpop.f32.mrb[0].mxu0
      %596 = vmatprep.mubr.bf16.mxu0 0
      %597 = vmatmul.mubr.bf16.gmra.mrb[0].mxu0 %v470
      %v598 = vpop.f32.mrb[0].mxu0
      %v599 = vadd.f32 %v402, %v598
      %v600 = vpop.f32.mrb[0].mxu0
      %v601 = vpop.f32.mrb[0].mxu0
      %v602 = vadd.f32 %v402, %v601
      %v603 = vpop.f32.mrb[0].mxu0
      %604 = vmatprep.mubr.bf16.mxu0 0
      %605 = vmatmul.mubr.bf16.gmra.mrb[0].mxu0 %v471
      %v606 = vpop.f32.mrb[0].mxu0
      %v607 = vadd.f32 %v402, %v606
      %v608 = vpop.f32.mrb[0].mxu0
      %v609 = vpop.f32.mrb[0].mxu0
      %v610 = vadd.f32 %v402, %v609
      %v611 = vpop.f32.mrb[0].mxu0
      %612 = vmatprep.mubr.bf16.mxu0 0
      %613 = vmatmul.mubr.bf16.gmra.mrb[0].mxu0 %v472
      %v614 = vpop.f32.mrb[0].mxu0
      %v615 = vadd.f32 %v402, %v614
      %v616 = vpop.f32.mrb[0].mxu0
      %v617 = vpop.f32.mrb[0].mxu0
      %v618 = vadd.f32 %v402, %v617
      %v619 = vpop.f32.mrb[0].mxu0
      %620 = vmatprep.mubr.bf16.mxu0 0
      %621 = vmatmul.mubr.bf16.gmra.mrb[0].mxu0 %v473
      %v622 = vpop.f32.mrb[0].mxu0
      %v623 = vadd.f32 %v402, %v622
      %v624 = vpop.f32.mrb[0].mxu0
      %v625 = vpop.f32.mrb[0].mxu0
      %v626 = vadd.f32 %v402, %v625
      %v627 = vpop.f32.mrb[0].mxu0
      %628 = vmatprep.mubr.bf16.mxu0 0
      %629 = vmatmul.mubr.bf16.gmra.mrb[0].mxu0 %v474
      %v630 = vpop.f32.mrb[0].mxu0
      %v631 = vadd.f32 %v402, %v630
      %v632 = vpop.f32.mrb[0].mxu0
      %v633 = vpop.f32.mrb[0].mxu0
      %v634 = vadd.f32 %v402, %v633
      %v635 = vpop.f32.mrb[0].mxu0
      %636 = vmatprep.mubr.bf16.mxu0 0
      %637 = vmatmul.mubr.bf16.gmra.mrb[0].mxu0 %v475
      %v638 = vpop.f32.mrb[0].mxu0
      %v639 = vadd.f32 %v402, %v638
      %v640 = vpop.f32.mrb[0].mxu0
      %v641 = vpop.f32.mrb[0].mxu0
      %v642 = vadd.f32 %v402, %v641
      %v643 = vpop.f32.mrb[0].mxu0
      %644 = vmatprep.mubr.bf16.mxu0 0
      %645 = vmatmul.mubr.bf16.gmra.mrb[0].mxu0 %v476
      %v646 = vpop.f32.mrb[0].mxu0
      %v647 = vadd.f32 %v402, %v646
      %v648 = vpop.f32.mrb[0].mxu0
      %v649 = vpop.f32.mrb[0].mxu0
      %v650 = vadd.f32 %v402, %v649
      %v651 = vpop.f32.mrb[0].mxu0
      %652 = vmatprep.mubr.bf16.mxu0 0
      %653 = vmatmul.mubr.bf16.gmra.mrb[0].mxu0 %v477
      %v654 = vpop.f32.mrb[0].mxu0
      %v655 = vadd.f32 %v402, %v654
      %v656 = vpop.f32.mrb[0].mxu0
      %v657 = vpop.f32.mrb[0].mxu0
      %v658 = vadd.f32 %v402, %v657
      %v659 = vpop.f32.mrb[0].mxu0
      %660 = vmatprep.mubr.bf16.mxu0 0
      %661 = vmatmul.mubr.bf16.gmra.mrb[0].mxu0 %v478
      %v662 = vpop.f32.mrb[0].mxu0
      %v663 = vadd.f32 %v402, %v662
      %v664 = vpop.f32.mrb[0].mxu0
      %v665 = vpop.f32.mrb[0].mxu0
      %v666 = vadd.f32 %v402, %v665
      %v667 = vpop.f32.mrb[0].mxu0
      %668 = vmatprep.mubr.bf16.mxu0 0
      %669 = vmatmul.mubr.bf16.gmra.mrb[0].mxu0 %v479
      %v670 = vpop.f32.mrb[0].mxu0
      %v671 = vadd.f32 %v402, %v670
      %v672 = vpop.f32.mrb[0].mxu0
      %v673 = vpop.f32.mrb[0].mxu0
      %v674 = vadd.f32 %v402, %v673
      %v675 = vpop.f32.mrb[0].mxu0
      %676 = vmatprep.mubr.bf16.mxu0 0
      %677 = vmatmul.mubr.bf16.gmra.mrb[0].mxu0 %v480
      %v678 = vpop.f32.mrb[0].mxu0
      %v679 = vadd.f32 %v402, %v678
      %v680 = vpop.f32.mrb[0].mxu0
      %v681 = vpop.f32.mrb[0].mxu0
      %v682 = vadd.f32 %v402, %v681
      %v683 = vpop.f32.mrb[0].mxu0
      %684 = vmatprep.mubr.bf16.mxu0 0
      %685 = vmatmul.mubr.bf16.gmra.mrb[0].mxu0 %v481
      %v686 = vpop.f32.mrb[0].mxu0
      %v687 = vadd.f32 %v402, %v686
      %v688 = vpop.f32.mrb[0].mxu0
      %v689 = vpop.f32.mrb[0].mxu0
      %v690 = vadd.f32 %v402, %v689
      %v691 = vpop.f32.mrb[0].mxu0
      %692 = vmatprep.mubr.bf16.mxu0 0
      %693 = vmatmul.mubr.bf16.gmra.mrb[0].mxu0 %v482
      %v694 = vpop.f32.mrb[0].mxu0
      %v695 = vadd.f32 %v402, %v694
      %v696 = vpop.f32.mrb[0].mxu0
      %v697 = vpop.f32.mrb[0].mxu0
      %v698 = vadd.f32 %v402, %v697
      %v699 = vpop.f32.mrb[0].mxu0
      %700 = vmatprep.mubr.bf16.mxu0 0
      %701 = vmatmul.mubr.bf16.gmra.mrb[0].mxu0 %v483
      %v702 = vpop.f32.mrb[0].mxu0
      %v703 = vadd.f32 %v402, %v702
      %v704 = vpop.f32.mrb[0].mxu0
      %v705 = vpop.f32.mrb[0].mxu0
      %v706 = vadd.f32 %v402, %v705
      %v707 = vpop.f32.mrb[0].mxu0
      %708 = vdwg.mxu0
      %v709 = vmax.f32 %v583, 0.0
      %v710 = vmax.f32 %v586, 0.0
      %v711 = vmax.f32 %v591, 0.0
      %v712 = vmax.f32 %v594, 0.0
      %v713 = vmax.f32 %v599, 0.0
      %v714 = vmax.f32 %v602, 0.0
      %v715 = vmax.f32 %v607, 0.0
      %v716 = vmax.f32 %v610, 0.0
      %v717 = vmax.f32 %v615, 0.0
      %v718 = vmax.f32 %v618, 0.0
      %v719 = vmax.f32 %v623, 0.0
      %v720 = vmax.f32 %v626, 0.0
      %v721 = vmax.f32 %v631, 0.0
      %v722 = vmax.f32 %v634, 0.0
      %v723 = vmax.f32 %v639, 0.0
      %v724 = vmax.f32 %v642, 0.0
      %v725 = vmax.f32 %v647, 0.0
      %v726 = vmax.f32 %v650, 0.0
      %v727 = vmax.f32 %v655, 0.0
      %v728 = vmax.f32 %v658, 0.0
      %v729 = vmax.f32 %v663, 0.0
      %v730 = vmax.f32 %v666, 0.0
      %v731 = vmax.f32 %v671, 0.0
      %v732 = vmax.f32 %v674, 0.0
      %v733 = vmax.f32 %v679, 0.0
      %v734 = vmax.f32 %v682, 0.0
      %v735 = vmax.f32 %v687, 0.0
      %v736 = vmax.f32 %v690, 0.0
      %v737 = vmax.f32 %v695, 0.0
      %v738 = vmax.f32 %v698, 0.0
      %v739 = vmax.f32 %v703, 0.0
      %v740 = vmax.f32 %v706, 0.0
      %v741 = vpack.c.bf16 %v710, %v709
      %v742 = vpack.c.bf16 %v712, %v711
      %v743 = vpack.c.bf16 %v714, %v713
      %v744 = vpack.c.bf16 %v716, %v715
      %v745 = vpack.c.bf16 %v718, %v717
      %v746 = vpack.c.bf16 %v720, %v719
      %v747 = vpack.c.bf16 %v722, %v721
      %v748 = vpack.c.bf16 %v724, %v723
      %v749 = vpack.c.bf16 %v726, %v725
      %v750 = vpack.c.bf16 %v728, %v727
      %v751 = vpack.c.bf16 %v730, %v729
      %v752 = vpack.c.bf16 %v732, %v731
      %v753 = vpack.c.bf16 %v734, %v733
      %v754 = vpack.c.bf16 %v736, %v735
      %v755 = vpack.c.bf16 %v738, %v737
      %v756 = vpack.c.bf16 %v740, %v739
      %v773 = vunpack.c.l.b16 %v741
      %v774 = vunpack.c.h.b16 %v741
      %v775 = vunpack.c.l.b16 %v742
      %v776 = vunpack.c.h.b16 %v742
      %v777 = vunpack.c.l.b16 %v743
      %v778 = vunpack.c.h.b16 %v743
      %v779 = vunpack.c.l.b16 %v744
      %v780 = vunpack.c.h.b16 %v744
      %v781 = vunpack.c.l.b16 %v745
      %v782 = vunpack.c.h.b16 %v745
      %v783 = vunpack.c.l.b16 %v746
      %v784 = vunpack.c.h.b16 %v746
      %v785 = vunpack.c.l.b16 %v747
      %v786 = vunpack.c.h.b16 %v747
      %v787 = vunpack.c.l.b16 %v748
      %v788 = vunpack.c.h.b16 %v748
      %v789 = vunpack.c.l.b16 %v749
      %v790 = vunpack.c.h.b16 %v749
      %v791 = vunpack.c.l.b16 %v750
      %v792 = vunpack.c.h.b16 %v750
      %v793 = vunpack.c.l.b16 %v751
      %v794 = vunpack.c.h.b16 %v751
      %v795 = vunpack.c.l.b16 %v752
      %v796 = vunpack.c.h.b16 %v752
      %v797 = vunpack.c.l.b16 %v753
      %v798 = vunpack.c.h.b16 %v753
      %v799 = vunpack.c.l.b16 %v754
      %v800 = vunpack.c.h.b16 %v754
      %v801 = vunpack.c.l.b16 %v755
      %v802 = vunpack.c.h.b16 %v755
      %v803 = vunpack.c.l.b16 %v756
      %v804 = vunpack.c.h.b16 %v756
      %v805 = vpack.c.b16 %v773, %v773
      %v806 = vpack.c.b16 %v774, %v774
      %v807 = vpack.c.b16 %v775, %v775
      %v808 = vpack.c.b16 %v776, %v776
      %v809 = vpack.c.b16 %v777, %v777
      %v810 = vpack.c.b16 %v778, %v778
      %v811 = vpack.c.b16 %v779, %v779
      %v812 = vpack.c.b16 %v780, %v780
      %v813 = vpack.c.b16 %v781, %v781
      %v814 = vpack.c.b16 %v782, %v782
      %v815 = vpack.c.b16 %v783, %v783
      %v816 = vpack.c.b16 %v784, %v784
      %v817 = vpack.c.b16 %v785, %v785
      %v818 = vpack.c.b16 %v786, %v786
      %v819 = vpack.c.b16 %v787, %v787
      %v820 = vpack.c.b16 %v788, %v788
      %v821 = vpack.c.b16 %v789, %v789
      %v822 = vpack.c.b16 %v790, %v790
      %v823 = vpack.c.b16 %v791, %v791
      %v824 = vpack.c.b16 %v792, %v792
      %v825 = vpack.c.b16 %v793, %v793
      %v826 = vpack.c.b16 %v794, %v794
      %v827 = vpack.c.b16 %v795, %v795
      %v828 = vpack.c.b16 %v796, %v796
      %v829 = vpack.c.b16 %v797, %v797
      %v830 = vpack.c.b16 %v798, %v798
      %v831 = vpack.c.b16 %v799, %v799
      %v832 = vpack.c.b16 %v800, %v800
      %v833 = vpack.c.b16 %v801, %v801
      %v834 = vpack.c.b16 %v802, %v802
      %v835 = vpack.c.b16 %v803, %v803
      %v836 = vpack.c.b16 %v804, %v804
      %869 = vst [vmem:[%s283] sm:$0xf] %v805
      %870 = vst [vmem:[%s283 + $0x4] sm:$0xf] %v806
      %871 = vst [vmem:[%s283 + $0x8] sm:$0xf] %v807
      %872 = vst [vmem:[%s283 + $0xc] sm:$0xf] %v808
      %873 = vst [vmem:[%s283 + $0x10] sm:$0xf] %v809
      %874 = vst [vmem:[%s283 + $0x14] sm:$0xf] %v810
      %875 = vst [vmem:[%s283 + $0x18] sm:$0xf] %v811
      %876 = vst [vmem:[%s283 + $0x1c] sm:$0xf] %v812
      %877 = vst [vmem:[%s283 + $0x20] sm:$0xf] %v813
      %878 = vst [vmem:[%s283 + $0x24] sm:$0xf] %v814
      %879 = vst [vmem:[%s283 + $0x28] sm:$0xf] %v815
      %880 = vst [vmem:[%s283 + $0x2c] sm:$0xf] %v816
      %881 = vst [vmem:[%s283 + $0x30] sm:$0xf] %v817
      %882 = vst [vmem:[%s283 + $0x34] sm:$0xf] %v818
      %883 = vst [vmem:[%s283 + $0x38] sm:$0xf] %v819
      %884 = vst [vmem:[%s283 + $0x3c] sm:$0xf] %v820
      %885 = vst [vmem:[%s283 + $0x40] sm:$0xf] %v821
      %886 = vst [vmem:[%s283 + $0x44] sm:$0xf] %v822
      %887 = vst [vmem:[%s283 + $0x48] sm:$0xf] %v823
      %888 = vst [vmem:[%s283 + $0x4c] sm:$0xf] %v824
      %889 = vst [vmem:[%s283 + $0x50] sm:$0xf] %v825
      %890 = vst [vmem:[%s283 + $0x54] sm:$0xf] %v826
      %891 = vst [vmem:[%s283 + $0x58] sm:$0xf] %v827
      %892 = vst [vmem:[%s283 + $0x5c] sm:$0xf] %v828
      %893 = vst [vmem:[%s283 + $0x60] sm:$0xf] %v829
      %894 = vst [vmem:[%s283 + $0x64] sm:$0xf] %v830
      %895 = vst [vmem:[%s283 + $0x68] sm:$0xf] %v831
      %896 = vst [vmem:[%s283 + $0x6c] sm:$0xf] %v832
      %897 = vst [vmem:[%s283 + $0x70] sm:$0xf] %v833
      %898 = vst [vmem:[%s283 + $0x74] sm:$0xf] %v834
      %899 = vst [vmem:[%s283 + $0x78] sm:$0xf] %v835
      %900 = vst [vmem:[%s283 + $0x7c] sm:$0xf] %v836
      %s901 = scalar_lea.vmem [#allocation2], 24
      %902 = vst [vmem:[%s901 + $0x1] sm:$0xff] %v709
      %903 = vst [vmem:[%s901 + $0x9] sm:$0xff] %v710
      %904 = vst [vmem:[%s901 + $0x19] sm:$0xff] %v711
      %905 = vst [vmem:[%s901 + $0x21] sm:$0xff] %v712
      %906 = vst [vmem:[%s901 + $0x31] sm:$0xff] %v713
      %907 = vst [vmem:[%s901 + $0x39] sm:$0xff] %v714
      %908 = vst [vmem:[%s901 + $0x49] sm:$0xff] %v715
      %909 = vst [vmem:[%s901 + $0x51] sm:$0xff] %v716
      %910 = vst [vmem:[%s901 + $0x61] sm:$0xff] %v717
      %911 = vst [vmem:[%s901 + $0x69] sm:$0xff] %v718
      %912 = vst [vmem:[%s901 + $0x79] sm:$0xff] %v719
      %913 = vst [vmem:[%s901 + $0x81] sm:$0xff] %v720
      %914 = vst [vmem:[%s901 + $0x91] sm:$0xff] %v721
      %915 = vst [vmem:[%s901 + $0x99] sm:$0xff] %v722
      %916 = vst [vmem:[%s901 + $0xa9] sm:$0xff] %v723
      %917 = vst [vmem:[%s901 + $0xb1] sm:$0xff] %v724
      %918 = vst [vmem:[%s901 + $0xc1] sm:$0xff] %v725
      %919 = vst [vmem:[%s901 + $0xc9] sm:$0xff] %v726
      %920 = vst [vmem:[%s901 + $0xd9] sm:$0xff] %v727
      %921 = vst [vmem:[%s901 + $0xe1] sm:$0xff] %v728
      %922 = vst [vmem:[%s901 + $0xf1] sm:$0xff] %v729
      %923 = vst [vmem:[%s901 + $0xf9] sm:$0xff] %v730
      %924 = vst [vmem:[%s901 + $0x109] sm:$0xff] %v731
      %925 = vst [vmem:[%s901 + $0x111] sm:$0xff] %v732
      %926 = vst [vmem:[%s901 + $0x121] sm:$0xff] %v733
      %927 = vst [vmem:[%s901 + $0x129] sm:$0xff] %v734
      %928 = vst [vmem:[%s901 + $0x139] sm:$0xff] %v735
      %929 = vst [vmem:[%s901 + $0x141] sm:$0xff] %v736
      %930 = vst [vmem:[%s901 + $0x151] sm:$0xff] %v737
      %931 = vst [vmem:[%s901 + $0x159] sm:$0xff] %v738
      %932 = vst [vmem:[%s901 + $0x169] sm:$0xff] %v739
      %933 = vst [vmem:[%s901 + $0x171] sm:$0xff] %v740
      %v934 = vld [vmem:[#allocation2] sm:$0xff]
      %v935 = vld [vmem:[#allocation2 + $0x8] sm:$0xff]
      %v936 = vld [vmem:[#allocation2 + $0x18] sm:$0xff]
      %v937 = vld [vmem:[#allocation2 + $0x20] sm:$0xff]
      %v938 = vld [vmem:[#allocation2 + $0x30] sm:$0xff]
      %v939 = vld [vmem:[#allocation2 + $0x38] sm:$0xff]
      %v940 = vld [vmem:[#allocation2 + $0x48] sm:$0xff]
      %v941 = vld [vmem:[#allocation2 + $0x50] sm:$0xff]
      %v942 = vld [vmem:[#allocation2 + $0x60] sm:$0xff]
      %v943 = vld [vmem:[#allocation2 + $0x68] sm:$0xff]
      %v944 = vld [vmem:[#allocation2 + $0x78] sm:$0xff]
      %v945 = vld [vmem:[#allocation2 + $0x80] sm:$0xff]
      %v946 = vld [vmem:[#allocation2 + $0x90] sm:$0xff]
      %v947 = vld [vmem:[#allocation2 + $0x98] sm:$0xff]
      %v948 = vld [vmem:[#allocation2 + $0xa8] sm:$0xff]
      %v949 = vld [vmem:[#allocation2 + $0xb0] sm:$0xff]
      %v950 = vld [vmem:[#allocation2 + $0xc0] sm:$0xff]
      %v951 = vld [vmem:[#allocation2 + $0xc8] sm:$0xff]
      %v952 = vld [vmem:[#allocation2 + $0xd8] sm:$0xff]
      %v953 = vld [vmem:[#allocation2 + $0xe0] sm:$0xff]
      %v954 = vld [vmem:[#allocation2 + $0xf0] sm:$0xff]
      %v955 = vld [vmem:[#allocation2 + $0xf8] sm:$0xff]
      %v956 = vld [vmem:[#allocation2 + $0x108] sm:$0xff]
      %v957 = vld [vmem:[#allocation2 + $0x110] sm:$0xff]
      %v958 = vld [vmem:[#allocation2 + $0x120] sm:$0xff]
      %v959 = vld [vmem:[#allocation2 + $0x128] sm:$0xff]
      %v960 = vld [vmem:[#allocation2 + $0x138] sm:$0xff]
      %v961 = vld [vmem:[#allocation2 + $0x140] sm:$0xff]
      %v962 = vld [vmem:[#allocation2 + $0x150] sm:$0xff]
      %v963 = vld [vmem:[#allocation2 + $0x158] sm:$0xff]
      %v964 = vld [vmem:[#allocation2 + $0x168] sm:$0xff]
      %v965 = vld [vmem:[#allocation2 + $0x170] sm:$0xff]
      %v966 = vpack.c.bf16 %v935, %v934
      %v967 = vpack.c.bf16 %v937, %v936
      %v968 = vpack.c.bf16 %v939, %v938
      %v969 = vpack.c.bf16 %v941, %v940
      %v970 = vpack.c.bf16 %v943, %v942
      %v971 = vpack.c.bf16 %v945, %v944
      %v972 = vpack.c.bf16 %v947, %v946
      %v973 = vpack.c.bf16 %v949, %v948
      %v974 = vpack.c.bf16 %v951, %v950
      %v975 = vpack.c.bf16 %v953, %v952
      %v976 = vpack.c.bf16 %v955, %v954
      %v977 = vpack.c.bf16 %v957, %v956
      %v978 = vpack.c.bf16 %v959, %v958
      %v979 = vpack.c.bf16 %v961, %v960
      %v980 = vpack.c.bf16 %v963, %v962
      %v981 = vpack.c.bf16 %v965, %v964
      %v982 = vld [vmem:[%s3] sm:$0xf]
      %v983 = vld [vmem:[%s3 + $0x4] sm:$0xf]
      %v984 = vld [vmem:[%s3 + $0x8] sm:$0xf]
      %v985 = vld [vmem:[%s3 + $0xc] sm:$0xf]
      %v986 = vld [vmem:[%s3 + $0x10] sm:$0xf]
      %v987 = vld [vmem:[%s3 + $0x14] sm:$0xf]
      %v988 = vld [vmem:[%s3 + $0x18] sm:$0xf]
      %v989 = vld [vmem:[%s3 + $0x1c] sm:$0xf]
      %v990 = vld [vmem:[%s3 + $0x20] sm:$0xf]
      %v991 = vld [vmem:[%s3 + $0x24] sm:$0xf]
      %v992 = vld [vmem:[%s3 + $0x28] sm:$0xf]
      %v993 = vld [vmem:[%s3 + $0x2c] sm:$0xf]
      %v994 = vld [vmem:[%s3 + $0x30] sm:$0xf]
      %v995 = vld [vmem:[%s3 + $0x34] sm:$0xf]
      %v996 = vld [vmem:[%s3 + $0x38] sm:$0xf]
      %v997 = vld [vmem:[%s3 + $0x3c] sm:$0xf]
      %v998 = vld [vmem:[#allocation2 + $0x1] sm:$0xff]
      %v999 = vld [vmem:[#allocation2 + $0x9] sm:$0xff]
      %v1000 = vld [vmem:[#allocation2 + $0x19] sm:$0xff]
      %v1001 = vld [vmem:[#allocation2 + $0x21] sm:$0xff]
      %v1002 = vld [vmem:[#allocation2 + $0x31] sm:$0xff]
      %v1003 = vld [vmem:[#allocation2 + $0x39] sm:$0xff]
      %v1004 = vld [vmem:[#allocation2 + $0x49] sm:$0xff]
      %v1005 = vld [vmem:[#allocation2 + $0x51] sm:$0xff]
      %v1006 = vld [vmem:[#allocation2 + $0x61] sm:$0xff]
      %v1007 = vld [vmem:[#allocation2 + $0x69] sm:$0xff]
      %v1008 = vld [vmem:[#allocation2 + $0x79] sm:$0xff]
      %v1009 = vld [vmem:[#allocation2 + $0x81] sm:$0xff]
      %v1010 = vld [vmem:[#allocation2 + $0x91] sm:$0xff]
      %v1011 = vld [vmem:[#allocation2 + $0x99] sm:$0xff]
      %v1012 = vld [vmem:[#allocation2 + $0xa9] sm:$0xff]
      %v1013 = vld [vmem:[#allocation2 + $0xb1] sm:$0xff]
      %v1014 = vld [vmem:[#allocation2 + $0xc1] sm:$0xff]
      %v1015 = vld [vmem:[#allocation2 + $0xc9] sm:$0xff]
      %v1016 = vld [vmem:[#allocation2 + $0xd9] sm:$0xff]
      %v1017 = vld [vmem:[#allocation2 + $0xe1] sm:$0xff]
      %v1018 = vld [vmem:[#allocation2 + $0xf1] sm:$0xff]
      %v1019 = vld [vmem:[#allocation2 + $0xf9] sm:$0xff]
      %v1020 = vld [vmem:[#allocation2 + $0x109] sm:$0xff]
      %v1021 = vld [vmem:[#allocation2 + $0x111] sm:$0xff]
      %v1022 = vld [vmem:[#allocation2 + $0x121] sm:$0xff]
      %v1023 = vld [vmem:[#allocation2 + $0x129] sm:$0xff]
      %v1024 = vld [vmem:[#allocation2 + $0x139] sm:$0xff]
      %v1025 = vld [vmem:[#allocation2 + $0x141] sm:$0xff]
      %v1026 = vld [vmem:[#allocation2 + $0x151] sm:$0xff]
      %v1027 = vld [vmem:[#allocation2 + $0x159] sm:$0xff]
      %v1028 = vld [vmem:[#allocation2 + $0x169] sm:$0xff]
      %v1029 = vld [vmem:[#allocation2 + $0x171] sm:$0xff]
      %v1030 = vpack.c.bf16 %v999, %v998
      %v1031 = vpack.c.bf16 %v1001, %v1000
      %v1032 = vpack.c.bf16 %v1003, %v1002
      %v1033 = vpack.c.bf16 %v1005, %v1004
      %v1034 = vpack.c.bf16 %v1007, %v1006
      %v1035 = vpack.c.bf16 %v1009, %v1008
      %v1036 = vpack.c.bf16 %v1011, %v1010
      %v1037 = vpack.c.bf16 %v1013, %v1012
      %v1038 = vpack.c.bf16 %v1015, %v1014
      %v1039 = vpack.c.bf16 %v1017, %v1016
      %v1040 = vpack.c.bf16 %v1019, %v1018
      %v1041 = vpack.c.bf16 %v1021, %v1020
      %v1042 = vpack.c.bf16 %v1023, %v1022
      %v1043 = vpack.c.bf16 %v1025, %v1024
      %v1044 = vpack.c.bf16 %v1027, %v1026
      %v1045 = vpack.c.bf16 %v1029, %v1028
      %v1046 = vld [vmem:[%s3 + $0x40] sm:$0xf]
      %v1047 = vld [vmem:[%s3 + $0x44] sm:$0xf]
      %v1048 = vld [vmem:[%s3 + $0x48] sm:$0xf]
      %v1049 = vld [vmem:[%s3 + $0x4c] sm:$0xf]
      %v1050 = vld [vmem:[%s3 + $0x50] sm:$0xf]
      %v1051 = vld [vmem:[%s3 + $0x54] sm:$0xf]
      %v1052 = vld [vmem:[%s3 + $0x58] sm:$0xf]
      %v1053 = vld [vmem:[%s3 + $0x5c] sm:$0xf]
      %v1054 = vld [vmem:[%s3 + $0x60] sm:$0xf]
      %v1055 = vld [vmem:[%s3 + $0x64] sm:$0xf]
      %v1056 = vld [vmem:[%s3 + $0x68] sm:$0xf]
      %v1057 = vld [vmem:[%s3 + $0x6c] sm:$0xf]
      %v1058 = vld [vmem:[%s3 + $0x70] sm:$0xf]
      %v1059 = vld [vmem:[%s3 + $0x74] sm:$0xf]
      %v1060 = vld [vmem:[%s3 + $0x78] sm:$0xf]
      %v1061 = vld [vmem:[%s3 + $0x7c] sm:$0xf]
      %v1078 = vunpack.c.l.b16 %v1046
      %v1079 = vunpack.c.l.b16 %v1047
      %v1080 = vunpack.c.l.b16 %v1048
      %v1081 = vunpack.c.l.b16 %v1049
      %v1082 = vunpack.c.l.b16 %v1050
      %v1083 = vunpack.c.l.b16 %v1051
      %v1084 = vunpack.c.l.b16 %v1052
      %v1085 = vunpack.c.l.b16 %v1053
      %v1086 = vunpack.c.l.b16 %v1054
      %v1087 = vunpack.c.l.b16 %v1055
      %v1088 = vunpack.c.l.b16 %v1056
      %v1089 = vunpack.c.l.b16 %v1057
      %v1090 = vunpack.c.l.b16 %v1058
      %v1091 = vunpack.c.l.b16 %v1059
      %v1092 = vunpack.c.l.b16 %v1060
      %v1093 = vunpack.c.l.b16 %v1061
      %v1094 = vpack.c.b16 %v1079, %v1078
      %v1095 = vpack.c.b16 %v1081, %v1080
      %v1096 = vpack.c.b16 %v1083, %v1082
      %v1097 = vpack.c.b16 %v1085, %v1084
      %v1098 = vpack.c.b16 %v1087, %v1086
      %v1099 = vpack.c.b16 %v1089, %v1088
      %v1100 = vpack.c.b16 %v1091, %v1090
      %v1101 = vpack.c.b16 %v1093, %v1092
      %1110 = vmatprep.subr.bf16.mxu0 0
      %1111 = vmatpush1.bf16.msra.mxu0 %v1094
      %1112 = vmatprep.subr.bf16.mxu0 0
      %1113 = vmatpush1.bf16.msra.mxu0 %v1095
      %1114 = vmatprep.subr.bf16.mxu0 0
      %1115 = vmatpush1.bf16.msra.mxu0 %v1096
      %1116 = vmatprep.subr.bf16.mxu0 0
      %1117 = vmatpush1.bf16.msra.mxu0 %v1097
      %1118 = vmatprep.subr.bf16.mxu0 0
      %1119 = vmatpush1.bf16.msra.mxu0 %v1098
      %1120 = vmatprep.subr.bf16.mxu0 0
      %1121 = vmatpush1.bf16.msra.mxu0 %v1099
      %1122 = vmatprep.subr.bf16.mxu0 0
      %1123 = vmatpush1.bf16.msra.mxu0 %v1100
      %1124 = vmatprep.subr.bf16.mxu0 0
      %1125 = vmatpush1.bf16.msra.mxu0 %v1101
      %1126 = vmatprep.subr.bf16.mxu0 0
      %1127 = vmatpush1.bf16.msra.mxu0 0
      %1128 = vmatprep.subr.bf16.mxu0 0
      %1129 = vmatpush1.bf16.msra.mxu0 0
      %1130 = vmatprep.subr.bf16.mxu0 0
      %1131 = vmatpush1.bf16.msra.mxu0 0
      %1132 = vmatprep.subr.bf16.mxu0 0
      %1133 = vmatpush1.bf16.msra.mxu0 0
      %1134 = vmatprep.subr.bf16.mxu0 0
      %1135 = vmatpush1.bf16.msra.mxu0 0
      %1136 = vmatprep.subr.bf16.mxu0 0
      %1137 = vmatpush1.bf16.msra.mxu0 0
      %1138 = vmatprep.subr.bf16.mxu0 0
      %1139 = vmatpush1.bf16.msra.mxu0 0
      %1140 = vmatprep.subr.bf16.mxu0 0
      %1141 = vmatpush1.bf16.msra.mxu0 0
      %1142 = vmatprep.mubr.bf16.mxu0 0
      %1143 = vmatmul.mubr.bf16.gmra.mrb[0].mxu0 %v1030
      %v1144 = vpop.f32.mrb[0].mxu0
      %v1145 = vadd.f32 0.0, %v1144
      %v1146 = vpop.f32.mrb[0].mxu0
      %v1147 = vpop.f32.mrb[0].mxu0
      %v1148 = vadd.f32 0.0, %v1147
      %v1149 = vpop.f32.mrb[0].mxu0
      %1150 = vmatprep.mubr.bf16.mxu0 0
      %1151 = vmatmul.mubr.bf16.gmra.mrb[0].mxu0 %v1031
      %v1152 = vpop.f32.mrb[0].mxu0
      %v1153 = vadd.f32 0.0, %v1152
      %v1154 = vpop.f32.mrb[0].mxu0
      %v1155 = vpop.f32.mrb[0].mxu0
      %v1156 = vadd.f32 0.0, %v1155
      %v1157 = vpop.f32.mrb[0].mxu0
      %1158 = vmatprep.mubr.bf16.mxu0 0
      %1159 = vmatmul.mubr.bf16.gmra.mrb[0].mxu0 %v1032
      %v1160 = vpop.f32.mrb[0].mxu0
      %v1161 = vadd.f32 0.0, %v1160
      %v1162 = vpop.f32.mrb[0].mxu0
      %v1163 = vpop.f32.mrb[0].mxu0
      %v1164 = vadd.f32 0.0, %v1163
      %v1165 = vpop.f32.mrb[0].mxu0
      %1166 = vmatprep.mubr.bf16.mxu0 0
      %1167 = vmatmul.mubr.bf16.gmra.mrb[0].mxu0 %v1033
      %v1168 = vpop.f32.mrb[0].mxu0
      %v1169 = vadd.f32 0.0, %v1168
      %v1170 = vpop.f32.mrb[0].mxu0
      %v1171 = vpop.f32.mrb[0].mxu0
      %v1172 = vadd.f32 0.0, %v1171
      %v1173 = vpop.f32.mrb[0].mxu0
      %1174 = vmatprep.mubr.bf16.mxu0 0
      %1175 = vmatmul.mubr.bf16.gmra.mrb[0].mxu0 %v1034
      %v1176 = vpop.f32.mrb[0].mxu0
      %v1177 = vadd.f32 0.0, %v1176
      %v1178 = vpop.f32.mrb[0].mxu0
      %v1179 = vpop.f32.mrb[0].mxu0
      %v1180 = vadd.f32 0.0, %v1179
      %v1181 = vpop.f32.mrb[0].mxu0
      %1182 = vmatprep.mubr.bf16.mxu0 0
      %1183 = vmatmul.mubr.bf16.gmra.mrb[0].mxu0 %v1035
      %v1184 = vpop.f32.mrb[0].mxu0
      %v1185 = vadd.f32 0.0, %v1184
      %v1186 = vpop.f32.mrb[0].mxu0
      %v1187 = vpop.f32.mrb[0].mxu0
      %v1188 = vadd.f32 0.0, %v1187
      %v1189 = vpop.f32.mrb[0].mxu0
      %1190 = vmatprep.mubr.bf16.mxu0 0
      %1191 = vmatmul.mubr.bf16.gmra.mrb[0].mxu0 %v1036
      %v1192 = vpop.f32.mrb[0].mxu0
      %v1193 = vadd.f32 0.0, %v1192
      %v1194 = vpop.f32.mrb[0].mxu0
      %v1195 = vpop.f32.mrb[0].mxu0
      %v1196 = vadd.f32 0.0, %v1195
      %v1197 = vpop.f32.mrb[0].mxu0
      %1198 = vmatprep.mubr.bf16.mxu0 0
      %1199 = vmatmul.mubr.bf16.gmra.mrb[0].mxu0 %v1037
      %v1200 = vpop.f32.mrb[0].mxu0
      %v1201 = vadd.f32 0.0, %v1200
      %v1202 = vpop.f32.mrb[0].mxu0
      %v1203 = vpop.f32.mrb[0].mxu0
      %v1204 = vadd.f32 0.0, %v1203
      %v1205 = vpop.f32.mrb[0].mxu0
      %1206 = vmatprep.mubr.bf16.mxu0 0
      %1207 = vmatmul.mubr.bf16.gmra.mrb[0].mxu0 %v1038
      %v1208 = vpop.f32.mrb[0].mxu0
      %v1209 = vadd.f32 0.0, %v1208
      %v1210 = vpop.f32.mrb[0].mxu0
      %v1211 = vpop.f32.mrb[0].mxu0
      %v1212 = vadd.f32 0.0, %v1211
      %v1213 = vpop.f32.mrb[0].mxu0
      %1214 = vmatprep.mubr.bf16.mxu0 0
      %1215 = vmatmul.mubr.bf16.gmra.mrb[0].mxu0 %v1039
      %v1216 = vpop.f32.mrb[0].mxu0
      %v1217 = vadd.f32 0.0, %v1216
      %v1218 = vpop.f32.mrb[0].mxu0
      %v1219 = vpop.f32.mrb[0].mxu0
      %v1220 = vadd.f32 0.0, %v1219
      %v1221 = vpop.f32.mrb[0].mxu0
      %1222 = vmatprep.mubr.bf16.mxu0 0
      %1223 = vmatmul.mubr.bf16.gmra.mrb[0].mxu0 %v1040
      %v1224 = vpop.f32.mrb[0].mxu0
      %v1225 = vadd.f32 0.0, %v1224
      %v1226 = vpop.f32.mrb[0].mxu0
      %v1227 = vpop.f32.mrb[0].mxu0
      %v1228 = vadd.f32 0.0, %v1227
      %v1229 = vpop.f32.mrb[0].mxu0
      %1230 = vmatprep.mubr.bf16.mxu0 0
      %1231 = vmatmul.mubr.bf16.gmra.mrb[0].mxu0 %v1041
      %v1232 = vpop.f32.mrb[0].mxu0
      %v1233 = vadd.f32 0.0, %v1232
      %v1234 = vpop.f32.mrb[0].mxu0
      %v1235 = vpop.f32.mrb[0].mxu0
      %v1236 = vadd.f32 0.0, %v1235
      %v1237 = vpop.f32.mrb[0].mxu0
      %1238 = vmatprep.mubr.bf16.mxu0 0
      %1239 = vmatmul.mubr.bf16.gmra.mrb[0].mxu0 %v1042
      %v1240 = vpop.f32.mrb[0].mxu0
      %v1241 = vadd.f32 0.0, %v1240
      %v1242 = vpop.f32.mrb[0].mxu0
      %v1243 = vpop.f32.mrb[0].mxu0
      %v1244 = vadd.f32 0.0, %v1243
      %v1245 = vpop.f32.mrb[0].mxu0
      %1246 = vmatprep.mubr.bf16.mxu0 0
      %1247 = vmatmul.mubr.bf16.gmra.mrb[0].mxu0 %v1043
      %v1248 = vpop.f32.mrb[0].mxu0
      %v1249 = vadd.f32 0.0, %v1248
      %v1250 = vpop.f32.mrb[0].mxu0
      %v1251 = vpop.f32.mrb[0].mxu0
      %v1252 = vadd.f32 0.0, %v1251
      %v1253 = vpop.f32.mrb[0].mxu0
      %1254 = vmatprep.mubr.bf16.mxu0 0
      %1255 = vmatmul.mubr.bf16.gmra.mrb[0].mxu0 %v1044
      %v1256 = vpop.f32.mrb[0].mxu0
      %v1257 = vadd.f32 0.0, %v1256
      %v1258 = vpop.f32.mrb[0].mxu0
      %v1259 = vpop.f32.mrb[0].mxu0
      %v1260 = vadd.f32 0.0, %v1259
      %v1261 = vpop.f32.mrb[0].mxu0
      %1262 = vmatprep.mubr.bf16.mxu0 0
      %1263 = vmatmul.mubr.bf16.gmra.mrb[0].mxu0 %v1045
      %v1264 = vpop.f32.mrb[0].mxu0
      %v1265 = vadd.f32 0.0, %v1264
      %v1266 = vpop.f32.mrb[0].mxu0
      %v1267 = vpop.f32.mrb[0].mxu0
      %v1268 = vadd.f32 0.0, %v1267
      %v1269 = vpop.f32.mrb[0].mxu0
      %1270 = vdwg.mxu0
      %v1287 = vunpack.c.l.b16 %v982
      %v1288 = vunpack.c.l.b16 %v983
      %v1289 = vunpack.c.l.b16 %v984
      %v1290 = vunpack.c.l.b16 %v985
      %v1291 = vunpack.c.l.b16 %v986
      %v1292 = vunpack.c.l.b16 %v987
      %v1293 = vunpack.c.l.b16 %v988
      %v1294 = vunpack.c.l.b16 %v989
      %v1295 = vunpack.c.l.b16 %v990
      %v1296 = vunpack.c.l.b16 %v991
      %v1297 = vunpack.c.l.b16 %v992
      %v1298 = vunpack.c.l.b16 %v993
      %v1299 = vunpack.c.l.b16 %v994
      %v1300 = vunpack.c.l.b16 %v995
      %v1301 = vunpack.c.l.b16 %v996
      %v1302 = vunpack.c.l.b16 %v997
      %v1303 = vpack.c.b16 %v1288, %v1287
      %v1304 = vpack.c.b16 %v1290, %v1289
      %v1305 = vpack.c.b16 %v1292, %v1291
      %v1306 = vpack.c.b16 %v1294, %v1293
      %v1307 = vpack.c.b16 %v1296, %v1295
      %v1308 = vpack.c.b16 %v1298, %v1297
      %v1309 = vpack.c.b16 %v1300, %v1299
      %v1310 = vpack.c.b16 %v1302, %v1301
      %1319 = vmatprep.subr.bf16.mxu0 0
      %1320 = vmatpush1.bf16.msra.mxu0 %v1303
      %1321 = vmatprep.subr.bf16.mxu0 0
      %1322 = vmatpush1.bf16.msra.mxu0 %v1304
      %1323 = vmatprep.subr.bf16.mxu0 0
      %1324 = vmatpush1.bf16.msra.mxu0 %v1305
      %1325 = vmatprep.subr.bf16.mxu0 0
      %1326 = vmatpush1.bf16.msra.mxu0 %v1306
      %1327 = vmatprep.subr.bf16.mxu0 0
      %1328 = vmatpush1.bf16.msra.mxu0 %v1307
      %1329 = vmatprep.subr.bf16.mxu0 0
      %1330 = vmatpush1.bf16.msra.mxu0 %v1308
      %1331 = vmatprep.subr.bf16.mxu0 0
      %1332 = vmatpush1.bf16.msra.mxu0 %v1309
      %1333 = vmatprep.subr.bf16.mxu0 0
      %1334 = vmatpush1.bf16.msra.mxu0 %v1310
      %1335 = vmatprep.subr.bf16.mxu0 0
      %1336 = vmatpush1.bf16.msra.mxu0 0
      %1337 = vmatprep.subr.bf16.mxu0 0
      %1338 = vmatpush1.bf16.msra.mxu0 0
      %1339 = vmatprep.subr.bf16.mxu0 0
      %1340 = vmatpush1.bf16.msra.mxu0 0
      %1341 = vmatprep.subr.bf16.mxu0 0
      %1342 = vmatpush1.bf16.msra.mxu0 0
      %1343 = vmatprep.subr.bf16.mxu0 0
      %1344 = vmatpush1.bf16.msra.mxu0 0
      %1345 = vmatprep.subr.bf16.mxu0 0
      %1346 = vmatpush1.bf16.msra.mxu0 0
      %1347 = vmatprep.subr.bf16.mxu0 0
      %1348 = vmatpush1.bf16.msra.mxu0 0
      %1349 = vmatprep.subr.bf16.mxu0 0
      %1350 = vmatpush1.bf16.msra.mxu0 0
      %1351 = vmatprep.mubr.bf16.mxu0 0
      %1352 = vmatmul.mubr.bf16.gmra.mrb[0].mxu0 %v966
      %v1353 = vpop.f32.mrb[0].mxu0
      %v1354 = vadd.f32 %v1145, %v1353
      %v1355 = vpop.f32.mrb[0].mxu0
      %v1356 = vpop.f32.mrb[0].mxu0
      %v1357 = vadd.f32 %v1148, %v1356
      %v1358 = vpop.f32.mrb[0].mxu0
      %1359 = vmatprep.mubr.bf16.mxu0 0
      %1360 = vmatmul.mubr.bf16.gmra.mrb[0].mxu0 %v967
      %v1361 = vpop.f32.mrb[0].mxu0
      %v1362 = vadd.f32 %v1153, %v1361
      %v1363 = vpop.f32.mrb[0].mxu0
      %v1364 = vpop.f32.mrb[0].mxu0
      %v1365 = vadd.f32 %v1156, %v1364
      %v1366 = vpop.f32.mrb[0].mxu0
      %1367 = vmatprep.mubr.bf16.mxu0 0
      %1368 = vmatmul.mubr.bf16.gmra.mrb[0].mxu0 %v968
      %v1369 = vpop.f32.mrb[0].mxu0
      %v1370 = vadd.f32 %v1161, %v1369
      %v1371 = vpop.f32.mrb[0].mxu0
      %v1372 = vpop.f32.mrb[0].mxu0
      %v1373 = vadd.f32 %v1164, %v1372
      %v1374 = vpop.f32.mrb[0].mxu0
      %1375 = vmatprep.mubr.bf16.mxu0 0
      %1376 = vmatmul.mubr.bf16.gmra.mrb[0].mxu0 %v969
      %v1377 = vpop.f32.mrb[0].mxu0
      %v1378 = vadd.f32 %v1169, %v1377
      %v1379 = vpop.f32.mrb[0].mxu0
      %v1380 = vpop.f32.mrb[0].mxu0
      %v1381 = vadd.f32 %v1172, %v1380
      %v1382 = vpop.f32.mrb[0].mxu0
      %1383 = vmatprep.mubr.bf16.mxu0 0
      %1384 = vmatmul.mubr.bf16.gmra.mrb[0].mxu0 %v970
      %v1385 = vpop.f32.mrb[0].mxu0
      %v1386 = vadd.f32 %v1177, %v1385
      %v1387 = vpop.f32.mrb[0].mxu0
      %v1388 = vpop.f32.mrb[0].mxu0
      %v1389 = vadd.f32 %v1180, %v1388
      %v1390 = vpop.f32.mrb[0].mxu0
      %1391 = vmatprep.mubr.bf16.mxu0 0
      %1392 = vmatmul.mubr.bf16.gmra.mrb[0].mxu0 %v971
      %v1393 = vpop.f32.mrb[0].mxu0
      %v1394 = vadd.f32 %v1185, %v1393
      %v1395 = vpop.f32.mrb[0].mxu0
      %v1396 = vpop.f32.mrb[0].mxu0
      %v1397 = vadd.f32 %v1188, %v1396
      %v1398 = vpop.f32.mrb[0].mxu0
      %1399 = vmatprep.mubr.bf16.mxu0 0
      %1400 = vmatmul.mubr.bf16.gmra.mrb[0].mxu0 %v972
      %v1401 = vpop.f32.mrb[0].mxu0
      %v1402 = vadd.f32 %v1193, %v1401
      %v1403 = vpop.f32.mrb[0].mxu0
      %v1404 = vpop.f32.mrb[0].mxu0
      %v1405 = vadd.f32 %v1196, %v1404
      %v1406 = vpop.f32.mrb[0].mxu0
      %1407 = vmatprep.mubr.bf16.mxu0 0
      %1408 = vmatmul.mubr.bf16.gmra.mrb[0].mxu0 %v973
      %v1409 = vpop.f32.mrb[0].mxu0
      %v1410 = vadd.f32 %v1201, %v1409
      %v1411 = vpop.f32.mrb[0].mxu0
      %v1412 = vpop.f32.mrb[0].mxu0
      %v1413 = vadd.f32 %v1204, %v1412
      %v1414 = vpop.f32.mrb[0].mxu0
      %1415 = vmatprep.mubr.bf16.mxu0 0
      %1416 = vmatmul.mubr.bf16.gmra.mrb[0].mxu0 %v974
      %v1417 = vpop.f32.mrb[0].mxu0
      %v1418 = vadd.f32 %v1209, %v1417
      %v1419 = vpop.f32.mrb[0].mxu0
      %v1420 = vpop.f32.mrb[0].mxu0
      %v1421 = vadd.f32 %v1212, %v1420
      %v1422 = vpop.f32.mrb[0].mxu0
      %1423 = vmatprep.mubr.bf16.mxu0 0
      %1424 = vmatmul.mubr.bf16.gmra.mrb[0].mxu0 %v975
      %v1425 = vpop.f32.mrb[0].mxu0
      %v1426 = vadd.f32 %v1217, %v1425
      %v1427 = vpop.f32.mrb[0].mxu0
      %v1428 = vpop.f32.mrb[0].mxu0
      %v1429 = vadd.f32 %v1220, %v1428
      %v1430 = vpop.f32.mrb[0].mxu0
      %1431 = vmatprep.mubr.bf16.mxu0 0
      %1432 = vmatmul.mubr.bf16.gmra.mrb[0].mxu0 %v976
      %v1433 = vpop.f32.mrb[0].mxu0
      %v1434 = vadd.f32 %v1225, %v1433
      %v1435 = vpop.f32.mrb[0].mxu0
      %v1436 = vpop.f32.mrb[0].mxu0
      %v1437 = vadd.f32 %v1228, %v1436
      %v1438 = vpop.f32.mrb[0].mxu0
      %1439 = vmatprep.mubr.bf16.mxu0 0
      %1440 = vmatmul.mubr.bf16.gmra.mrb[0].mxu0 %v977
      %v1441 = vpop.f32.mrb[0].mxu0
      %v1442 = vadd.f32 %v1233, %v1441
      %v1443 = vpop.f32.mrb[0].mxu0
      %v1444 = vpop.f32.mrb[0].mxu0
      %v1445 = vadd.f32 %v1236, %v1444
      %v1446 = vpop.f32.mrb[0].mxu0
      %1447 = vmatprep.mubr.bf16.mxu0 0
      %1448 = vmatmul.mubr.bf16.gmra.mrb[0].mxu0 %v978
      %v1449 = vpop.f32.mrb[0].mxu0
      %v1450 = vadd.f32 %v1241, %v1449
      %v1451 = vpop.f32.mrb[0].mxu0
      %v1452 = vpop.f32.mrb[0].mxu0
      %v1453 = vadd.f32 %v1244, %v1452
      %v1454 = vpop.f32.mrb[0].mxu0
      %1455 = vmatprep.mubr.bf16.mxu0 0
      %1456 = vmatmul.mubr.bf16.gmra.mrb[0].mxu0 %v979
      %v1457 = vpop.f32.mrb[0].mxu0
      %v1458 = vadd.f32 %v1249, %v1457
      %v1459 = vpop.f32.mrb[0].mxu0
      %v1460 = vpop.f32.mrb[0].mxu0
      %v1461 = vadd.f32 %v1252, %v1460
      %v1462 = vpop.f32.mrb[0].mxu0
      %1463 = vmatprep.mubr.bf16.mxu0 0
      %1464 = vmatmul.mubr.bf16.gmra.mrb[0].mxu0 %v980
      %v1465 = vpop.f32.mrb[0].mxu0
      %v1466 = vadd.f32 %v1257, %v1465
      %v1467 = vpop.f32.mrb[0].mxu0
      %v1468 = vpop.f32.mrb[0].mxu0
      %v1469 = vadd.f32 %v1260, %v1468
      %v1470 = vpop.f32.mrb[0].mxu0
      %1471 = vmatprep.mubr.bf16.mxu0 0
      %1472 = vmatmul.mubr.bf16.gmra.mrb[0].mxu0 %v981
      %v1473 = vpop.f32.mrb[0].mxu0
      %v1474 = vadd.f32 %v1265, %v1473
      %v1475 = vpop.f32.mrb[0].mxu0
      %v1476 = vpop.f32.mrb[0].mxu0
      %v1477 = vadd.f32 %v1268, %v1476
      %v1478 = vpop.f32.mrb[0].mxu0
      %1479 = vdwg.mxu0
      %v1480 = vld [vmem:[#allocation2 + $0x2] sm:$0xff]
      %v1481 = vld [vmem:[#allocation2 + $0xa] sm:$0xff]
      %v1482 = vld [vmem:[#allocation2 + $0x1a] sm:$0xff]
      %v1483 = vld [vmem:[#allocation2 + $0x22] sm:$0xff]
      %v1484 = vld [vmem:[#allocation2 + $0x32] sm:$0xff]
      %v1485 = vld [vmem:[#allocation2 + $0x3a] sm:$0xff]
      %v1486 = vld [vmem:[#allocation2 + $0x4a] sm:$0xff]
      %v1487 = vld [vmem:[#allocation2 + $0x52] sm:$0xff]
      %v1488 = vld [vmem:[#allocation2 + $0x62] sm:$0xff]
      %v1489 = vld [vmem:[#allocation2 + $0x6a] sm:$0xff]
      %v1490 = vld [vmem:[#allocation2 + $0x7a] sm:$0xff]
      %v1491 = vld [vmem:[#allocation2 + $0x82] sm:$0xff]
      %v1492 = vld [vmem:[#allocation2 + $0x92] sm:$0xff]
      %v1493 = vld [vmem:[#allocation2 + $0x9a] sm:$0xff]
      %v1494 = vld [vmem:[#allocation2 + $0xaa] sm:$0xff]
      %v1495 = vld [vmem:[#allocation2 + $0xb2] sm:$0xff]
      %v1496 = vld [vmem:[#allocation2 + $0xc2] sm:$0xff]
      %v1497 = vld [vmem:[#allocation2 + $0xca] sm:$0xff]
      %v1498 = vld [vmem:[#allocation2 + $0xda] sm:$0xff]
      %v1499 = vld [vmem:[#allocation2 + $0xe2] sm:$0xff]
      %v1500 = vld [vmem:[#allocation2 + $0xf2] sm:$0xff]
      %v1501 = vld [vmem:[#allocation2 + $0xfa] sm:$0xff]
      %v1502 = vld [vmem:[#allocation2 + $0x10a] sm:$0xff]
      %v1503 = vld [vmem:[#allocation2 + $0x112] sm:$0xff]
      %v1504 = vld [vmem:[#allocation2 + $0x122] sm:$0xff]
      %v1505 = vld [vmem:[#allocation2 + $0x12a] sm:$0xff]
      %v1506 = vld [vmem:[#allocation2 + $0x13a] sm:$0xff]
      %v1507 = vld [vmem:[#allocation2 + $0x142] sm:$0xff]
      %v1508 = vld [vmem:[#allocation2 + $0x152] sm:$0xff]
      %v1509 = vld [vmem:[#allocation2 + $0x15a] sm:$0xff]
      %v1510 = vld [vmem:[#allocation2 + $0x16a] sm:$0xff]
      %v1511 = vld [vmem:[#allocation2 + $0x172] sm:$0xff]
      %v1512 = vpack.c.bf16 %v1481, %v1480
      %v1513 = vpack.c.bf16 %v1483, %v1482
      %v1514 = vpack.c.bf16 %v1485, %v1484
      %v1515 = vpack.c.bf16 %v1487, %v1486
      %v1516 = vpack.c.bf16 %v1489, %v1488
      %v1517 = vpack.c.bf16 %v1491, %v1490
      %v1518 = vpack.c.bf16 %v1493, %v1492
      %v1519 = vpack.c.bf16 %v1495, %v1494
      %v1520 = vpack.c.bf16 %v1497, %v1496
      %v1521 = vpack.c.bf16 %v1499, %v1498
      %v1522 = vpack.c.bf16 %v1501, %v1500
      %v1523 = vpack.c.bf16 %v1503, %v1502
      %v1524 = vpack.c.bf16 %v1505, %v1504
      %v1525 = vpack.c.bf16 %v1507, %v1506
      %v1526 = vpack.c.bf16 %v1509, %v1508
      %v1527 = vpack.c.bf16 %v1511, %v1510
      %v1528 = vld [vmem:[%s3 + $0x80] sm:$0xf]
      %v1529 = vld [vmem:[%s3 + $0x84] sm:$0xf]
      %v1530 = vld [vmem:[%s3 + $0x88] sm:$0xf]
      %v1531 = vld [vmem:[%s3 + $0x8c] sm:$0xf]
      %v1532 = vld [vmem:[%s3 + $0x90] sm:$0xf]
      %v1533 = vld [vmem:[%s3 + $0x94] sm:$0xf]
      %v1534 = vld [vmem:[%s3 + $0x98] sm:$0xf]
      %v1535 = vld [vmem:[%s3 + $0x9c] sm:$0xf]
      %v1536 = vld [vmem:[%s3 + $0xa0] sm:$0xf]
      %v1537 = vld [vmem:[%s3 + $0xa4] sm:$0xf]
      %v1538 = vld [vmem:[%s3 + $0xa8] sm:$0xf]
      %v1539 = vld [vmem:[%s3 + $0xac] sm:$0xf]
      %v1540 = vld [vmem:[%s3 + $0xb0] sm:$0xf]
      %v1541 = vld [vmem:[%s3 + $0xb4] sm:$0xf]
      %v1542 = vld [vmem:[%s3 + $0xb8] sm:$0xf]
      %v1543 = vld [vmem:[%s3 + $0xbc] sm:$0xf]
      %v1560 = vunpack.c.l.b16 %v1528
      %v1561 = vunpack.c.l.b16 %v1529
      %v1562 = vunpack.c.l.b16 %v1530
      %v1563 = vunpack.c.l.b16 %v1531
      %v1564 = vunpack.c.l.b16 %v1532
      %v1565 = vunpack.c.l.b16 %v1533
      %v1566 = vunpack.c.l.b16 %v1534
      %v1567 = vunpack.c.l.b16 %v1535
      %v1568 = vunpack.c.l.b16 %v1536
      %v1569 = vunpack.c.l.b16 %v1537
      %v1570 = vunpack.c.l.b16 %v1538
      %v1571 = vunpack.c.l.b16 %v1539
      %v1572 = vunpack.c.l.b16 %v1540
      %v1573 = vunpack.c.l.b16 %v1541
      %v1574 = vunpack.c.l.b16 %v1542
      %v1575 = vunpack.c.l.b16 %v1543
      %v1576 = vpack.c.b16 %v1561, %v1560
      %v1577 = vpack.c.b16 %v1563, %v1562
      %v1578 = vpack.c.b16 %v1565, %v1564
      %v1579 = vpack.c.b16 %v1567, %v1566
      %v1580 = vpack.c.b16 %v1569, %v1568
      %v1581 = vpack.c.b16 %v1571, %v1570
      %v1582 = vpack.c.b16 %v1573, %v1572
      %v1583 = vpack.c.b16 %v1575, %v1574
      %1592 = vmatprep.subr.bf16.mxu0 0
      %1593 = vmatpush1.bf16.msra.mxu0 %v1576
      %1594 = vmatprep.subr.bf16.mxu0 0
      %1595 = vmatpush1.bf16.msra.mxu0 %v1577
      %1596 = vmatprep.subr.bf16.mxu0 0
      %1597 = vmatpush1.bf16.msra.mxu0 %v1578
      %1598 = vmatprep.subr.bf16.mxu0 0
      %1599 = vmatpush1.bf16.msra.mxu0 %v1579
      %1600 = vmatprep.subr.bf16.mxu0 0
      %1601 = vmatpush1.bf16.msra.mxu0 %v1580
      %1602 = vmatprep.subr.bf16.mxu0 0
      %1603 = vmatpush1.bf16.msra.mxu0 %v1581
      %1604 = vmatprep.subr.bf16.mxu0 0
      %1605 = vmatpush1.bf16.msra.mxu0 %v1582
      %1606 = vmatprep.subr.bf16.mxu0 0
      %1607 = vmatpush1.bf16.msra.mxu0 %v1583
      %1608 = vmatprep.subr.bf16.mxu0 0
      %1609 = vmatpush1.bf16.msra.mxu0 0
      %1610 = vmatprep.subr.bf16.mxu0 0
      %1611 = vmatpush1.bf16.msra.mxu0 0
      %1612 = vmatprep.subr.bf16.mxu0 0
      %1613 = vmatpush1.bf16.msra.mxu0 0
      %1614 = vmatprep.subr.bf16.mxu0 0
      %1615 = vmatpush1.bf16.msra.mxu0 0
      %1616 = vmatprep.subr.bf16.mxu0 0
      %1617 = vmatpush1.bf16.msra.mxu0 0
      %1618 = vmatprep.subr.bf16.mxu0 0
      %1619 = vmatpush1.bf16.msra.mxu0 0
      %1620 = vmatprep.subr.bf16.mxu0 0
      %1621 = vmatpush1.bf16.msra.mxu0 0
      %1622 = vmatprep.subr.bf16.mxu0 0
      %1623 = vmatpush1.bf16.msra.mxu0 0
      %1624 = vmatprep.mubr.bf16.mxu0 0
      %1625 = vmatmul.mubr.bf16.gmra.mrb[0].mxu0 %v1512
      %v1626 = vpop.f32.mrb[0].mxu0
      %v1627 = vadd.f32 0.0, %v1626
      %v1628 = vpop.f32.mrb[0].mxu0
      %v1629 = vpop.f32.mrb[0].mxu0
      %v1630 = vadd.f32 0.0, %v1629
      %v1631 = vpop.f32.mrb[0].mxu0
      %1632 = vmatprep.mubr.bf16.mxu0 0
      %1633 = vmatmul.mubr.bf16.gmra.mrb[0].mxu0 %v1513
      %v1634 = vpop.f32.mrb[0].mxu0
      %v1635 = vadd.f32 0.0, %v1634
      %v1636 = vpop.f32.mrb[0].mxu0
      %v1637 = vpop.f32.mrb[0].mxu0
      %v1638 = vadd.f32 0.0, %v1637
      %v1639 = vpop.f32.mrb[0].mxu0
      %1640 = vmatprep.mubr.bf16.mxu0 0
      %1641 = vmatmul.mubr.bf16.gmra.mrb[0].mxu0 %v1514
      %v1642 = vpop.f32.mrb[0].mxu0
      %v1643 = vadd.f32 0.0, %v1642
      %v1644 = vpop.f32.mrb[0].mxu0
      %v1645 = vpop.f32.mrb[0].mxu0
      %v1646 = vadd.f32 0.0, %v1645
      %v1647 = vpop.f32.mrb[0].mxu0
      %1648 = vmatprep.mubr.bf16.mxu0 0
      %1649 = vmatmul.mubr.bf16.gmra.mrb[0].mxu0 %v1515
      %v1650 = vpop.f32.mrb[0].mxu0
      %v1651 = vadd.f32 0.0, %v1650
      %v1652 = vpop.f32.mrb[0].mxu0
      %v1653 = vpop.f32.mrb[0].mxu0
      %v1654 = vadd.f32 0.0, %v1653
      %v1655 = vpop.f32.mrb[0].mxu0
      %1656 = vmatprep.mubr.bf16.mxu0 0
      %1657 = vmatmul.mubr.bf16.gmra.mrb[0].mxu0 %v1516
      %v1658 = vpop.f32.mrb[0].mxu0
      %v1659 = vadd.f32 0.0, %v1658
      %v1660 = vpop.f32.mrb[0].mxu0
      %v1661 = vpop.f32.mrb[0].mxu0
      %v1662 = vadd.f32 0.0, %v1661
      %v1663 = vpop.f32.mrb[0].mxu0
      %1664 = vmatprep.mubr.bf16.mxu0 0
      %1665 = vmatmul.mubr.bf16.gmra.mrb[0].mxu0 %v1517
      %v1666 = vpop.f32.mrb[0].mxu0
      %v1667 = vadd.f32 0.0, %v1666
      %v1668 = vpop.f32.mrb[0].mxu0
      %v1669 = vpop.f32.mrb[0].mxu0
      %v1670 = vadd.f32 0.0, %v1669
      %v1671 = vpop.f32.mrb[0].mxu0
      %1672 = vmatprep.mubr.bf16.mxu0 0
      %1673 = vmatmul.mubr.bf16.gmra.mrb[0].mxu0 %v1518
      %v1674 = vpop.f32.mrb[0].mxu0
      %v1675 = vadd.f32 0.0, %v1674
      %v1676 = vpop.f32.mrb[0].mxu0
      %v1677 = vpop.f32.mrb[0].mxu0
      %v1678 = vadd.f32 0.0, %v1677
      %v1679 = vpop.f32.mrb[0].mxu0
      %1680 = vmatprep.mubr.bf16.mxu0 0
      %1681 = vmatmul.mubr.bf16.gmra.mrb[0].mxu0 %v1519
      %v1682 = vpop.f32.mrb[0].mxu0
      %v1683 = vadd.f32 0.0, %v1682
      %v1684 = vpop.f32.mrb[0].mxu0
      %v1685 = vpop.f32.mrb[0].mxu0
      %v1686 = vadd.f32 0.0, %v1685
      %v1687 = vpop.f32.mrb[0].mxu0
      %1688 = vmatprep.mubr.bf16.mxu0 0
      %1689 = vmatmul.mubr.bf16.gmra.mrb[0].mxu0 %v1520
      %v1690 = vpop.f32.mrb[0].mxu0
      %v1691 = vadd.f32 0.0, %v1690
      %v1692 = vpop.f32.mrb[0].mxu0
      %v1693 = vpop.f32.mrb[0].mxu0
      %v1694 = vadd.f32 0.0, %v1693
      %v1695 = vpop.f32.mrb[0].mxu0
      %1696 = vmatprep.mubr.bf16.mxu0 0
      %1697 = vmatmul.mubr.bf16.gmra.mrb[0].mxu0 %v1521
      %v1698 = vpop.f32.mrb[0].mxu0
      %v1699 = vadd.f32 0.0, %v1698
      %v1700 = vpop.f32.mrb[0].mxu0
      %v1701 = vpop.f32.mrb[0].mxu0
      %v1702 = vadd.f32 0.0, %v1701
      %v1703 = vpop.f32.mrb[0].mxu0
      %1704 = vmatprep.mubr.bf16.mxu0 0
      %1705 = vmatmul.mubr.bf16.gmra.mrb[0].mxu0 %v1522
      %v1706 = vpop.f32.mrb[0].mxu0
      %v1707 = vadd.f32 0.0, %v1706
      %v1708 = vpop.f32.mrb[0].mxu0
      %v1709 = vpop.f32.mrb[0].mxu0
      %v1710 = vadd.f32 0.0, %v1709
      %v1711 = vpop.f32.mrb[0].mxu0
      %1712 = vmatprep.mubr.bf16.mxu0 0
      %1713 = vmatmul.mubr.bf16.gmra.mrb[0].mxu0 %v1523
      %v1714 = vpop.f32.mrb[0].mxu0
      %v1715 = vadd.f32 0.0, %v1714
      %v1716 = vpop.f32.mrb[0].mxu0
      %v1717 = vpop.f32.mrb[0].mxu0
      %v1718 = vadd.f32 0.0, %v1717
      %v1719 = vpop.f32.mrb[0].mxu0
      %1720 = vmatprep.mubr.bf16.mxu0 0
      %1721 = vmatmul.mubr.bf16.gmra.mrb[0].mxu0 %v1524
      %v1722 = vpop.f32.mrb[0].mxu0
      %v1723 = vadd.f32 0.0, %v1722
      %v1724 = vpop.f32.mrb[0].mxu0
      %v1725 = vpop.f32.mrb[0].mxu0
      %v1726 = vadd.f32 0.0, %v1725
      %v1727 = vpop.f32.mrb[0].mxu0
      %1728 = vmatprep.mubr.bf16.mxu0 0
      %1729 = vmatmul.mubr.bf16.gmra.mrb[0].mxu0 %v1525
      %v1730 = vpop.f32.mrb[0].mxu0
      %v1731 = vadd.f32 0.0, %v1730
      %v1732 = vpop.f32.mrb[0].mxu0
      %v1733 = vpop.f32.mrb[0].mxu0
      %v1734 = vadd.f32 0.0, %v1733
      %v1735 = vpop.f32.mrb[0].mxu0
      %1736 = vmatprep.mubr.bf16.mxu0 0
      %1737 = vmatmul.mubr.bf16.gmra.mrb[0].mxu0 %v1526
      %v1738 = vpop.f32.mrb[0].mxu0
      %v1739 = vadd.f32 0.0, %v1738
      %v1740 = vpop.f32.mrb[0].mxu0
      %v1741 = vpop.f32.mrb[0].mxu0
      %v1742 = vadd.f32 0.0, %v1741
      %v1743 = vpop.f32.mrb[0].mxu0
      %1744 = vmatprep.mubr.bf16.mxu0 0
      %1745 = vmatmul.mubr.bf16.gmra.mrb[0].mxu0 %v1527
      %v1746 = vpop.f32.mrb[0].mxu0
      %v1747 = vadd.f32 0.0, %v1746
      %v1748 = vpop.f32.mrb[0].mxu0
      %v1749 = vpop.f32.mrb[0].mxu0
      %v1750 = vadd.f32 0.0, %v1749
      %v1751 = vpop.f32.mrb[0].mxu0
      %1752 = vdwg.mxu0
      %v1753 = vadd.f32 %v1354, %v1627
      %v1754 = vadd.f32 %v1357, %v1630
      %v1755 = vadd.f32 %v1362, %v1635
      %v1756 = vadd.f32 %v1365, %v1638
      %v1757 = vadd.f32 %v1370, %v1643
      %v1758 = vadd.f32 %v1373, %v1646
      %v1759 = vadd.f32 %v1378, %v1651
      %v1760 = vadd.f32 %v1381, %v1654
      %v1761 = vadd.f32 %v1386, %v1659
      %v1762 = vadd.f32 %v1389, %v1662
      %v1763 = vadd.f32 %v1394, %v1667
      %v1764 = vadd.f32 %v1397, %v1670
      %v1765 = vadd.f32 %v1402, %v1675
      %v1766 = vadd.f32 %v1405, %v1678
      %v1767 = vadd.f32 %v1410, %v1683
      %v1768 = vadd.f32 %v1413, %v1686
      %v1769 = vadd.f32 %v1418, %v1691
      %v1770 = vadd.f32 %v1421, %v1694
      %v1771 = vadd.f32 %v1426, %v1699
      %v1772 = vadd.f32 %v1429, %v1702
      %v1773 = vadd.f32 %v1434, %v1707
      %v1774 = vadd.f32 %v1437, %v1710
      %v1775 = vadd.f32 %v1442, %v1715
      %v1776 = vadd.f32 %v1445, %v1718
      %v1777 = vadd.f32 %v1450, %v1723
      %v1778 = vadd.f32 %v1453, %v1726
      %v1779 = vadd.f32 %v1458, %v1731
      %v1780 = vadd.f32 %v1461, %v1734
      %v1781 = vadd.f32 %v1466, %v1739
      %v1782 = vadd.f32 %v1469, %v1742
      %v1783 = vadd.f32 %v1474, %v1747
      %v1784 = vadd.f32 %v1477, %v1750
      %v1785 = vld [vmem:[%s901] sm:$0xff]
      %v1786 = vld [vmem:[%s901 + $0x8] sm:$0xff]
      %v1787 = vld [vmem:[%s901 + $0x18] sm:$0xff]
      %v1788 = vld [vmem:[%s901 + $0x20] sm:$0xff]
      %v1789 = vld [vmem:[%s901 + $0x30] sm:$0xff]
      %v1790 = vld [vmem:[%s901 + $0x38] sm:$0xff]
      %v1791 = vld [vmem:[%s901 + $0x48] sm:$0xff]
      %v1792 = vld [vmem:[%s901 + $0x50] sm:$0xff]
      %v1793 = vld [vmem:[%s901 + $0x60] sm:$0xff]
      %v1794 = vld [vmem:[%s901 + $0x68] sm:$0xff]
      %v1795 = vld [vmem:[%s901 + $0x78] sm:$0xff]
      %v1796 = vld [vmem:[%s901 + $0x80] sm:$0xff]
      %v1797 = vld [vmem:[%s901 + $0x90] sm:$0xff]
      %v1798 = vld [vmem:[%s901 + $0x98] sm:$0xff]
      %v1799 = vld [vmem:[%s901 + $0xa8] sm:$0xff]
      %v1800 = vld [vmem:[%s901 + $0xb0] sm:$0xff]
      %v1801 = vld [vmem:[%s901 + $0xc0] sm:$0xff]
      %v1802 = vld [vmem:[%s901 + $0xc8] sm:$0xff]
      %v1803 = vld [vmem:[%s901 + $0xd8] sm:$0xff]
      %v1804 = vld [vmem:[%s901 + $0xe0] sm:$0xff]
      %v1805 = vld [vmem:[%s901 + $0xf0] sm:$0xff]
      %v1806 = vld [vmem:[%s901 + $0xf8] sm:$0xff]
      %v1807 = vld [vmem:[%s901 + $0x108] sm:$0xff]
      %v1808 = vld [vmem:[%s901 + $0x110] sm:$0xff]
      %v1809 = vld [vmem:[%s901 + $0x120] sm:$0xff]
      %v1810 = vld [vmem:[%s901 + $0x128] sm:$0xff]
      %v1811 = vld [vmem:[%s901 + $0x138] sm:$0xff]
      %v1812 = vld [vmem:[%s901 + $0x140] sm:$0xff]
      %v1813 = vld [vmem:[%s901 + $0x150] sm:$0xff]
      %v1814 = vld [vmem:[%s901 + $0x158] sm:$0xff]
      %v1815 = vld [vmem:[%s901 + $0x168] sm:$0xff]
      %v1816 = vld [vmem:[%s901 + $0x170] sm:$0xff]
      %v1817 = vpack.c.bf16 %v1786, %v1785
      %v1818 = vpack.c.bf16 %v1788, %v1787
      %v1819 = vpack.c.bf16 %v1790, %v1789
      %v1820 = vpack.c.bf16 %v1792, %v1791
      %v1821 = vpack.c.bf16 %v1794, %v1793
      %v1822 = vpack.c.bf16 %v1796, %v1795
      %v1823 = vpack.c.bf16 %v1798, %v1797
      %v1824 = vpack.c.bf16 %v1800, %v1799
      %v1825 = vpack.c.bf16 %v1802, %v1801
      %v1826 = vpack.c.bf16 %v1804, %v1803
      %v1827 = vpack.c.bf16 %v1806, %v1805
      %v1828 = vpack.c.bf16 %v1808, %v1807
      %v1829 = vpack.c.bf16 %v1810, %v1809
      %v1830 = vpack.c.bf16 %v1812, %v1811
      %v1831 = vpack.c.bf16 %v1814, %v1813
      %v1832 = vpack.c.bf16 %v1816, %v1815
      %v1833 = vld [vmem:[%s3 + $0xc0] sm:$0xf]
      %v1834 = vld [vmem:[%s3 + $0xc4] sm:$0xf]
      %v1835 = vld [vmem:[%s3 + $0xc8] sm:$0xf]
      %v1836 = vld [vmem:[%s3 + $0xcc] sm:$0xf]
      %v1837 = vld [vmem:[%s3 + $0xd0] sm:$0xf]
      %v1838 = vld [vmem:[%s3 + $0xd4] sm:$0xf]
      %v1839 = vld [vmem:[%s3 + $0xd8] sm:$0xf]
      %v1840 = vld [vmem:[%s3 + $0xdc] sm:$0xf]
      %v1841 = vld [vmem:[%s3 + $0xe0] sm:$0xf]
      %v1842 = vld [vmem:[%s3 + $0xe4] sm:$0xf]
      %v1843 = vld [vmem:[%s3 + $0xe8] sm:$0xf]
      %v1844 = vld [vmem:[%s3 + $0xec] sm:$0xf]
      %v1845 = vld [vmem:[%s3 + $0xf0] sm:$0xf]
      %v1846 = vld [vmem:[%s3 + $0xf4] sm:$0xf]
      %v1847 = vld [vmem:[%s3 + $0xf8] sm:$0xf]
      %v1848 = vld [vmem:[%s3 + $0xfc] sm:$0xf]
      %v1865 = vunpack.c.l.b16 %v1833
      %v1866 = vunpack.c.l.b16 %v1834
      %v1867 = vunpack.c.l.b16 %v1835
      %v1868 = vunpack.c.l.b16 %v1836
      %v1869 = vunpack.c.l.b16 %v1837
      %v1870 = vunpack.c.l.b16 %v1838
      %v1871 = vunpack.c.l.b16 %v1839
      %v1872 = vunpack.c.l.b16 %v1840
      %v1873 = vunpack.c.l.b16 %v1841
      %v1874 = vunpack.c.l.b16 %v1842
      %v1875 = vunpack.c.l.b16 %v1843
      %v1876 = vunpack.c.l.b16 %v1844
      %v1877 = vunpack.c.l.b16 %v1845
      %v1878 = vunpack.c.l.b16 %v1846
      %v1879 = vunpack.c.l.b16 %v1847
      %v1880 = vunpack.c.l.b16 %v1848
      %v1881 = vpack.c.b16 %v1866, %v1865
      %v1882 = vpack.c.b16 %v1868, %v1867
      %v1883 = vpack.c.b16 %v1870, %v1869
      %v1884 = vpack.c.b16 %v1872, %v1871
      %v1885 = vpack.c.b16 %v1874, %v1873
      %v1886 = vpack.c.b16 %v1876, %v1875
      %v1887 = vpack.c.b16 %v1878, %v1877
      %v1888 = vpack.c.b16 %v1880, %v1879
      %1897 = vmatprep.subr.bf16.mxu0 0
      %1898 = vmatpush1.bf16.msra.mxu0 %v1881
      %1899 = vmatprep.subr.bf16.mxu0 0
      %1900 = vmatpush1.bf16.msra.mxu0 %v1882
      %1901 = vmatprep.subr.bf16.mxu0 0
      %1902 = vmatpush1.bf16.msra.mxu0 %v1883
      %1903 = vmatprep.subr.bf16.mxu0 0
      %1904 = vmatpush1.bf16.msra.mxu0 %v1884
      %1905 = vmatprep.subr.bf16.mxu0 0
      %1906 = vmatpush1.bf16.msra.mxu0 %v1885
      %1907 = vmatprep.subr.bf16.mxu0 0
      %1908 = vmatpush1.bf16.msra.mxu0 %v1886
      %1909 = vmatprep.subr.bf16.mxu0 0
      %1910 = vmatpush1.bf16.msra.mxu0 %v1887
      %1911 = vmatprep.subr.bf16.mxu0 0
      %1912 = vmatpush1.bf16.msra.mxu0 %v1888
      %1913 = vmatprep.subr.bf16.mxu0 0
      %1914 = vmatpush1.bf16.msra.mxu0 0
      %1915 = vmatprep.subr.bf16.mxu0 0
      %1916 = vmatpush1.bf16.msra.mxu0 0
      %1917 = vmatprep.subr.bf16.mxu0 0
      %1918 = vmatpush1.bf16.msra.mxu0 0
      %1919 = vmatprep.subr.bf16.mxu0 0
      %1920 = vmatpush1.bf16.msra.mxu0 0
      %1921 = vmatprep.subr.bf16.mxu0 0
      %1922 = vmatpush1.bf16.msra.mxu0 0
      %1923 = vmatprep.subr.bf16.mxu0 0
      %1924 = vmatpush1.bf16.msra.mxu0 0
      %1925 = vmatprep.subr.bf16.mxu0 0
      %1926 = vmatpush1.bf16.msra.mxu0 0
      %1927 = vmatprep.subr.bf16.mxu0 0
      %1928 = vmatpush1.bf16.msra.mxu0 0
      %1929 = vmatprep.mubr.bf16.mxu0 0
      %1930 = vmatmul.mubr.bf16.gmra.mrb[0].mxu0 %v1817
      %v1931 = vpop.f32.mrb[0].mxu0
      %v1932 = vadd.f32 0.0, %v1931
      %v1933 = vpop.f32.mrb[0].mxu0
      %v1934 = vpop.f32.mrb[0].mxu0
      %v1935 = vadd.f32 0.0, %v1934
      %v1936 = vpop.f32.mrb[0].mxu0
      %1937 = vmatprep.mubr.bf16.mxu0 0
      %1938 = vmatmul.mubr.bf16.gmra.mrb[0].mxu0 %v1818
      %v1939 = vpop.f32.mrb[0].mxu0
      %v1940 = vadd.f32 0.0, %v1939
      %v1941 = vpop.f32.mrb[0].mxu0
      %v1942 = vpop.f32.mrb[0].mxu0
      %v1943 = vadd.f32 0.0, %v1942
      %v1944 = vpop.f32.mrb[0].mxu0
      %1945 = vmatprep.mubr.bf16.mxu0 0
      %1946 = vmatmul.mubr.bf16.gmra.mrb[0].mxu0 %v1819
      %v1947 = vpop.f32.mrb[0].mxu0
      %v1948 = vadd.f32 0.0, %v1947
      %v1949 = vpop.f32.mrb[0].mxu0
      %v1950 = vpop.f32.mrb[0].mxu0
      %v1951 = vadd.f32 0.0, %v1950
      %v1952 = vpop.f32.mrb[0].mxu0
      %1953 = vmatprep.mubr.bf16.mxu0 0
      %1954 = vmatmul.mubr.bf16.gmra.mrb[0].mxu0 %v1820
      %v1955 = vpop.f32.mrb[0].mxu0
      %v1956 = vadd.f32 0.0, %v1955
      %v1957 = vpop.f32.mrb[0].mxu0
      %v1958 = vpop.f32.mrb[0].mxu0
      %v1959 = vadd.f32 0.0, %v1958
      %v1960 = vpop.f32.mrb[0].mxu0
      %1961 = vmatprep.mubr.bf16.mxu0 0
      %1962 = vmatmul.mubr.bf16.gmra.mrb[0].mxu0 %v1821
      %v1963 = vpop.f32.mrb[0].mxu0
      %v1964 = vadd.f32 0.0, %v1963
      %v1965 = vpop.f32.mrb[0].mxu0
      %v1966 = vpop.f32.mrb[0].mxu0
      %v1967 = vadd.f32 0.0, %v1966
      %v1968 = vpop.f32.mrb[0].mxu0
      %1969 = vmatprep.mubr.bf16.mxu0 0
      %1970 = vmatmul.mubr.bf16.gmra.mrb[0].mxu0 %v1822
      %v1971 = vpop.f32.mrb[0].mxu0
      %v1972 = vadd.f32 0.0, %v1971
      %v1973 = vpop.f32.mrb[0].mxu0
      %v1974 = vpop.f32.mrb[0].mxu0
      %v1975 = vadd.f32 0.0, %v1974
      %v1976 = vpop.f32.mrb[0].mxu0
      %1977 = vmatprep.mubr.bf16.mxu0 0
      %1978 = vmatmul.mubr.bf16.gmra.mrb[0].mxu0 %v1823
      %v1979 = vpop.f32.mrb[0].mxu0
      %v1980 = vadd.f32 0.0, %v1979
      %v1981 = vpop.f32.mrb[0].mxu0
      %v1982 = vpop.f32.mrb[0].mxu0
      %v1983 = vadd.f32 0.0, %v1982
      %v1984 = vpop.f32.mrb[0].mxu0
      %1985 = vmatprep.mubr.bf16.mxu0 0
      %1986 = vmatmul.mubr.bf16.gmra.mrb[0].mxu0 %v1824
      %v1987 = vpop.f32.mrb[0].mxu0
      %v1988 = vadd.f32 0.0, %v1987
      %v1989 = vpop.f32.mrb[0].mxu0
      %v1990 = vpop.f32.mrb[0].mxu0
      %v1991 = vadd.f32 0.0, %v1990
      %v1992 = vpop.f32.mrb[0].mxu0
      %1993 = vmatprep.mubr.bf16.mxu0 0
      %1994 = vmatmul.mubr.bf16.gmra.mrb[0].mxu0 %v1825
      %v1995 = vpop.f32.mrb[0].mxu0
      %v1996 = vadd.f32 0.0, %v1995
      %v1997 = vpop.f32.mrb[0].mxu0
      %v1998 = vpop.f32.mrb[0].mxu0
      %v1999 = vadd.f32 0.0, %v1998
      %v2000 = vpop.f32.mrb[0].mxu0
      %2001 = vmatprep.mubr.bf16.mxu0 0
      %2002 = vmatmul.mubr.bf16.gmra.mrb[0].mxu0 %v1826
      %v2003 = vpop.f32.mrb[0].mxu0
      %v2004 = vadd.f32 0.0, %v2003
      %v2005 = vpop.f32.mrb[0].mxu0
      %v2006 = vpop.f32.mrb[0].mxu0
      %v2007 = vadd.f32 0.0, %v2006
      %v2008 = vpop.f32.mrb[0].mxu0
      %2009 = vmatprep.mubr.bf16.mxu0 0
      %2010 = vmatmul.mubr.bf16.gmra.mrb[0].mxu0 %v1827
      %v2011 = vpop.f32.mrb[0].mxu0
      %v2012 = vadd.f32 0.0, %v2011
      %v2013 = vpop.f32.mrb[0].mxu0
      %v2014 = vpop.f32.mrb[0].mxu0
      %v2015 = vadd.f32 0.0, %v2014
      %v2016 = vpop.f32.mrb[0].mxu0
      %2017 = vmatprep.mubr.bf16.mxu0 0
      %2018 = vmatmul.mubr.bf16.gmra.mrb[0].mxu0 %v1828
      %v2019 = vpop.f32.mrb[0].mxu0
      %v2020 = vadd.f32 0.0, %v2019
      %v2021 = vpop.f32.mrb[0].mxu0
      %v2022 = vpop.f32.mrb[0].mxu0
      %v2023 = vadd.f32 0.0, %v2022
      %v2024 = vpop.f32.mrb[0].mxu0
      %2025 = vmatprep.mubr.bf16.mxu0 0
      %2026 = vmatmul.mubr.bf16.gmra.mrb[0].mxu0 %v1829
      %v2027 = vpop.f32.mrb[0].mxu0
      %v2028 = vadd.f32 0.0, %v2027
      %v2029 = vpop.f32.mrb[0].mxu0
      %v2030 = vpop.f32.mrb[0].mxu0
      %v2031 = vadd.f32 0.0, %v2030
      %v2032 = vpop.f32.mrb[0].mxu0
      %2033 = vmatprep.mubr.bf16.mxu0 0
      %2034 = vmatmul.mubr.bf16.gmra.mrb[0].mxu0 %v1830
      %v2035 = vpop.f32.mrb[0].mxu0
      %v2036 = vadd.f32 0.0, %v2035
      %v2037 = vpop.f32.mrb[0].mxu0
      %v2038 = vpop.f32.mrb[0].mxu0
      %v2039 = vadd.f32 0.0, %v2038
      %v2040 = vpop.f32.mrb[0].mxu0
      %2041 = vmatprep.mubr.bf16.mxu0 0
      %2042 = vmatmul.mubr.bf16.gmra.mrb[0].mxu0 %v1831
      %v2043 = vpop.f32.mrb[0].mxu0
      %v2044 = vadd.f32 0.0, %v2043
      %v2045 = vpop.f32.mrb[0].mxu0
      %v2046 = vpop.f32.mrb[0].mxu0
      %v2047 = vadd.f32 0.0, %v2046
      %v2048 = vpop.f32.mrb[0].mxu0
      %2049 = vmatprep.mubr.bf16.mxu0 0
      %2050 = vmatmul.mubr.bf16.gmra.mrb[0].mxu0 %v1832
      %v2051 = vpop.f32.mrb[0].mxu0
      %v2052 = vadd.f32 0.0, %v2051
      %v2053 = vpop.f32.mrb[0].mxu0
      %v2054 = vpop.f32.mrb[0].mxu0
      %v2055 = vadd.f32 0.0, %v2054
      %v2056 = vpop.f32.mrb[0].mxu0
      %2057 = vdwg.mxu0
      %v2058 = vadd.f32 %v1753, %v1932
      %v2059 = vadd.f32 %v1754, %v1935
      %v2060 = vadd.f32 %v1755, %v1940
      %v2061 = vadd.f32 %v1756, %v1943
      %v2062 = vadd.f32 %v1757, %v1948
      %v2063 = vadd.f32 %v1758, %v1951
      %v2064 = vadd.f32 %v1759, %v1956
      %v2065 = vadd.f32 %v1760, %v1959
      %v2066 = vadd.f32 %v1761, %v1964
      %v2067 = vadd.f32 %v1762, %v1967
      %v2068 = vadd.f32 %v1763, %v1972
      %v2069 = vadd.f32 %v1764, %v1975
      %v2070 = vadd.f32 %v1765, %v1980
      %v2071 = vadd.f32 %v1766, %v1983
      %v2072 = vadd.f32 %v1767, %v1988
      %v2073 = vadd.f32 %v1768, %v1991
      %v2074 = vadd.f32 %v1769, %v1996
      %v2075 = vadd.f32 %v1770, %v1999
      %v2076 = vadd.f32 %v1771, %v2004
      %v2077 = vadd.f32 %v1772, %v2007
      %v2078 = vadd.f32 %v1773, %v2012
      %v2079 = vadd.f32 %v1774, %v2015
      %v2080 = vadd.f32 %v1775, %v2020
      %v2081 = vadd.f32 %v1776, %v2023
      %v2082 = vadd.f32 %v1777, %v2028
      %v2083 = vadd.f32 %v1778, %v2031
      %v2084 = vadd.f32 %v1779, %v2036
      %v2085 = vadd.f32 %v1780, %v2039
      %v2086 = vadd.f32 %v1781, %v2044
      %v2087 = vadd.f32 %v1782, %v2047
      %v2088 = vadd.f32 %v1783, %v2052
      %v2089 = vadd.f32 %v1784, %v2055
      %v2090 = vld [vmem:[%s901 + $0x1] sm:$0xff]
      %v2091 = vld [vmem:[%s901 + $0x9] sm:$0xff]
      %v2092 = vld [vmem:[%s901 + $0x19] sm:$0xff]
      %v2093 = vld [vmem:[%s901 + $0x21] sm:$0xff]
      %v2094 = vld [vmem:[%s901 + $0x31] sm:$0xff]
      %v2095 = vld [vmem:[%s901 + $0x39] sm:$0xff]
      %v2096 = vld [vmem:[%s901 + $0x49] sm:$0xff]
      %v2097 = vld [vmem:[%s901 + $0x51] sm:$0xff]
      %v2098 = vld [vmem:[%s901 + $0x61] sm:$0xff]
      %v2099 = vld [vmem:[%s901 + $0x69] sm:$0xff]
      %v2100 = vld [vmem:[%s901 + $0x79] sm:$0xff]
      %v2101 = vld [vmem:[%s901 + $0x81] sm:$0xff]
      %v2102 = vld [vmem:[%s901 + $0x91] sm:$0xff]
      %v2103 = vld [vmem:[%s901 + $0x99] sm:$0xff]
      %v2104 = vld [vmem:[%s901 + $0xa9] sm:$0xff]
      %v2105 = vld [vmem:[%s901 + $0xb1] sm:$0xff]
      %v2106 = vld [vmem:[%s901 + $0xc1] sm:$0xff]
      %v2107 = vld [vmem:[%s901 + $0xc9] sm:$0xff]
      %v2108 = vld [vmem:[%s901 + $0xd9] sm:$0xff]
      %v2109 = vld [vmem:[%s901 + $0xe1] sm:$0xff]
      %v2110 = vld [vmem:[%s901 + $0xf1] sm:$0xff]
      %v2111 = vld [vmem:[%s901 + $0xf9] sm:$0xff]
      %v2112 = vld [vmem:[%s901 + $0x109] sm:$0xff]
      %v2113 = vld [vmem:[%s901 + $0x111] sm:$0xff]
      %v2114 = vld [vmem:[%s901 + $0x121] sm:$0xff]
      %v2115 = vld [vmem:[%s901 + $0x129] sm:$0xff]
      %v2116 = vld [vmem:[%s901 + $0x139] sm:$0xff]
      %v2117 = vld [vmem:[%s901 + $0x141] sm:$0xff]
      %v2118 = vld [vmem:[%s901 + $0x151] sm:$0xff]
      %v2119 = vld [vmem:[%s901 + $0x159] sm:$0xff]
      %v2120 = vld [vmem:[%s901 + $0x169] sm:$0xff]
      %v2121 = vld [vmem:[%s901 + $0x171] sm:$0xff]
      %v2122 = vpack.c.bf16 %v2091, %v2090
      %v2123 = vpack.c.bf16 %v2093, %v2092
      %v2124 = vpack.c.bf16 %v2095, %v2094
      %v2125 = vpack.c.bf16 %v2097, %v2096
      %v2126 = vpack.c.bf16 %v2099, %v2098
      %v2127 = vpack.c.bf16 %v2101, %v2100
      %v2128 = vpack.c.bf16 %v2103, %v2102
      %v2129 = vpack.c.bf16 %v2105, %v2104
      %v2130 = vpack.c.bf16 %v2107, %v2106
      %v2131 = vpack.c.bf16 %v2109, %v2108
      %v2132 = vpack.c.bf16 %v2111, %v2110
      %v2133 = vpack.c.bf16 %v2113, %v2112
      %v2134 = vpack.c.bf16 %v2115, %v2114
      %v2135 = vpack.c.bf16 %v2117, %v2116
      %v2136 = vpack.c.bf16 %v2119, %v2118
      %v2137 = vpack.c.bf16 %v2121, %v2120
      %v2138 = vld [vmem:[%s3 + $0x100] sm:$0xf]
      %v2139 = vld [vmem:[%s3 + $0x104] sm:$0xf]
      %v2140 = vld [vmem:[%s3 + $0x108] sm:$0xf]
      %v2141 = vld [vmem:[%s3 + $0x10c] sm:$0xf]
      %v2142 = vld [vmem:[%s3 + $0x110] sm:$0xf]
      %v2143 = vld [vmem:[%s3 + $0x114] sm:$0xf]
      %v2144 = vld [vmem:[%s3 + $0x118] sm:$0xf]
      %v2145 = vld [vmem:[%s3 + $0x11c] sm:$0xf]
      %v2146 = vld [vmem:[%s3 + $0x120] sm:$0xf]
      %v2147 = vld [vmem:[%s3 + $0x124] sm:$0xf]
      %v2148 = vld [vmem:[%s3 + $0x128] sm:$0xf]
      %v2149 = vld [vmem:[%s3 + $0x12c] sm:$0xf]
      %v2150 = vld [vmem:[%s3 + $0x130] sm:$0xf]
      %v2151 = vld [vmem:[%s3 + $0x134] sm:$0xf]
      %v2152 = vld [vmem:[%s3 + $0x138] sm:$0xf]
      %v2153 = vld [vmem:[%s3 + $0x13c] sm:$0xf]
      %v2170 = vunpack.c.l.b16 %v2138
      %v2171 = vunpack.c.l.b16 %v2139
      %v2172 = vunpack.c.l.b16 %v2140
      %v2173 = vunpack.c.l.b16 %v2141
      %v2174 = vunpack.c.l.b16 %v2142
      %v2175 = vunpack.c.l.b16 %v2143
      %v2176 = vunpack.c.l.b16 %v2144
      %v2177 = vunpack.c.l.b16 %v2145
      %v2178 = vunpack.c.l.b16 %v2146
      %v2179 = vunpack.c.l.b16 %v2147
      %v2180 = vunpack.c.l.b16 %v2148
      %v2181 = vunpack.c.l.b16 %v2149
      %v2182 = vunpack.c.l.b16 %v2150
      %v2183 = vunpack.c.l.b16 %v2151
      %v2184 = vunpack.c.l.b16 %v2152
      %v2185 = vunpack.c.l.b16 %v2153
      %v2186 = vpack.c.b16 %v2171, %v2170
      %v2187 = vpack.c.b16 %v2173, %v2172
      %v2188 = vpack.c.b16 %v2175, %v2174
      %v2189 = vpack.c.b16 %v2177, %v2176
      %v2190 = vpack.c.b16 %v2179, %v2178
      %v2191 = vpack.c.b16 %v2181, %v2180
      %v2192 = vpack.c.b16 %v2183, %v2182
      %v2193 = vpack.c.b16 %v2185, %v2184
      %2202 = vmatprep.subr.bf16.mxu0 0
      %2203 = vmatpush1.bf16.msra.mxu0 %v2186
      %2204 = vmatprep.subr.bf16.mxu0 0
      %2205 = vmatpush1.bf16.msra.mxu0 %v2187
      %2206 = vmatprep.subr.bf16.mxu0 0
      %2207 = vmatpush1.bf16.msra.mxu0 %v2188
      %2208 = vmatprep.subr.bf16.mxu0 0
      %2209 = vmatpush1.bf16.msra.mxu0 %v2189
      %2210 = vmatprep.subr.bf16.mxu0 0
      %2211 = vmatpush1.bf16.msra.mxu0 %v2190
      %2212 = vmatprep.subr.bf16.mxu0 0
      %2213 = vmatpush1.bf16.msra.mxu0 %v2191
      %2214 = vmatprep.subr.bf16.mxu0 0
      %2215 = vmatpush1.bf16.msra.mxu0 %v2192
      %2216 = vmatprep.subr.bf16.mxu0 0
      %2217 = vmatpush1.bf16.msra.mxu0 %v2193
      %2218 = vmatprep.subr.bf16.mxu0 0
      %2219 = vmatpush1.bf16.msra.mxu0 0
      %2220 = vmatprep.subr.bf16.mxu0 0
      %2221 = vmatpush1.bf16.msra.mxu0 0
      %2222 = vmatprep.subr.bf16.mxu0 0
      %2223 = vmatpush1.bf16.msra.mxu0 0
      %2224 = vmatprep.subr.bf16.mxu0 0
      %2225 = vmatpush1.bf16.msra.mxu0 0
      %2226 = vmatprep.subr.bf16.mxu0 0
      %2227 = vmatpush1.bf16.msra.mxu0 0
      %2228 = vmatprep.subr.bf16.mxu0 0
      %2229 = vmatpush1.bf16.msra.mxu0 0
      %2230 = vmatprep.subr.bf16.mxu0 0
      %2231 = vmatpush1.bf16.msra.mxu0 0
      %2232 = vmatprep.subr.bf16.mxu0 0
      %2233 = vmatpush1.bf16.msra.mxu0 0
      %2234 = vmatprep.mubr.bf16.mxu0 0
      %2235 = vmatmul.mubr.bf16.gmra.mrb[0].mxu0 %v2122
      %v2236 = vpop.f32.mrb[0].mxu0
      %v2237 = vadd.f32 0.0, %v2236
      %v2238 = vpop.f32.mrb[0].mxu0
      %v2239 = vpop.f32.mrb[0].mxu0
      %v2240 = vadd.f32 0.0, %v2239
      %v2241 = vpop.f32.mrb[0].mxu0
      %2242 = vmatprep.mubr.bf16.mxu0 0
      %2243 = vmatmul.mubr.bf16.gmra.mrb[0].mxu0 %v2123
      %v2244 = vpop.f32.mrb[0].mxu0
      %v2245 = vadd.f32 0.0, %v2244
      %v2246 = vpop.f32.mrb[0].mxu0
      %v2247 = vpop.f32.mrb[0].mxu0
      %v2248 = vadd.f32 0.0, %v2247
      %v2249 = vpop.f32.mrb[0].mxu0
      %2250 = vmatprep.mubr.bf16.mxu0 0
      %2251 = vmatmul.mubr.bf16.gmra.mrb[0].mxu0 %v2124
      %v2252 = vpop.f32.mrb[0].mxu0
      %v2253 = vadd.f32 0.0, %v2252
      %v2254 = vpop.f32.mrb[0].mxu0
      %v2255 = vpop.f32.mrb[0].mxu0
      %v2256 = vadd.f32 0.0, %v2255
      %v2257 = vpop.f32.mrb[0].mxu0
      %2258 = vmatprep.mubr.bf16.mxu0 0
      %2259 = vmatmul.mubr.bf16.gmra.mrb[0].mxu0 %v2125
      %v2260 = vpop.f32.mrb[0].mxu0
      %v2261 = vadd.f32 0.0, %v2260
      %v2262 = vpop.f32.mrb[0].mxu0
      %v2263 = vpop.f32.mrb[0].mxu0
      %v2264 = vadd.f32 0.0, %v2263
      %v2265 = vpop.f32.mrb[0].mxu0
      %2266 = vmatprep.mubr.bf16.mxu0 0
      %2267 = vmatmul.mubr.bf16.gmra.mrb[0].mxu0 %v2126
      %v2268 = vpop.f32.mrb[0].mxu0
      %v2269 = vadd.f32 0.0, %v2268
      %v2270 = vpop.f32.mrb[0].mxu0
      %v2271 = vpop.f32.mrb[0].mxu0
      %v2272 = vadd.f32 0.0, %v2271
      %v2273 = vpop.f32.mrb[0].mxu0
      %2274 = vmatprep.mubr.bf16.mxu0 0
      %2275 = vmatmul.mubr.bf16.gmra.mrb[0].mxu0 %v2127
      %v2276 = vpop.f32.mrb[0].mxu0
      %v2277 = vadd.f32 0.0, %v2276
      %v2278 = vpop.f32.mrb[0].mxu0
      %v2279 = vpop.f32.mrb[0].mxu0
      %v2280 = vadd.f32 0.0, %v2279
      %v2281 = vpop.f32.mrb[0].mxu0
      %2282 = vmatprep.mubr.bf16.mxu0 0
      %2283 = vmatmul.mubr.bf16.gmra.mrb[0].mxu0 %v2128
      %v2284 = vpop.f32.mrb[0].mxu0
      %v2285 = vadd.f32 0.0, %v2284
      %v2286 = vpop.f32.mrb[0].mxu0
      %v2287 = vpop.f32.mrb[0].mxu0
      %v2288 = vadd.f32 0.0, %v2287
      %v2289 = vpop.f32.mrb[0].mxu0
      %2290 = vmatprep.mubr.bf16.mxu0 0
      %2291 = vmatmul.mubr.bf16.gmra.mrb[0].mxu0 %v2129
      %v2292 = vpop.f32.mrb[0].mxu0
      %v2293 = vadd.f32 0.0, %v2292
      %v2294 = vpop.f32.mrb[0].mxu0
      %v2295 = vpop.f32.mrb[0].mxu0
      %v2296 = vadd.f32 0.0, %v2295
      %v2297 = vpop.f32.mrb[0].mxu0
      %2298 = vmatprep.mubr.bf16.mxu0 0
      %2299 = vmatmul.mubr.bf16.gmra.mrb[0].mxu0 %v2130
      %v2300 = vpop.f32.mrb[0].mxu0
      %v2301 = vadd.f32 0.0, %v2300
      %v2302 = vpop.f32.mrb[0].mxu0
      %v2303 = vpop.f32.mrb[0].mxu0
      %v2304 = vadd.f32 0.0, %v2303
      %v2305 = vpop.f32.mrb[0].mxu0
      %2306 = vmatprep.mubr.bf16.mxu0 0
      %2307 = vmatmul.mubr.bf16.gmra.mrb[0].mxu0 %v2131
      %v2308 = vpop.f32.mrb[0].mxu0
      %v2309 = vadd.f32 0.0, %v2308
      %v2310 = vpop.f32.mrb[0].mxu0
      %v2311 = vpop.f32.mrb[0].mxu0
      %v2312 = vadd.f32 0.0, %v2311
      %v2313 = vpop.f32.mrb[0].mxu0
      %2314 = vmatprep.mubr.bf16.mxu0 0
      %2315 = vmatmul.mubr.bf16.gmra.mrb[0].mxu0 %v2132
      %v2316 = vpop.f32.mrb[0].mxu0
      %v2317 = vadd.f32 0.0, %v2316
      %v2318 = vpop.f32.mrb[0].mxu0
      %v2319 = vpop.f32.mrb[0].mxu0
      %v2320 = vadd.f32 0.0, %v2319
      %v2321 = vpop.f32.mrb[0].mxu0
      %2322 = vmatprep.mubr.bf16.mxu0 0
      %2323 = vmatmul.mubr.bf16.gmra.mrb[0].mxu0 %v2133
      %v2324 = vpop.f32.mrb[0].mxu0
      %v2325 = vadd.f32 0.0, %v2324
      %v2326 = vpop.f32.mrb[0].mxu0
      %v2327 = vpop.f32.mrb[0].mxu0
      %v2328 = vadd.f32 0.0, %v2327
      %v2329 = vpop.f32.mrb[0].mxu0
      %2330 = vmatprep.mubr.bf16.mxu0 0
      %2331 = vmatmul.mubr.bf16.gmra.mrb[0].mxu0 %v2134
      %v2332 = vpop.f32.mrb[0].mxu0
      %v2333 = vadd.f32 0.0, %v2332
      %v2334 = vpop.f32.mrb[0].mxu0
      %v2335 = vpop.f32.mrb[0].mxu0
      %v2336 = vadd.f32 0.0, %v2335
      %v2337 = vpop.f32.mrb[0].mxu0
      %2338 = vmatprep.mubr.bf16.mxu0 0
      %2339 = vmatmul.mubr.bf16.gmra.mrb[0].mxu0 %v2135
      %v2340 = vpop.f32.mrb[0].mxu0
      %v2341 = vadd.f32 0.0, %v2340
      %v2342 = vpop.f32.mrb[0].mxu0
      %v2343 = vpop.f32.mrb[0].mxu0
      %v2344 = vadd.f32 0.0, %v2343
      %v2345 = vpop.f32.mrb[0].mxu0
      %2346 = vmatprep.mubr.bf16.mxu0 0
      %2347 = vmatmul.mubr.bf16.gmra.mrb[0].mxu0 %v2136
      %v2348 = vpop.f32.mrb[0].mxu0
      %v2349 = vadd.f32 0.0, %v2348
      %v2350 = vpop.f32.mrb[0].mxu0
      %v2351 = vpop.f32.mrb[0].mxu0
      %v2352 = vadd.f32 0.0, %v2351
      %v2353 = vpop.f32.mrb[0].mxu0
      %2354 = vmatprep.mubr.bf16.mxu0 0
      %2355 = vmatmul.mubr.bf16.gmra.mrb[0].mxu0 %v2137
      %v2356 = vpop.f32.mrb[0].mxu0
      %v2357 = vadd.f32 0.0, %v2356
      %v2358 = vpop.f32.mrb[0].mxu0
      %v2359 = vpop.f32.mrb[0].mxu0
      %v2360 = vadd.f32 0.0, %v2359
      %v2361 = vpop.f32.mrb[0].mxu0
      %2362 = vdwg.mxu0
      %v2363 = vadd.f32 %v2058, %v2237
      %v2364 = vadd.f32 %v2059, %v2240
      %v2365 = vadd.f32 %v2060, %v2245
      %v2366 = vadd.f32 %v2061, %v2248
      %v2367 = vadd.f32 %v2062, %v2253
      %v2368 = vadd.f32 %v2063, %v2256
      %v2369 = vadd.f32 %v2064, %v2261
      %v2370 = vadd.f32 %v2065, %v2264
      %v2371 = vadd.f32 %v2066, %v2269
      %v2372 = vadd.f32 %v2067, %v2272
      %v2373 = vadd.f32 %v2068, %v2277
      %v2374 = vadd.f32 %v2069, %v2280
      %v2375 = vadd.f32 %v2070, %v2285
      %v2376 = vadd.f32 %v2071, %v2288
      %v2377 = vadd.f32 %v2072, %v2293
      %v2378 = vadd.f32 %v2073, %v2296
      %v2379 = vadd.f32 %v2074, %v2301
      %v2380 = vadd.f32 %v2075, %v2304
      %v2381 = vadd.f32 %v2076, %v2309
      %v2382 = vadd.f32 %v2077, %v2312
      %v2383 = vadd.f32 %v2078, %v2317
      %v2384 = vadd.f32 %v2079, %v2320
      %v2385 = vadd.f32 %v2080, %v2325
      %v2386 = vadd.f32 %v2081, %v2328
      %v2387 = vadd.f32 %v2082, %v2333
      %v2388 = vadd.f32 %v2083, %v2336
      %v2389 = vadd.f32 %v2084, %v2341
      %v2390 = vadd.f32 %v2085, %v2344
      %v2391 = vadd.f32 %v2086, %v2349
      %v2392 = vadd.f32 %v2087, %v2352
      %v2393 = vadd.f32 %v2088, %v2357
      %v2394 = vadd.f32 %v2089, %v2360
      %v2395 = vld [vmem:[%s901 + $0x2] sm:$0xff]
      %v2396 = vld [vmem:[%s901 + $0xa] sm:$0xff]
      %v2397 = vld [vmem:[%s901 + $0x1a] sm:$0xff]
      %v2398 = vld [vmem:[%s901 + $0x22] sm:$0xff]
      %v2399 = vld [vmem:[%s901 + $0x32] sm:$0xff]
      %v2400 = vld [vmem:[%s901 + $0x3a] sm:$0xff]
      %v2401 = vld [vmem:[%s901 + $0x4a] sm:$0xff]
      %v2402 = vld [vmem:[%s901 + $0x52] sm:$0xff]
      %v2403 = vld [vmem:[%s901 + $0x62] sm:$0xff]
      %v2404 = vld [vmem:[%s901 + $0x6a] sm:$0xff]
      %v2405 = vld [vmem:[%s901 + $0x7a] sm:$0xff]
      %v2406 = vld [vmem:[%s901 + $0x82] sm:$0xff]
      %v2407 = vld [vmem:[%s901 + $0x92] sm:$0xff]
      %v2408 = vld [vmem:[%s901 + $0x9a] sm:$0xff]
      %v2409 = vld [vmem:[%s901 + $0xaa] sm:$0xff]
      %v2410 = vld [vmem:[%s901 + $0xb2] sm:$0xff]
      %v2411 = vld [vmem:[%s901 + $0xc2] sm:$0xff]
      %v2412 = vld [vmem:[%s901 + $0xca] sm:$0xff]
      %v2413 = vld [vmem:[%s901 + $0xda] sm:$0xff]
      %v2414 = vld [vmem:[%s901 + $0xe2] sm:$0xff]
      %v2415 = vld [vmem:[%s901 + $0xf2] sm:$0xff]
      %v2416 = vld [vmem:[%s901 + $0xfa] sm:$0xff]
      %v2417 = vld [vmem:[%s901 + $0x10a] sm:$0xff]
      %v2418 = vld [vmem:[%s901 + $0x112] sm:$0xff]
      %v2419 = vld [vmem:[%s901 + $0x122] sm:$0xff]
      %v2420 = vld [vmem:[%s901 + $0x12a] sm:$0xff]
      %v2421 = vld [vmem:[%s901 + $0x13a] sm:$0xff]
      %v2422 = vld [vmem:[%s901 + $0x142] sm:$0xff]
      %v2423 = vld [vmem:[%s901 + $0x152] sm:$0xff]
      %v2424 = vld [vmem:[%s901 + $0x15a] sm:$0xff]
      %v2425 = vld [vmem:[%s901 + $0x16a] sm:$0xff]
      %v2426 = vld [vmem:[%s901 + $0x172] sm:$0xff]
      %v2427 = vpack.c.bf16 %v2396, %v2395
      %v2428 = vpack.c.bf16 %v2398, %v2397
      %v2429 = vpack.c.bf16 %v2400, %v2399
      %v2430 = vpack.c.bf16 %v2402, %v2401
      %v2431 = vpack.c.bf16 %v2404, %v2403
      %v2432 = vpack.c.bf16 %v2406, %v2405
      %v2433 = vpack.c.bf16 %v2408, %v2407
      %v2434 = vpack.c.bf16 %v2410, %v2409
      %v2435 = vpack.c.bf16 %v2412, %v2411
      %v2436 = vpack.c.bf16 %v2414, %v2413
      %v2437 = vpack.c.bf16 %v2416, %v2415
      %v2438 = vpack.c.bf16 %v2418, %v2417
      %v2439 = vpack.c.bf16 %v2420, %v2419
      %v2440 = vpack.c.bf16 %v2422, %v2421
      %v2441 = vpack.c.bf16 %v2424, %v2423
      %v2442 = vpack.c.bf16 %v2426, %v2425
      %v2443 = vld [vmem:[%s3 + $0x140] sm:$0xf]
      %v2444 = vld [vmem:[%s3 + $0x144] sm:$0xf]
      %v2445 = vld [vmem:[%s3 + $0x148] sm:$0xf]
      %v2446 = vld [vmem:[%s3 + $0x14c] sm:$0xf]
      %v2447 = vld [vmem:[%s3 + $0x150] sm:$0xf]
      %v2448 = vld [vmem:[%s3 + $0x154] sm:$0xf]
      %v2449 = vld [vmem:[%s3 + $0x158] sm:$0xf]
      %v2450 = vld [vmem:[%s3 + $0x15c] sm:$0xf]
      %v2451 = vld [vmem:[%s3 + $0x160] sm:$0xf]
      %v2452 = vld [vmem:[%s3 + $0x164] sm:$0xf]
      %v2453 = vld [vmem:[%s3 + $0x168] sm:$0xf]
      %v2454 = vld [vmem:[%s3 + $0x16c] sm:$0xf]
      %v2455 = vld [vmem:[%s3 + $0x170] sm:$0xf]
      %v2456 = vld [vmem:[%s3 + $0x174] sm:$0xf]
      %v2457 = vld [vmem:[%s3 + $0x178] sm:$0xf]
      %v2458 = vld [vmem:[%s3 + $0x17c] sm:$0xf]
      %v2475 = vunpack.c.l.b16 %v2443
      %v2476 = vunpack.c.l.b16 %v2444
      %v2477 = vunpack.c.l.b16 %v2445
      %v2478 = vunpack.c.l.b16 %v2446
      %v2479 = vunpack.c.l.b16 %v2447
      %v2480 = vunpack.c.l.b16 %v2448
      %v2481 = vunpack.c.l.b16 %v2449
      %v2482 = vunpack.c.l.b16 %v2450
      %v2483 = vunpack.c.l.b16 %v2451
      %v2484 = vunpack.c.l.b16 %v2452
      %v2485 = vunpack.c.l.b16 %v2453
      %v2486 = vunpack.c.l.b16 %v2454
      %v2487 = vunpack.c.l.b16 %v2455
      %v2488 = vunpack.c.l.b16 %v2456
      %v2489 = vunpack.c.l.b16 %v2457
      %v2490 = vunpack.c.l.b16 %v2458
      %v2491 = vpack.c.b16 %v2476, %v2475
      %v2492 = vpack.c.b16 %v2478, %v2477
      %v2493 = vpack.c.b16 %v2480, %v2479
      %v2494 = vpack.c.b16 %v2482, %v2481
      %v2495 = vpack.c.b16 %v2484, %v2483
      %v2496 = vpack.c.b16 %v2486, %v2485
      %v2497 = vpack.c.b16 %v2488, %v2487
      %v2498 = vpack.c.b16 %v2490, %v2489
      %2507 = vmatprep.subr.bf16.mxu0 0
      %2508 = vmatpush1.bf16.msra.mxu0 %v2491
      %2509 = vmatprep.subr.bf16.mxu0 0
      %2510 = vmatpush1.bf16.msra.mxu0 %v2492
      %2511 = vmatprep.subr.bf16.mxu0 0
      %2512 = vmatpush1.bf16.msra.mxu0 %v2493
      %2513 = vmatprep.subr.bf16.mxu0 0
      %2514 = vmatpush1.bf16.msra.mxu0 %v2494
      %2515 = vmatprep.subr.bf16.mxu0 0
      %2516 = vmatpush1.bf16.msra.mxu0 %v2495
      %2517 = vmatprep.subr.bf16.mxu0 0
      %2518 = vmatpush1.bf16.msra.mxu0 %v2496
      %2519 = vmatprep.subr.bf16.mxu0 0
      %2520 = vmatpush1.bf16.msra.mxu0 %v2497
      %2521 = vmatprep.subr.bf16.mxu0 0
      %2522 = vmatpush1.bf16.msra.mxu0 %v2498
      %2523 = vmatprep.subr.bf16.mxu0 0
      %2524 = vmatpush1.bf16.msra.mxu0 0
      %2525 = vmatprep.subr.bf16.mxu0 0
      %2526 = vmatpush1.bf16.msra.mxu0 0
      %2527 = vmatprep.subr.bf16.mxu0 0
      %2528 = vmatpush1.bf16.msra.mxu0 0
      %2529 = vmatprep.subr.bf16.mxu0 0
      %2530 = vmatpush1.bf16.msra.mxu0 0
      %2531 = vmatprep.subr.bf16.mxu0 0
      %2532 = vmatpush1.bf16.msra.mxu0 0
      %2533 = vmatprep.subr.bf16.mxu0 0
      %2534 = vmatpush1.bf16.msra.mxu0 0
      %2535 = vmatprep.subr.bf16.mxu0 0
      %2536 = vmatpush1.bf16.msra.mxu0 0
      %2537 = vmatprep.subr.bf16.mxu0 0
      %2538 = vmatpush1.bf16.msra.mxu0 0
      %2539 = vmatprep.mubr.bf16.mxu0 0
      %2540 = vmatmul.mubr.bf16.gmra.mrb[0].mxu0 %v2427
      %v2541 = vpop.f32.mrb[0].mxu0
      %v2542 = vadd.f32 0.0, %v2541
      %v2543 = vpop.f32.mrb[0].mxu0
      %v2544 = vpop.f32.mrb[0].mxu0
      %v2545 = vadd.f32 0.0, %v2544
      %v2546 = vpop.f32.mrb[0].mxu0
      %2547 = vmatprep.mubr.bf16.mxu0 0
      %2548 = vmatmul.mubr.bf16.gmra.mrb[0].mxu0 %v2428
      %v2549 = vpop.f32.mrb[0].mxu0
      %v2550 = vadd.f32 0.0, %v2549
      %v2551 = vpop.f32.mrb[0].mxu0
      %v2552 = vpop.f32.mrb[0].mxu0
      %v2553 = vadd.f32 0.0, %v2552
      %v2554 = vpop.f32.mrb[0].mxu0
      %2555 = vmatprep.mubr.bf16.mxu0 0
      %2556 = vmatmul.mubr.bf16.gmra.mrb[0].mxu0 %v2429
      %v2557 = vpop.f32.mrb[0].mxu0
      %v2558 = vadd.f32 0.0, %v2557
      %v2559 = vpop.f32.mrb[0].mxu0
      %v2560 = vpop.f32.mrb[0].mxu0
      %v2561 = vadd.f32 0.0, %v2560
      %v2562 = vpop.f32.mrb[0].mxu0
      %2563 = vmatprep.mubr.bf16.mxu0 0
      %2564 = vmatmul.mubr.bf16.gmra.mrb[0].mxu0 %v2430
      %v2565 = vpop.f32.mrb[0].mxu0
      %v2566 = vadd.f32 0.0, %v2565
      %v2567 = vpop.f32.mrb[0].mxu0
      %v2568 = vpop.f32.mrb[0].mxu0
      %v2569 = vadd.f32 0.0, %v2568
      %v2570 = vpop.f32.mrb[0].mxu0
      %2571 = vmatprep.mubr.bf16.mxu0 0
      %2572 = vmatmul.mubr.bf16.gmra.mrb[0].mxu0 %v2431
      %v2573 = vpop.f32.mrb[0].mxu0
      %v2574 = vadd.f32 0.0, %v2573
      %v2575 = vpop.f32.mrb[0].mxu0
      %v2576 = vpop.f32.mrb[0].mxu0
      %v2577 = vadd.f32 0.0, %v2576
      %v2578 = vpop.f32.mrb[0].mxu0
      %2579 = vmatprep.mubr.bf16.mxu0 0
      %2580 = vmatmul.mubr.bf16.gmra.mrb[0].mxu0 %v2432
      %v2581 = vpop.f32.mrb[0].mxu0
      %v2582 = vadd.f32 0.0, %v2581
      %v2583 = vpop.f32.mrb[0].mxu0
      %v2584 = vpop.f32.mrb[0].mxu0
      %v2585 = vadd.f32 0.0, %v2584
      %v2586 = vpop.f32.mrb[0].mxu0
      %2587 = vmatprep.mubr.bf16.mxu0 0
      %2588 = vmatmul.mubr.bf16.gmra.mrb[0].mxu0 %v2433
      %v2589 = vpop.f32.mrb[0].mxu0
      %v2590 = vadd.f32 0.0, %v2589
      %v2591 = vpop.f32.mrb[0].mxu0
      %v2592 = vpop.f32.mrb[0].mxu0
      %v2593 = vadd.f32 0.0, %v2592
      %v2594 = vpop.f32.mrb[0].mxu0
      %2595 = vmatprep.mubr.bf16.mxu0 0
      %2596 = vmatmul.mubr.bf16.gmra.mrb[0].mxu0 %v2434
      %v2597 = vpop.f32.mrb[0].mxu0
      %v2598 = vadd.f32 0.0, %v2597
      %v2599 = vpop.f32.mrb[0].mxu0
      %v2600 = vpop.f32.mrb[0].mxu0
      %v2601 = vadd.f32 0.0, %v2600
      %v2602 = vpop.f32.mrb[0].mxu0
      %2603 = vmatprep.mubr.bf16.mxu0 0
      %2604 = vmatmul.mubr.bf16.gmra.mrb[0].mxu0 %v2435
      %v2605 = vpop.f32.mrb[0].mxu0
      %v2606 = vadd.f32 0.0, %v2605
      %v2607 = vpop.f32.mrb[0].mxu0
      %v2608 = vpop.f32.mrb[0].mxu0
      %v2609 = vadd.f32 0.0, %v2608
      %v2610 = vpop.f32.mrb[0].mxu0
      %2611 = vmatprep.mubr.bf16.mxu0 0
      %2612 = vmatmul.mubr.bf16.gmra.mrb[0].mxu0 %v2436
      %v2613 = vpop.f32.mrb[0].mxu0
      %v2614 = vadd.f32 0.0, %v2613
      %v2615 = vpop.f32.mrb[0].mxu0
      %v2616 = vpop.f32.mrb[0].mxu0
      %v2617 = vadd.f32 0.0, %v2616
      %v2618 = vpop.f32.mrb[0].mxu0
      %2619 = vmatprep.mubr.bf16.mxu0 0
      %2620 = vmatmul.mubr.bf16.gmra.mrb[0].mxu0 %v2437
      %v2621 = vpop.f32.mrb[0].mxu0
      %v2622 = vadd.f32 0.0, %v2621
      %v2623 = vpop.f32.mrb[0].mxu0
      %v2624 = vpop.f32.mrb[0].mxu0
      %v2625 = vadd.f32 0.0, %v2624
      %v2626 = vpop.f32.mrb[0].mxu0
      %2627 = vmatprep.mubr.bf16.mxu0 0
      %2628 = vmatmul.mubr.bf16.gmra.mrb[0].mxu0 %v2438
      %v2629 = vpop.f32.mrb[0].mxu0
      %v2630 = vadd.f32 0.0, %v2629
      %v2631 = vpop.f32.mrb[0].mxu0
      %v2632 = vpop.f32.mrb[0].mxu0
      %v2633 = vadd.f32 0.0, %v2632
      %v2634 = vpop.f32.mrb[0].mxu0
      %2635 = vmatprep.mubr.bf16.mxu0 0
      %2636 = vmatmul.mubr.bf16.gmra.mrb[0].mxu0 %v2439
      %v2637 = vpop.f32.mrb[0].mxu0
      %v2638 = vadd.f32 0.0, %v2637
      %v2639 = vpop.f32.mrb[0].mxu0
      %v2640 = vpop.f32.mrb[0].mxu0
      %v2641 = vadd.f32 0.0, %v2640
      %v2642 = vpop.f32.mrb[0].mxu0
      %2643 = vmatprep.mubr.bf16.mxu0 0
      %2644 = vmatmul.mubr.bf16.gmra.mrb[0].mxu0 %v2440
      %v2645 = vpop.f32.mrb[0].mxu0
      %v2646 = vadd.f32 0.0, %v2645
      %v2647 = vpop.f32.mrb[0].mxu0
      %v2648 = vpop.f32.mrb[0].mxu0
      %v2649 = vadd.f32 0.0, %v2648
      %v2650 = vpop.f32.mrb[0].mxu0
      %2651 = vmatprep.mubr.bf16.mxu0 0
      %2652 = vmatmul.mubr.bf16.gmra.mrb[0].mxu0 %v2441
      %v2653 = vpop.f32.mrb[0].mxu0
      %v2654 = vadd.f32 0.0, %v2653
      %v2655 = vpop.f32.mrb[0].mxu0
      %v2656 = vpop.f32.mrb[0].mxu0
      %v2657 = vadd.f32 0.0, %v2656
      %v2658 = vpop.f32.mrb[0].mxu0
      %2659 = vmatprep.mubr.bf16.mxu0 0
      %2660 = vmatmul.mubr.bf16.gmra.mrb[0].mxu0 %v2442
      %v2661 = vpop.f32.mrb[0].mxu0
      %v2662 = vadd.f32 0.0, %v2661
      %v2663 = vpop.f32.mrb[0].mxu0
      %v2664 = vpop.f32.mrb[0].mxu0
      %v2665 = vadd.f32 0.0, %v2664
      %v2666 = vpop.f32.mrb[0].mxu0
      %2667 = vdwg.mxu0
      %v2668 = vadd.f32 %v2363, %v2542
      %v2669 = vadd.f32 %v2364, %v2545
      %v2670 = vadd.f32 %v2365, %v2550
      %v2671 = vadd.f32 %v2366, %v2553
      %v2672 = vadd.f32 %v2367, %v2558
      %v2673 = vadd.f32 %v2368, %v2561
      %v2674 = vadd.f32 %v2369, %v2566
      %v2675 = vadd.f32 %v2370, %v2569
      %v2676 = vadd.f32 %v2371, %v2574
      %v2677 = vadd.f32 %v2372, %v2577
      %v2678 = vadd.f32 %v2373, %v2582
      %v2679 = vadd.f32 %v2374, %v2585
      %v2680 = vadd.f32 %v2375, %v2590
      %v2681 = vadd.f32 %v2376, %v2593
      %v2682 = vadd.f32 %v2377, %v2598
      %v2683 = vadd.f32 %v2378, %v2601
      %v2684 = vadd.f32 %v2379, %v2606
      %v2685 = vadd.f32 %v2380, %v2609
      %v2686 = vadd.f32 %v2381, %v2614
      %v2687 = vadd.f32 %v2382, %v2617
      %v2688 = vadd.f32 %v2383, %v2622
      %v2689 = vadd.f32 %v2384, %v2625
      %v2690 = vadd.f32 %v2385, %v2630
      %v2691 = vadd.f32 %v2386, %v2633
      %v2692 = vadd.f32 %v2387, %v2638
      %v2693 = vadd.f32 %v2388, %v2641
      %v2694 = vadd.f32 %v2389, %v2646
      %v2695 = vadd.f32 %v2390, %v2649
      %v2696 = vadd.f32 %v2391, %v2654
      %v2697 = vadd.f32 %v2392, %v2657
      %v2698 = vadd.f32 %v2393, %v2662
      %v2699 = vadd.f32 %v2394, %v2665
      %s2700 = scalar_lea.vmem [#allocation2], 48
      %v2701 = vld [vmem:[%s2700] sm:$0xff]
      %v2702 = vld [vmem:[%s2700 + $0x8] sm:$0xff]
      %v2703 = vld [vmem:[%s2700 + $0x18] sm:$0xff]
      %v2704 = vld [vmem:[%s2700 + $0x20] sm:$0xff]
      %v2705 = vld [vmem:[%s2700 + $0x30] sm:$0xff]
      %v2706 = vld [vmem:[%s2700 + $0x38] sm:$0xff]
      %v2707 = vld [vmem:[%s2700 + $0x48] sm:$0xff]
      %v2708 = vld [vmem:[%s2700 + $0x50] sm:$0xff]
      %v2709 = vld [vmem:[%s2700 + $0x60] sm:$0xff]
      %v2710 = vld [vmem:[%s2700 + $0x68] sm:$0xff]
      %v2711 = vld [vmem:[%s2700 + $0x78] sm:$0xff]
      %v2712 = vld [vmem:[%s2700 + $0x80] sm:$0xff]
      %v2713 = vld [vmem:[%s2700 + $0x90] sm:$0xff]
      %v2714 = vld [vmem:[%s2700 + $0x98] sm:$0xff]
      %v2715 = vld [vmem:[%s2700 + $0xa8] sm:$0xff]
      %v2716 = vld [vmem:[%s2700 + $0xb0] sm:$0xff]
      %v2717 = vld [vmem:[%s2700 + $0xc0] sm:$0xff]
      %v2718 = vld [vmem:[%s2700 + $0xc8] sm:$0xff]
      %v2719 = vld [vmem:[%s2700 + $0xd8] sm:$0xff]
      %v2720 = vld [vmem:[%s2700 + $0xe0] sm:$0xff]
      %v2721 = vld [vmem:[%s2700 + $0xf0] sm:$0xff]
      %v2722 = vld [vmem:[%s2700 + $0xf8] sm:$0xff]
      %v2723 = vld [vmem:[%s2700 + $0x108] sm:$0xff]
      %v2724 = vld [vmem:[%s2700 + $0x110] sm:$0xff]
      %v2725 = vld [vmem:[%s2700 + $0x120] sm:$0xff]
      %v2726 = vld [vmem:[%s2700 + $0x128] sm:$0xff]
      %v2727 = vld [vmem:[%s2700 + $0x138] sm:$0xff]
      %v2728 = vld [vmem:[%s2700 + $0x140] sm:$0xff]
      %v2729 = vld [vmem:[%s2700 + $0x150] sm:$0xff]
      %v2730 = vld [vmem:[%s2700 + $0x158] sm:$0xff]
      %v2731 = vld [vmem:[%s2700 + $0x168] sm:$0xff]
      %v2732 = vld [vmem:[%s2700 + $0x170] sm:$0xff]
      %v2733 = vpack.c.bf16 %v2702, %v2701
      %v2734 = vpack.c.bf16 %v2704, %v2703
      %v2735 = vpack.c.bf16 %v2706, %v2705
      %v2736 = vpack.c.bf16 %v2708, %v2707
      %v2737 = vpack.c.bf16 %v2710, %v2709
      %v2738 = vpack.c.bf16 %v2712, %v2711
      %v2739 = vpack.c.bf16 %v2714, %v2713
      %v2740 = vpack.c.bf16 %v2716, %v2715
      %v2741 = vpack.c.bf16 %v2718, %v2717
      %v2742 = vpack.c.bf16 %v2720, %v2719
      %v2743 = vpack.c.bf16 %v2722, %v2721
      %v2744 = vpack.c.bf16 %v2724, %v2723
      %v2745 = vpack.c.bf16 %v2726, %v2725
      %v2746 = vpack.c.bf16 %v2728, %v2727
      %v2747 = vpack.c.bf16 %v2730, %v2729
      %v2748 = vpack.c.bf16 %v2732, %v2731
      %v2749 = vld [vmem:[%s3 + $0x180] sm:$0xf]
      %v2750 = vld [vmem:[%s3 + $0x184] sm:$0xf]
      %v2751 = vld [vmem:[%s3 + $0x188] sm:$0xf]
      %v2752 = vld [vmem:[%s3 + $0x18c] sm:$0xf]
      %v2753 = vld [vmem:[%s3 + $0x190] sm:$0xf]
      %v2754 = vld [vmem:[%s3 + $0x194] sm:$0xf]
      %v2755 = vld [vmem:[%s3 + $0x198] sm:$0xf]
      %v2756 = vld [vmem:[%s3 + $0x19c] sm:$0xf]
      %v2757 = vld [vmem:[%s3 + $0x1a0] sm:$0xf]
      %v2758 = vld [vmem:[%s3 + $0x1a4] sm:$0xf]
      %v2759 = vld [vmem:[%s3 + $0x1a8] sm:$0xf]
      %v2760 = vld [vmem:[%s3 + $0x1ac] sm:$0xf]
      %v2761 = vld [vmem:[%s3 + $0x1b0] sm:$0xf]
      %v2762 = vld [vmem:[%s3 + $0x1b4] sm:$0xf]
      %v2763 = vld [vmem:[%s3 + $0x1b8] sm:$0xf]
      %v2764 = vld [vmem:[%s3 + $0x1bc] sm:$0xf]
      %v2781 = vunpack.c.l.b16 %v2749
      %v2782 = vunpack.c.l.b16 %v2750
      %v2783 = vunpack.c.l.b16 %v2751
      %v2784 = vunpack.c.l.b16 %v2752
      %v2785 = vunpack.c.l.b16 %v2753
      %v2786 = vunpack.c.l.b16 %v2754
      %v2787 = vunpack.c.l.b16 %v2755
      %v2788 = vunpack.c.l.b16 %v2756
      %v2789 = vunpack.c.l.b16 %v2757
      %v2790 = vunpack.c.l.b16 %v2758
      %v2791 = vunpack.c.l.b16 %v2759
      %v2792 = vunpack.c.l.b16 %v2760
      %v2793 = vunpack.c.l.b16 %v2761
      %v2794 = vunpack.c.l.b16 %v2762
      %v2795 = vunpack.c.l.b16 %v2763
      %v2796 = vunpack.c.l.b16 %v2764
      %v2797 = vpack.c.b16 %v2782, %v2781
      %v2798 = vpack.c.b16 %v2784, %v2783
      %v2799 = vpack.c.b16 %v2786, %v2785
      %v2800 = vpack.c.b16 %v2788, %v2787
      %v2801 = vpack.c.b16 %v2790, %v2789
      %v2802 = vpack.c.b16 %v2792, %v2791
      %v2803 = vpack.c.b16 %v2794, %v2793
      %v2804 = vpack.c.b16 %v2796, %v2795
      %2813 = vmatprep.subr.bf16.mxu0 0
      %2814 = vmatpush1.bf16.msra.mxu0 %v2797
      %2815 = vmatprep.subr.bf16.mxu0 0
      %2816 = vmatpush1.bf16.msra.mxu0 %v2798
      %2817 = vmatprep.subr.bf16.mxu0 0
      %2818 = vmatpush1.bf16.msra.mxu0 %v2799
      %2819 = vmatprep.subr.bf16.mxu0 0
      %2820 = vmatpush1.bf16.msra.mxu0 %v2800
      %2821 = vmatprep.subr.bf16.mxu0 0
      %2822 = vmatpush1.bf16.msra.mxu0 %v2801
      %2823 = vmatprep.subr.bf16.mxu0 0
      %2824 = vmatpush1.bf16.msra.mxu0 %v2802
      %2825 = vmatprep.subr.bf16.mxu0 0
      %2826 = vmatpush1.bf16.msra.mxu0 %v2803
      %2827 = vmatprep.subr.bf16.mxu0 0
      %2828 = vmatpush1.bf16.msra.mxu0 %v2804
      %2829 = vmatprep.subr.bf16.mxu0 0
      %2830 = vmatpush1.bf16.msra.mxu0 0
      %2831 = vmatprep.subr.bf16.mxu0 0
      %2832 = vmatpush1.bf16.msra.mxu0 0
      %2833 = vmatprep.subr.bf16.mxu0 0
      %2834 = vmatpush1.bf16.msra.mxu0 0
      %2835 = vmatprep.subr.bf16.mxu0 0
      %2836 = vmatpush1.bf16.msra.mxu0 0
      %2837 = vmatprep.subr.bf16.mxu0 0
      %2838 = vmatpush1.bf16.msra.mxu0 0
      %2839 = vmatprep.subr.bf16.mxu0 0
      %2840 = vmatpush1.bf16.msra.mxu0 0
      %2841 = vmatprep.subr.bf16.mxu0 0
      %2842 = vmatpush1.bf16.msra.mxu0 0
      %2843 = vmatprep.subr.bf16.mxu0 0
      %2844 = vmatpush1.bf16.msra.mxu0 0
      %2845 = vmatprep.mubr.bf16.mxu0 0
      %2846 = vmatmul.mubr.bf16.gmra.mrb[0].mxu0 %v2733
      %v2847 = vpop.f32.mrb[0].mxu0
      %v2848 = vadd.f32 0.0, %v2847
      %v2849 = vpop.f32.mrb[0].mxu0
      %v2850 = vpop.f32.mrb[0].mxu0
      %v2851 = vadd.f32 0.0, %v2850
      %v2852 = vpop.f32.mrb[0].mxu0
      %2853 = vmatprep.mubr.bf16.mxu0 0
      %2854 = vmatmul.mubr.bf16.gmra.mrb[0].mxu0 %v2734
      %v2855 = vpop.f32.mrb[0].mxu0
      %v2856 = vadd.f32 0.0, %v2855
      %v2857 = vpop.f32.mrb[0].mxu0
      %v2858 = vpop.f32.mrb[0].mxu0
      %v2859 = vadd.f32 0.0, %v2858
      %v2860 = vpop.f32.mrb[0].mxu0
      %2861 = vmatprep.mubr.bf16.mxu0 0
      %2862 = vmatmul.mubr.bf16.gmra.mrb[0].mxu0 %v2735
      %v2863 = vpop.f32.mrb[0].mxu0
      %v2864 = vadd.f32 0.0, %v2863
      %v2865 = vpop.f32.mrb[0].mxu0
      %v2866 = vpop.f32.mrb[0].mxu0
      %v2867 = vadd.f32 0.0, %v2866
      %v2868 = vpop.f32.mrb[0].mxu0
      %2869 = vmatprep.mubr.bf16.mxu0 0
      %2870 = vmatmul.mubr.bf16.gmra.mrb[0].mxu0 %v2736
      %v2871 = vpop.f32.mrb[0].mxu0
      %v2872 = vadd.f32 0.0, %v2871
      %v2873 = vpop.f32.mrb[0].mxu0
      %v2874 = vpop.f32.mrb[0].mxu0
      %v2875 = vadd.f32 0.0, %v2874
      %v2876 = vpop.f32.mrb[0].mxu0
      %2877 = vmatprep.mubr.bf16.mxu0 0
      %2878 = vmatmul.mubr.bf16.gmra.mrb[0].mxu0 %v2737
      %v2879 = vpop.f32.mrb[0].mxu0
      %v2880 = vadd.f32 0.0, %v2879
      %v2881 = vpop.f32.mrb[0].mxu0
      %v2882 = vpop.f32.mrb[0].mxu0
      %v2883 = vadd.f32 0.0, %v2882
      %v2884 = vpop.f32.mrb[0].mxu0
      %2885 = vmatprep.mubr.bf16.mxu0 0
      %2886 = vmatmul.mubr.bf16.gmra.mrb[0].mxu0 %v2738
      %v2887 = vpop.f32.mrb[0].mxu0
      %v2888 = vadd.f32 0.0, %v2887
      %v2889 = vpop.f32.mrb[0].mxu0
      %v2890 = vpop.f32.mrb[0].mxu0
      %v2891 = vadd.f32 0.0, %v2890
      %v2892 = vpop.f32.mrb[0].mxu0
      %2893 = vmatprep.mubr.bf16.mxu0 0
      %2894 = vmatmul.mubr.bf16.gmra.mrb[0].mxu0 %v2739
      %v2895 = vpop.f32.mrb[0].mxu0
      %v2896 = vadd.f32 0.0, %v2895
      %v2897 = vpop.f32.mrb[0].mxu0
      %v2898 = vpop.f32.mrb[0].mxu0
      %v2899 = vadd.f32 0.0, %v2898
      %v2900 = vpop.f32.mrb[0].mxu0
      %2901 = vmatprep.mubr.bf16.mxu0 0
      %2902 = vmatmul.mubr.bf16.gmra.mrb[0].mxu0 %v2740
      %v2903 = vpop.f32.mrb[0].mxu0
      %v2904 = vadd.f32 0.0, %v2903
      %v2905 = vpop.f32.mrb[0].mxu0
      %v2906 = vpop.f32.mrb[0].mxu0
      %v2907 = vadd.f32 0.0, %v2906
      %v2908 = vpop.f32.mrb[0].mxu0
      %2909 = vmatprep.mubr.bf16.mxu0 0
      %2910 = vmatmul.mubr.bf16.gmra.mrb[0].mxu0 %v2741
      %v2911 = vpop.f32.mrb[0].mxu0
      %v2912 = vadd.f32 0.0, %v2911
      %v2913 = vpop.f32.mrb[0].mxu0
      %v2914 = vpop.f32.mrb[0].mxu0
      %v2915 = vadd.f32 0.0, %v2914
      %v2916 = vpop.f32.mrb[0].mxu0
      %2917 = vmatprep.mubr.bf16.mxu0 0
      %2918 = vmatmul.mubr.bf16.gmra.mrb[0].mxu0 %v2742
      %v2919 = vpop.f32.mrb[0].mxu0
      %v2920 = vadd.f32 0.0, %v2919
      %v2921 = vpop.f32.mrb[0].mxu0
      %v2922 = vpop.f32.mrb[0].mxu0
      %v2923 = vadd.f32 0.0, %v2922
      %v2924 = vpop.f32.mrb[0].mxu0
      %2925 = vmatprep.mubr.bf16.mxu0 0
      %2926 = vmatmul.mubr.bf16.gmra.mrb[0].mxu0 %v2743
      %v2927 = vpop.f32.mrb[0].mxu0
      %v2928 = vadd.f32 0.0, %v2927
      %v2929 = vpop.f32.mrb[0].mxu0
      %v2930 = vpop.f32.mrb[0].mxu0
      %v2931 = vadd.f32 0.0, %v2930
      %v2932 = vpop.f32.mrb[0].mxu0
      %2933 = vmatprep.mubr.bf16.mxu0 0
      %2934 = vmatmul.mubr.bf16.gmra.mrb[0].mxu0 %v2744
      %v2935 = vpop.f32.mrb[0].mxu0
      %v2936 = vadd.f32 0.0, %v2935
      %v2937 = vpop.f32.mrb[0].mxu0
      %v2938 = vpop.f32.mrb[0].mxu0
      %v2939 = vadd.f32 0.0, %v2938
      %v2940 = vpop.f32.mrb[0].mxu0
      %2941 = vmatprep.mubr.bf16.mxu0 0
      %2942 = vmatmul.mubr.bf16.gmra.mrb[0].mxu0 %v2745
      %v2943 = vpop.f32.mrb[0].mxu0
      %v2944 = vadd.f32 0.0, %v2943
      %v2945 = vpop.f32.mrb[0].mxu0
      %v2946 = vpop.f32.mrb[0].mxu0
      %v2947 = vadd.f32 0.0, %v2946
      %v2948 = vpop.f32.mrb[0].mxu0
      %2949 = vmatprep.mubr.bf16.mxu0 0
      %2950 = vmatmul.mubr.bf16.gmra.mrb[0].mxu0 %v2746
      %v2951 = vpop.f32.mrb[0].mxu0
      %v2952 = vadd.f32 0.0, %v2951
      %v2953 = vpop.f32.mrb[0].mxu0
      %v2954 = vpop.f32.mrb[0].mxu0
      %v2955 = vadd.f32 0.0, %v2954
      %v2956 = vpop.f32.mrb[0].mxu0
      %2957 = vmatprep.mubr.bf16.mxu0 0
      %2958 = vmatmul.mubr.bf16.gmra.mrb[0].mxu0 %v2747
      %v2959 = vpop.f32.mrb[0].mxu0
      %v2960 = vadd.f32 0.0, %v2959
      %v2961 = vpop.f32.mrb[0].mxu0
      %v2962 = vpop.f32.mrb[0].mxu0
      %v2963 = vadd.f32 0.0, %v2962
      %v2964 = vpop.f32.mrb[0].mxu0
      %2965 = vmatprep.mubr.bf16.mxu0 0
      %2966 = vmatmul.mubr.bf16.gmra.mrb[0].mxu0 %v2748
      %v2967 = vpop.f32.mrb[0].mxu0
      %v2968 = vadd.f32 0.0, %v2967
      %v2969 = vpop.f32.mrb[0].mxu0
      %v2970 = vpop.f32.mrb[0].mxu0
      %v2971 = vadd.f32 0.0, %v2970
      %v2972 = vpop.f32.mrb[0].mxu0
      %2973 = vdwg.mxu0
      %v2974 = vadd.f32 %v2668, %v2848
      %v2975 = vadd.f32 %v2669, %v2851
      %v2976 = vadd.f32 %v2670, %v2856
      %v2977 = vadd.f32 %v2671, %v2859
      %v2978 = vadd.f32 %v2672, %v2864
      %v2979 = vadd.f32 %v2673, %v2867
      %v2980 = vadd.f32 %v2674, %v2872
      %v2981 = vadd.f32 %v2675, %v2875
      %v2982 = vadd.f32 %v2676, %v2880
      %v2983 = vadd.f32 %v2677, %v2883
      %v2984 = vadd.f32 %v2678, %v2888
      %v2985 = vadd.f32 %v2679, %v2891
      %v2986 = vadd.f32 %v2680, %v2896
      %v2987 = vadd.f32 %v2681, %v2899
      %v2988 = vadd.f32 %v2682, %v2904
      %v2989 = vadd.f32 %v2683, %v2907
      %v2990 = vadd.f32 %v2684, %v2912
      %v2991 = vadd.f32 %v2685, %v2915
      %v2992 = vadd.f32 %v2686, %v2920
      %v2993 = vadd.f32 %v2687, %v2923
      %v2994 = vadd.f32 %v2688, %v2928
      %v2995 = vadd.f32 %v2689, %v2931
      %v2996 = vadd.f32 %v2690, %v2936
      %v2997 = vadd.f32 %v2691, %v2939
      %v2998 = vadd.f32 %v2692, %v2944
      %v2999 = vadd.f32 %v2693, %v2947
      %v3000 = vadd.f32 %v2694, %v2952
      %v3001 = vadd.f32 %v2695, %v2955
      %v3002 = vadd.f32 %v2696, %v2960
      %v3003 = vadd.f32 %v2697, %v2963
      %v3004 = vadd.f32 %v2698, %v2968
      %v3005 = vadd.f32 %v2699, %v2971
      %v3006 = vld [vmem:[%s2700 + $0x1] sm:$0xff]
      %v3007 = vld [vmem:[%s2700 + $0x9] sm:$0xff]
      %v3008 = vld [vmem:[%s2700 + $0x19] sm:$0xff]
      %v3009 = vld [vmem:[%s2700 + $0x21] sm:$0xff]
      %v3010 = vld [vmem:[%s2700 + $0x31] sm:$0xff]
      %v3011 = vld [vmem:[%s2700 + $0x39] sm:$0xff]
      %v3012 = vld [vmem:[%s2700 + $0x49] sm:$0xff]
      %v3013 = vld [vmem:[%s2700 + $0x51] sm:$0xff]
      %v3014 = vld [vmem:[%s2700 + $0x61] sm:$0xff]
      %v3015 = vld [vmem:[%s2700 + $0x69] sm:$0xff]
      %v3016 = vld [vmem:[%s2700 + $0x79] sm:$0xff]
      %v3017 = vld [vmem:[%s2700 + $0x81] sm:$0xff]
      %v3018 = vld [vmem:[%s2700 + $0x91] sm:$0xff]
      %v3019 = vld [vmem:[%s2700 + $0x99] sm:$0xff]
      %v3020 = vld [vmem:[%s2700 + $0xa9] sm:$0xff]
      %v3021 = vld [vmem:[%s2700 + $0xb1] sm:$0xff]
      %v3022 = vld [vmem:[%s2700 + $0xc1] sm:$0xff]
      %v3023 = vld [vmem:[%s2700 + $0xc9] sm:$0xff]
      %v3024 = vld [vmem:[%s2700 + $0xd9] sm:$0xff]
      %v3025 = vld [vmem:[%s2700 + $0xe1] sm:$0xff]
      %v3026 = vld [vmem:[%s2700 + $0xf1] sm:$0xff]
      %v3027 = vld [vmem:[%s2700 + $0xf9] sm:$0xff]
      %v3028 = vld [vmem:[%s2700 + $0x109] sm:$0xff]
      %v3029 = vld [vmem:[%s2700 + $0x111] sm:$0xff]
      %v3030 = vld [vmem:[%s2700 + $0x121] sm:$0xff]
      %v3031 = vld [vmem:[%s2700 + $0x129] sm:$0xff]
      %v3032 = vld [vmem:[%s2700 + $0x139] sm:$0xff]
      %v3033 = vld [vmem:[%s2700 + $0x141] sm:$0xff]
      %v3034 = vld [vmem:[%s2700 + $0x151] sm:$0xff]
      %v3035 = vld [vmem:[%s2700 + $0x159] sm:$0xff]
      %v3036 = vld [vmem:[%s2700 + $0x169] sm:$0xff]
      %v3037 = vld [vmem:[%s2700 + $0x171] sm:$0xff]
      %v3038 = vpack.c.bf16 %v3007, %v3006
      %v3039 = vpack.c.bf16 %v3009, %v3008
      %v3040 = vpack.c.bf16 %v3011, %v3010
      %v3041 = vpack.c.bf16 %v3013, %v3012
      %v3042 = vpack.c.bf16 %v3015, %v3014
      %v3043 = vpack.c.bf16 %v3017, %v3016
      %v3044 = vpack.c.bf16 %v3019, %v3018
      %v3045 = vpack.c.bf16 %v3021, %v3020
      %v3046 = vpack.c.bf16 %v3023, %v3022
      %v3047 = vpack.c.bf16 %v3025, %v3024
      %v3048 = vpack.c.bf16 %v3027, %v3026
      %v3049 = vpack.c.bf16 %v3029, %v3028
      %v3050 = vpack.c.bf16 %v3031, %v3030
      %v3051 = vpack.c.bf16 %v3033, %v3032
      %v3052 = vpack.c.bf16 %v3035, %v3034
      %v3053 = vpack.c.bf16 %v3037, %v3036
      %v3054 = vld [vmem:[%s3 + $0x1c0] sm:$0xf]
      %v3055 = vld [vmem:[%s3 + $0x1c4] sm:$0xf]
      %v3056 = vld [vmem:[%s3 + $0x1c8] sm:$0xf]
      %v3057 = vld [vmem:[%s3 + $0x1cc] sm:$0xf]
      %v3058 = vld [vmem:[%s3 + $0x1d0] sm:$0xf]
      %v3059 = vld [vmem:[%s3 + $0x1d4] sm:$0xf]
      %v3060 = vld [vmem:[%s3 + $0x1d8] sm:$0xf]
      %v3061 = vld [vmem:[%s3 + $0x1dc] sm:$0xf]
      %v3062 = vld [vmem:[%s3 + $0x1e0] sm:$0xf]
      %v3063 = vld [vmem:[%s3 + $0x1e4] sm:$0xf]
      %v3064 = vld [vmem:[%s3 + $0x1e8] sm:$0xf]
      %v3065 = vld [vmem:[%s3 + $0x1ec] sm:$0xf]
      %v3066 = vld [vmem:[%s3 + $0x1f0] sm:$0xf]
      %v3067 = vld [vmem:[%s3 + $0x1f4] sm:$0xf]
      %v3068 = vld [vmem:[%s3 + $0x1f8] sm:$0xf]
      %v3069 = vld [vmem:[%s3 + $0x1fc] sm:$0xf]
      %v3086 = vunpack.c.l.b16 %v3054
      %v3087 = vunpack.c.l.b16 %v3055
      %v3088 = vunpack.c.l.b16 %v3056
      %v3089 = vunpack.c.l.b16 %v3057
      %v3090 = vunpack.c.l.b16 %v3058
      %v3091 = vunpack.c.l.b16 %v3059
      %v3092 = vunpack.c.l.b16 %v3060
      %v3093 = vunpack.c.l.b16 %v3061
      %v3094 = vunpack.c.l.b16 %v3062
      %v3095 = vunpack.c.l.b16 %v3063
      %v3096 = vunpack.c.l.b16 %v3064
      %v3097 = vunpack.c.l.b16 %v3065
      %v3098 = vunpack.c.l.b16 %v3066
      %v3099 = vunpack.c.l.b16 %v3067
      %v3100 = vunpack.c.l.b16 %v3068
      %v3101 = vunpack.c.l.b16 %v3069
      %v3102 = vpack.c.b16 %v3087, %v3086
      %v3103 = vpack.c.b16 %v3089, %v3088
      %v3104 = vpack.c.b16 %v3091, %v3090
      %v3105 = vpack.c.b16 %v3093, %v3092
      %v3106 = vpack.c.b16 %v3095, %v3094
      %v3107 = vpack.c.b16 %v3097, %v3096
      %v3108 = vpack.c.b16 %v3099, %v3098
      %v3109 = vpack.c.b16 %v3101, %v3100
      %3118 = vmatprep.subr.bf16.mxu0 0
      %3119 = vmatpush1.bf16.msra.mxu0 %v3102
      %3120 = vmatprep.subr.bf16.mxu0 0
      %3121 = vmatpush1.bf16.msra.mxu0 %v3103
      %3122 = vmatprep.subr.bf16.mxu0 0
      %3123 = vmatpush1.bf16.msra.mxu0 %v3104
      %3124 = vmatprep.subr.bf16.mxu0 0
      %3125 = vmatpush1.bf16.msra.mxu0 %v3105
      %3126 = vmatprep.subr.bf16.mxu0 0
      %3127 = vmatpush1.bf16.msra.mxu0 %v3106
      %3128 = vmatprep.subr.bf16.mxu0 0
      %3129 = vmatpush1.bf16.msra.mxu0 %v3107
      %3130 = vmatprep.subr.bf16.mxu0 0
      %3131 = vmatpush1.bf16.msra.mxu0 %v3108
      %3132 = vmatprep.subr.bf16.mxu0 0
      %3133 = vmatpush1.bf16.msra.mxu0 %v3109
      %3134 = vmatprep.subr.bf16.mxu0 0
      %3135 = vmatpush1.bf16.msra.mxu0 0
      %3136 = vmatprep.subr.bf16.mxu0 0
      %3137 = vmatpush1.bf16.msra.mxu0 0
      %3138 = vmatprep.subr.bf16.mxu0 0
      %3139 = vmatpush1.bf16.msra.mxu0 0
      %3140 = vmatprep.subr.bf16.mxu0 0
      %3141 = vmatpush1.bf16.msra.mxu0 0
      %3142 = vmatprep.subr.bf16.mxu0 0
      %3143 = vmatpush1.bf16.msra.mxu0 0
      %3144 = vmatprep.subr.bf16.mxu0 0
      %3145 = vmatpush1.bf16.msra.mxu0 0
      %3146 = vmatprep.subr.bf16.mxu0 0
      %3147 = vmatpush1.bf16.msra.mxu0 0
      %3148 = vmatprep.subr.bf16.mxu0 0
      %3149 = vmatpush1.bf16.msra.mxu0 0
      %3150 = vmatprep.mubr.bf16.mxu0 0
      %3151 = vmatmul.mubr.bf16.gmra.mrb[0].mxu0 %v3038
      %v3152 = vpop.f32.mrb[0].mxu0
      %v3153 = vadd.f32 0.0, %v3152
      %v3154 = vpop.f32.mrb[0].mxu0
      %v3155 = vpop.f32.mrb[0].mxu0
      %v3156 = vadd.f32 0.0, %v3155
      %v3157 = vpop.f32.mrb[0].mxu0
      %3158 = vmatprep.mubr.bf16.mxu0 0
      %3159 = vmatmul.mubr.bf16.gmra.mrb[0].mxu0 %v3039
      %v3160 = vpop.f32.mrb[0].mxu0
      %v3161 = vadd.f32 0.0, %v3160
      %v3162 = vpop.f32.mrb[0].mxu0
      %v3163 = vpop.f32.mrb[0].mxu0
      %v3164 = vadd.f32 0.0, %v3163
      %v3165 = vpop.f32.mrb[0].mxu0
      %3166 = vmatprep.mubr.bf16.mxu0 0
      %3167 = vmatmul.mubr.bf16.gmra.mrb[0].mxu0 %v3040
      %v3168 = vpop.f32.mrb[0].mxu0
      %v3169 = vadd.f32 0.0, %v3168
      %v3170 = vpop.f32.mrb[0].mxu0
      %v3171 = vpop.f32.mrb[0].mxu0
      %v3172 = vadd.f32 0.0, %v3171
      %v3173 = vpop.f32.mrb[0].mxu0
      %3174 = vmatprep.mubr.bf16.mxu0 0
      %3175 = vmatmul.mubr.bf16.gmra.mrb[0].mxu0 %v3041
      %v3176 = vpop.f32.mrb[0].mxu0
      %v3177 = vadd.f32 0.0, %v3176
      %v3178 = vpop.f32.mrb[0].mxu0
      %v3179 = vpop.f32.mrb[0].mxu0
      %v3180 = vadd.f32 0.0, %v3179
      %v3181 = vpop.f32.mrb[0].mxu0
      %3182 = vmatprep.mubr.bf16.mxu0 0
      %3183 = vmatmul.mubr.bf16.gmra.mrb[0].mxu0 %v3042
      %v3184 = vpop.f32.mrb[0].mxu0
      %v3185 = vadd.f32 0.0, %v3184
      %v3186 = vpop.f32.mrb[0].mxu0
      %v3187 = vpop.f32.mrb[0].mxu0
      %v3188 = vadd.f32 0.0, %v3187
      %v3189 = vpop.f32.mrb[0].mxu0
      %3190 = vmatprep.mubr.bf16.mxu0 0
      %3191 = vmatmul.mubr.bf16.gmra.mrb[0].mxu0 %v3043
      %v3192 = vpop.f32.mrb[0].mxu0
      %v3193 = vadd.f32 0.0, %v3192
      %v3194 = vpop.f32.mrb[0].mxu0
      %v3195 = vpop.f32.mrb[0].mxu0
      %v3196 = vadd.f32 0.0, %v3195
      %v3197 = vpop.f32.mrb[0].mxu0
      %3198 = vmatprep.mubr.bf16.mxu0 0
      %3199 = vmatmul.mubr.bf16.gmra.mrb[0].mxu0 %v3044
      %v3200 = vpop.f32.mrb[0].mxu0
      %v3201 = vadd.f32 0.0, %v3200
      %v3202 = vpop.f32.mrb[0].mxu0
      %v3203 = vpop.f32.mrb[0].mxu0
      %v3204 = vadd.f32 0.0, %v3203
      %v3205 = vpop.f32.mrb[0].mxu0
      %3206 = vmatprep.mubr.bf16.mxu0 0
      %3207 = vmatmul.mubr.bf16.gmra.mrb[0].mxu0 %v3045
      %v3208 = vpop.f32.mrb[0].mxu0
      %v3209 = vadd.f32 0.0, %v3208
      %v3210 = vpop.f32.mrb[0].mxu0
      %v3211 = vpop.f32.mrb[0].mxu0
      %v3212 = vadd.f32 0.0, %v3211
      %v3213 = vpop.f32.mrb[0].mxu0
      %3214 = vmatprep.mubr.bf16.mxu0 0
      %3215 = vmatmul.mubr.bf16.gmra.mrb[0].mxu0 %v3046
      %v3216 = vpop.f32.mrb[0].mxu0
      %v3217 = vadd.f32 0.0, %v3216
      %v3218 = vpop.f32.mrb[0].mxu0
      %v3219 = vpop.f32.mrb[0].mxu0
      %v3220 = vadd.f32 0.0, %v3219
      %v3221 = vpop.f32.mrb[0].mxu0
      %3222 = vmatprep.mubr.bf16.mxu0 0
      %3223 = vmatmul.mubr.bf16.gmra.mrb[0].mxu0 %v3047
      %v3224 = vpop.f32.mrb[0].mxu0
      %v3225 = vadd.f32 0.0, %v3224
      %v3226 = vpop.f32.mrb[0].mxu0
      %v3227 = vpop.f32.mrb[0].mxu0
      %v3228 = vadd.f32 0.0, %v3227
      %v3229 = vpop.f32.mrb[0].mxu0
      %3230 = vmatprep.mubr.bf16.mxu0 0
      %3231 = vmatmul.mubr.bf16.gmra.mrb[0].mxu0 %v3048
      %v3232 = vpop.f32.mrb[0].mxu0
      %v3233 = vadd.f32 0.0, %v3232
      %v3234 = vpop.f32.mrb[0].mxu0
      %v3235 = vpop.f32.mrb[0].mxu0
      %v3236 = vadd.f32 0.0, %v3235
      %v3237 = vpop.f32.mrb[0].mxu0
      %3238 = vmatprep.mubr.bf16.mxu0 0
      %3239 = vmatmul.mubr.bf16.gmra.mrb[0].mxu0 %v3049
      %v3240 = vpop.f32.mrb[0].mxu0
      %v3241 = vadd.f32 0.0, %v3240
      %v3242 = vpop.f32.mrb[0].mxu0
      %v3243 = vpop.f32.mrb[0].mxu0
      %v3244 = vadd.f32 0.0, %v3243
      %v3245 = vpop.f32.mrb[0].mxu0
      %3246 = vmatprep.mubr.bf16.mxu0 0
      %3247 = vmatmul.mubr.bf16.gmra.mrb[0].mxu0 %v3050
      %v3248 = vpop.f32.mrb[0].mxu0
      %v3249 = vadd.f32 0.0, %v3248
      %v3250 = vpop.f32.mrb[0].mxu0
      %v3251 = vpop.f32.mrb[0].mxu0
      %v3252 = vadd.f32 0.0, %v3251
      %v3253 = vpop.f32.mrb[0].mxu0
      %3254 = vmatprep.mubr.bf16.mxu0 0
      %3255 = vmatmul.mubr.bf16.gmra.mrb[0].mxu0 %v3051
      %v3256 = vpop.f32.mrb[0].mxu0
      %v3257 = vadd.f32 0.0, %v3256
      %v3258 = vpop.f32.mrb[0].mxu0
      %v3259 = vpop.f32.mrb[0].mxu0
      %v3260 = vadd.f32 0.0, %v3259
      %v3261 = vpop.f32.mrb[0].mxu0
      %3262 = vmatprep.mubr.bf16.mxu0 0
      %3263 = vmatmul.mubr.bf16.gmra.mrb[0].mxu0 %v3052
      %v3264 = vpop.f32.mrb[0].mxu0
      %v3265 = vadd.f32 0.0, %v3264
      %v3266 = vpop.f32.mrb[0].mxu0
      %v3267 = vpop.f32.mrb[0].mxu0
      %v3268 = vadd.f32 0.0, %v3267
      %v3269 = vpop.f32.mrb[0].mxu0
      %3270 = vmatprep.mubr.bf16.mxu0 0
      %3271 = vmatmul.mubr.bf16.gmra.mrb[0].mxu0 %v3053
      %v3272 = vpop.f32.mrb[0].mxu0
      %v3273 = vadd.f32 0.0, %v3272
      %v3274 = vpop.f32.mrb[0].mxu0
      %v3275 = vpop.f32.mrb[0].mxu0
      %v3276 = vadd.f32 0.0, %v3275
      %v3277 = vpop.f32.mrb[0].mxu0
      %3278 = vdwg.mxu0
      %v3279 = vadd.f32 %v2974, %v3153
      %v3280 = vadd.f32 %v2975, %v3156
      %v3281 = vadd.f32 %v2976, %v3161
      %v3282 = vadd.f32 %v2977, %v3164
      %v3283 = vadd.f32 %v2978, %v3169
      %v3284 = vadd.f32 %v2979, %v3172
      %v3285 = vadd.f32 %v2980, %v3177
      %v3286 = vadd.f32 %v2981, %v3180
      %v3287 = vadd.f32 %v2982, %v3185
      %v3288 = vadd.f32 %v2983, %v3188
      %v3289 = vadd.f32 %v2984, %v3193
      %v3290 = vadd.f32 %v2985, %v3196
      %v3291 = vadd.f32 %v2986, %v3201
      %v3292 = vadd.f32 %v2987, %v3204
      %v3293 = vadd.f32 %v2988, %v3209
      %v3294 = vadd.f32 %v2989, %v3212
      %v3295 = vadd.f32 %v2990, %v3217
      %v3296 = vadd.f32 %v2991, %v3220
      %v3297 = vadd.f32 %v2992, %v3225
      %v3298 = vadd.f32 %v2993, %v3228
      %v3299 = vadd.f32 %v2994, %v3233
      %v3300 = vadd.f32 %v2995, %v3236
      %v3301 = vadd.f32 %v2996, %v3241
      %v3302 = vadd.f32 %v2997, %v3244
      %v3303 = vadd.f32 %v2998, %v3249
      %v3304 = vadd.f32 %v2999, %v3252
      %v3305 = vadd.f32 %v3000, %v3257
      %v3306 = vadd.f32 %v3001, %v3260
      %v3307 = vadd.f32 %v3002, %v3265
      %v3308 = vadd.f32 %v3003, %v3268
      %v3309 = vadd.f32 %v3004, %v3273
      %v3310 = vadd.f32 %v3005, %v3276
      %v3311 = vld [vmem:[%s2700 + $0x2] sm:$0xff]
      %v3312 = vld [vmem:[%s2700 + $0xa] sm:$0xff]
      %v3313 = vld [vmem:[%s2700 + $0x1a] sm:$0xff]
      %v3314 = vld [vmem:[%s2700 + $0x22] sm:$0xff]
      %v3315 = vld [vmem:[%s2700 + $0x32] sm:$0xff]
      %v3316 = vld [vmem:[%s2700 + $0x3a] sm:$0xff]
      %v3317 = vld [vmem:[%s2700 + $0x4a] sm:$0xff]
      %v3318 = vld [vmem:[%s2700 + $0x52] sm:$0xff]
      %v3319 = vld [vmem:[%s2700 + $0x62] sm:$0xff]
      %v3320 = vld [vmem:[%s2700 + $0x6a] sm:$0xff]
      %v3321 = vld [vmem:[%s2700 + $0x7a] sm:$0xff]
      %v3322 = vld [vmem:[%s2700 + $0x82] sm:$0xff]
      %v3323 = vld [vmem:[%s2700 + $0x92] sm:$0xff]
      %v3324 = vld [vmem:[%s2700 + $0x9a] sm:$0xff]
      %v3325 = vld [vmem:[%s2700 + $0xaa] sm:$0xff]
      %v3326 = vld [vmem:[%s2700 + $0xb2] sm:$0xff]
      %v3327 = vld [vmem:[%s2700 + $0xc2] sm:$0xff]
      %v3328 = vld [vmem:[%s2700 + $0xca] sm:$0xff]
      %v3329 = vld [vmem:[%s2700 + $0xda] sm:$0xff]
      %v3330 = vld [vmem:[%s2700 + $0xe2] sm:$0xff]
      %v3331 = vld [vmem:[%s2700 + $0xf2] sm:$0xff]
      %v3332 = vld [vmem:[%s2700 + $0xfa] sm:$0xff]
      %v3333 = vld [vmem:[%s2700 + $0x10a] sm:$0xff]
      %v3334 = vld [vmem:[%s2700 + $0x112] sm:$0xff]
      %v3335 = vld [vmem:[%s2700 + $0x122] sm:$0xff]
      %v3336 = vld [vmem:[%s2700 + $0x12a] sm:$0xff]
      %v3337 = vld [vmem:[%s2700 + $0x13a] sm:$0xff]
      %v3338 = vld [vmem:[%s2700 + $0x142] sm:$0xff]
      %v3339 = vld [vmem:[%s2700 + $0x152] sm:$0xff]
      %v3340 = vld [vmem:[%s2700 + $0x15a] sm:$0xff]
      %v3341 = vld [vmem:[%s2700 + $0x16a] sm:$0xff]
      %v3342 = vld [vmem:[%s2700 + $0x172] sm:$0xff]
      %v3343 = vpack.c.bf16 %v3312, %v3311
      %v3344 = vpack.c.bf16 %v3314, %v3313
      %v3345 = vpack.c.bf16 %v3316, %v3315
      %v3346 = vpack.c.bf16 %v3318, %v3317
      %v3347 = vpack.c.bf16 %v3320, %v3319
      %v3348 = vpack.c.bf16 %v3322, %v3321
      %v3349 = vpack.c.bf16 %v3324, %v3323
      %v3350 = vpack.c.bf16 %v3326, %v3325
      %v3351 = vpack.c.bf16 %v3328, %v3327
      %v3352 = vpack.c.bf16 %v3330, %v3329
      %v3353 = vpack.c.bf16 %v3332, %v3331
      %v3354 = vpack.c.bf16 %v3334, %v3333
      %v3355 = vpack.c.bf16 %v3336, %v3335
      %v3356 = vpack.c.bf16 %v3338, %v3337
      %v3357 = vpack.c.bf16 %v3340, %v3339
      %v3358 = vpack.c.bf16 %v3342, %v3341
      %v3359 = vld [vmem:[%s3 + $0x200] sm:$0xf]
      %v3360 = vld [vmem:[%s3 + $0x204] sm:$0xf]
      %v3361 = vld [vmem:[%s3 + $0x208] sm:$0xf]
      %v3362 = vld [vmem:[%s3 + $0x20c] sm:$0xf]
      %v3363 = vld [vmem:[%s3 + $0x210] sm:$0xf]
      %v3364 = vld [vmem:[%s3 + $0x214] sm:$0xf]
      %v3365 = vld [vmem:[%s3 + $0x218] sm:$0xf]
      %v3366 = vld [vmem:[%s3 + $0x21c] sm:$0xf]
      %v3367 = vld [vmem:[%s3 + $0x220] sm:$0xf]
      %v3368 = vld [vmem:[%s3 + $0x224] sm:$0xf]
      %v3369 = vld [vmem:[%s3 + $0x228] sm:$0xf]
      %v3370 = vld [vmem:[%s3 + $0x22c] sm:$0xf]
      %v3371 = vld [vmem:[%s3 + $0x230] sm:$0xf]
      %v3372 = vld [vmem:[%s3 + $0x234] sm:$0xf]
      %v3373 = vld [vmem:[%s3 + $0x238] sm:$0xf]
      %v3374 = vld [vmem:[%s3 + $0x23c] sm:$0xf]
      %v3391 = vunpack.c.l.b16 %v3359
      %v3392 = vunpack.c.l.b16 %v3360
      %v3393 = vunpack.c.l.b16 %v3361
      %v3394 = vunpack.c.l.b16 %v3362
      %v3395 = vunpack.c.l.b16 %v3363
      %v3396 = vunpack.c.l.b16 %v3364
      %v3397 = vunpack.c.l.b16 %v3365
      %v3398 = vunpack.c.l.b16 %v3366
      %v3399 = vunpack.c.l.b16 %v3367
      %v3400 = vunpack.c.l.b16 %v3368
      %v3401 = vunpack.c.l.b16 %v3369
      %v3402 = vunpack.c.l.b16 %v3370
      %v3403 = vunpack.c.l.b16 %v3371
      %v3404 = vunpack.c.l.b16 %v3372
      %v3405 = vunpack.c.l.b16 %v3373
      %v3406 = vunpack.c.l.b16 %v3374
      %v3407 = vpack.c.b16 %v3392, %v3391
      %v3408 = vpack.c.b16 %v3394, %v3393
      %v3409 = vpack.c.b16 %v3396, %v3395
      %v3410 = vpack.c.b16 %v3398, %v3397
      %v3411 = vpack.c.b16 %v3400, %v3399
      %v3412 = vpack.c.b16 %v3402, %v3401
      %v3413 = vpack.c.b16 %v3404, %v3403
      %v3414 = vpack.c.b16 %v3406, %v3405
      %3423 = vmatprep.subr.bf16.mxu0 0
      %3424 = vmatpush1.bf16.msra.mxu0 %v3407
      %3425 = vmatprep.subr.bf16.mxu0 0
      %3426 = vmatpush1.bf16.msra.mxu0 %v3408
      %3427 = vmatprep.subr.bf16.mxu0 0
      %3428 = vmatpush1.bf16.msra.mxu0 %v3409
      %3429 = vmatprep.subr.bf16.mxu0 0
      %3430 = vmatpush1.bf16.msra.mxu0 %v3410
      %3431 = vmatprep.subr.bf16.mxu0 0
      %3432 = vmatpush1.bf16.msra.mxu0 %v3411
      %3433 = vmatprep.subr.bf16.mxu0 0
      %3434 = vmatpush1.bf16.msra.mxu0 %v3412
      %3435 = vmatprep.subr.bf16.mxu0 0
      %3436 = vmatpush1.bf16.msra.mxu0 %v3413
      %3437 = vmatprep.subr.bf16.mxu0 0
      %3438 = vmatpush1.bf16.msra.mxu0 %v3414
      %3439 = vmatprep.subr.bf16.mxu0 0
      %3440 = vmatpush1.bf16.msra.mxu0 0
      %3441 = vmatprep.subr.bf16.mxu0 0
      %3442 = vmatpush1.bf16.msra.mxu0 0
      %3443 = vmatprep.subr.bf16.mxu0 0
      %3444 = vmatpush1.bf16.msra.mxu0 0
      %3445 = vmatprep.subr.bf16.mxu0 0
      %3446 = vmatpush1.bf16.msra.mxu0 0
      %3447 = vmatprep.subr.bf16.mxu0 0
      %3448 = vmatpush1.bf16.msra.mxu0 0
      %3449 = vmatprep.subr.bf16.mxu0 0
      %3450 = vmatpush1.bf16.msra.mxu0 0
      %3451 = vmatprep.subr.bf16.mxu0 0
      %3452 = vmatpush1.bf16.msra.mxu0 0
      %3453 = vmatprep.subr.bf16.mxu0 0
      %3454 = vmatpush1.bf16.msra.mxu0 0
      %3455 = vmatprep.mubr.bf16.mxu0 0
      %3456 = vmatmul.mubr.bf16.gmra.mrb[0].mxu0 %v3343
      %v3457 = vpop.f32.mrb[0].mxu0
      %v3458 = vadd.f32 0.0, %v3457
      %v3459 = vpop.f32.mrb[0].mxu0
      %v3460 = vpop.f32.mrb[0].mxu0
      %v3461 = vadd.f32 0.0, %v3460
      %v3462 = vpop.f32.mrb[0].mxu0
      %3463 = vmatprep.mubr.bf16.mxu0 0
      %3464 = vmatmul.mubr.bf16.gmra.mrb[0].mxu0 %v3344
      %v3465 = vpop.f32.mrb[0].mxu0
      %v3466 = vadd.f32 0.0, %v3465
      %v3467 = vpop.f32.mrb[0].mxu0
      %v3468 = vpop.f32.mrb[0].mxu0
      %v3469 = vadd.f32 0.0, %v3468
      %v3470 = vpop.f32.mrb[0].mxu0
      %3471 = vmatprep.mubr.bf16.mxu0 0
      %3472 = vmatmul.mubr.bf16.gmra.mrb[0].mxu0 %v3345
      %v3473 = vpop.f32.mrb[0].mxu0
      %v3474 = vadd.f32 0.0, %v3473
      %v3475 = vpop.f32.mrb[0].mxu0
      %v3476 = vpop.f32.mrb[0].mxu0
      %v3477 = vadd.f32 0.0, %v3476
      %v3478 = vpop.f32.mrb[0].mxu0
      %3479 = vmatprep.mubr.bf16.mxu0 0
      %3480 = vmatmul.mubr.bf16.gmra.mrb[0].mxu0 %v3346
      %v3481 = vpop.f32.mrb[0].mxu0
      %v3482 = vadd.f32 0.0, %v3481
      %v3483 = vpop.f32.mrb[0].mxu0
      %v3484 = vpop.f32.mrb[0].mxu0
      %v3485 = vadd.f32 0.0, %v3484
      %v3486 = vpop.f32.mrb[0].mxu0
      %3487 = vmatprep.mubr.bf16.mxu0 0
      %3488 = vmatmul.mubr.bf16.gmra.mrb[0].mxu0 %v3347
      %v3489 = vpop.f32.mrb[0].mxu0
      %v3490 = vadd.f32 0.0, %v3489
      %v3491 = vpop.f32.mrb[0].mxu0
      %v3492 = vpop.f32.mrb[0].mxu0
      %v3493 = vadd.f32 0.0, %v3492
      %v3494 = vpop.f32.mrb[0].mxu0
      %3495 = vmatprep.mubr.bf16.mxu0 0
      %3496 = vmatmul.mubr.bf16.gmra.mrb[0].mxu0 %v3348
      %v3497 = vpop.f32.mrb[0].mxu0
      %v3498 = vadd.f32 0.0, %v3497
      %v3499 = vpop.f32.mrb[0].mxu0
      %v3500 = vpop.f32.mrb[0].mxu0
      %v3501 = vadd.f32 0.0, %v3500
      %v3502 = vpop.f32.mrb[0].mxu0
      %3503 = vmatprep.mubr.bf16.mxu0 0
      %3504 = vmatmul.mubr.bf16.gmra.mrb[0].mxu0 %v3349
      %v3505 = vpop.f32.mrb[0].mxu0
      %v3506 = vadd.f32 0.0, %v3505
      %v3507 = vpop.f32.mrb[0].mxu0
      %v3508 = vpop.f32.mrb[0].mxu0
      %v3509 = vadd.f32 0.0, %v3508
      %v3510 = vpop.f32.mrb[0].mxu0
      %3511 = vmatprep.mubr.bf16.mxu0 0
      %3512 = vmatmul.mubr.bf16.gmra.mrb[0].mxu0 %v3350
      %v3513 = vpop.f32.mrb[0].mxu0
      %v3514 = vadd.f32 0.0, %v3513
      %v3515 = vpop.f32.mrb[0].mxu0
      %v3516 = vpop.f32.mrb[0].mxu0
      %v3517 = vadd.f32 0.0, %v3516
      %v3518 = vpop.f32.mrb[0].mxu0
      %3519 = vmatprep.mubr.bf16.mxu0 0
      %3520 = vmatmul.mubr.bf16.gmra.mrb[0].mxu0 %v3351
      %v3521 = vpop.f32.mrb[0].mxu0
      %v3522 = vadd.f32 0.0, %v3521
      %v3523 = vpop.f32.mrb[0].mxu0
      %v3524 = vpop.f32.mrb[0].mxu0
      %v3525 = vadd.f32 0.0, %v3524
      %v3526 = vpop.f32.mrb[0].mxu0
      %3527 = vmatprep.mubr.bf16.mxu0 0
      %3528 = vmatmul.mubr.bf16.gmra.mrb[0].mxu0 %v3352
      %v3529 = vpop.f32.mrb[0].mxu0
      %v3530 = vadd.f32 0.0, %v3529
      %v3531 = vpop.f32.mrb[0].mxu0
      %v3532 = vpop.f32.mrb[0].mxu0
      %v3533 = vadd.f32 0.0, %v3532
      %v3534 = vpop.f32.mrb[0].mxu0
      %3535 = vmatprep.mubr.bf16.mxu0 0
      %3536 = vmatmul.mubr.bf16.gmra.mrb[0].mxu0 %v3353
      %v3537 = vpop.f32.mrb[0].mxu0
      %v3538 = vadd.f32 0.0, %v3537
      %v3539 = vpop.f32.mrb[0].mxu0
      %v3540 = vpop.f32.mrb[0].mxu0
      %v3541 = vadd.f32 0.0, %v3540
      %v3542 = vpop.f32.mrb[0].mxu0
      %3543 = vmatprep.mubr.bf16.mxu0 0
      %3544 = vmatmul.mubr.bf16.gmra.mrb[0].mxu0 %v3354
      %v3545 = vpop.f32.mrb[0].mxu0
      %v3546 = vadd.f32 0.0, %v3545
      %v3547 = vpop.f32.mrb[0].mxu0
      %v3548 = vpop.f32.mrb[0].mxu0
      %v3549 = vadd.f32 0.0, %v3548
      %v3550 = vpop.f32.mrb[0].mxu0
      %3551 = vmatprep.mubr.bf16.mxu0 0
      %3552 = vmatmul.mubr.bf16.gmra.mrb[0].mxu0 %v3355
      %v3553 = vpop.f32.mrb[0].mxu0
      %v3554 = vadd.f32 0.0, %v3553
      %v3555 = vpop.f32.mrb[0].mxu0
      %v3556 = vpop.f32.mrb[0].mxu0
      %v3557 = vadd.f32 0.0, %v3556
      %v3558 = vpop.f32.mrb[0].mxu0
      %3559 = vmatprep.mubr.bf16.mxu0 0
      %3560 = vmatmul.mubr.bf16.gmra.mrb[0].mxu0 %v3356
      %v3561 = vpop.f32.mrb[0].mxu0
      %v3562 = vadd.f32 0.0, %v3561
      %v3563 = vpop.f32.mrb[0].mxu0
      %v3564 = vpop.f32.mrb[0].mxu0
      %v3565 = vadd.f32 0.0, %v3564
      %v3566 = vpop.f32.mrb[0].mxu0
      %3567 = vmatprep.mubr.bf16.mxu0 0
      %3568 = vmatmul.mubr.bf16.gmra.mrb[0].mxu0 %v3357
      %v3569 = vpop.f32.mrb[0].mxu0
      %v3570 = vadd.f32 0.0, %v3569
      %v3571 = vpop.f32.mrb[0].mxu0
      %v3572 = vpop.f32.mrb[0].mxu0
      %v3573 = vadd.f32 0.0, %v3572
      %v3574 = vpop.f32.mrb[0].mxu0
      %3575 = vmatprep.mubr.bf16.mxu0 0
      %3576 = vmatmul.mubr.bf16.gmra.mrb[0].mxu0 %v3358
      %v3577 = vpop.f32.mrb[0].mxu0
      %v3578 = vadd.f32 0.0, %v3577
      %v3579 = vpop.f32.mrb[0].mxu0
      %v3580 = vpop.f32.mrb[0].mxu0
      %v3581 = vadd.f32 0.0, %v3580
      %v3582 = vpop.f32.mrb[0].mxu0
      %3583 = vdwg.mxu0
      %v3584 = vadd.f32 %v3279, %v3458
      %v3585 = vadd.f32 %v3280, %v3461
      %v3586 = vadd.f32 %v3281, %v3466
      %v3587 = vadd.f32 %v3282, %v3469
      %v3588 = vadd.f32 %v3283, %v3474
      %v3589 = vadd.f32 %v3284, %v3477
      %v3590 = vadd.f32 %v3285, %v3482
      %v3591 = vadd.f32 %v3286, %v3485
      %v3592 = vadd.f32 %v3287, %v3490
      %v3593 = vadd.f32 %v3288, %v3493
      %v3594 = vadd.f32 %v3289, %v3498
      %v3595 = vadd.f32 %v3290, %v3501
      %v3596 = vadd.f32 %v3291, %v3506
      %v3597 = vadd.f32 %v3292, %v3509
      %v3598 = vadd.f32 %v3293, %v3514
      %v3599 = vadd.f32 %v3294, %v3517
      %v3600 = vadd.f32 %v3295, %v3522
      %v3601 = vadd.f32 %v3296, %v3525
      %v3602 = vadd.f32 %v3297, %v3530
      %v3603 = vadd.f32 %v3298, %v3533
      %v3604 = vadd.f32 %v3299, %v3538
      %v3605 = vadd.f32 %v3300, %v3541
      %v3606 = vadd.f32 %v3301, %v3546
      %v3607 = vadd.f32 %v3302, %v3549
      %v3608 = vadd.f32 %v3303, %v3554
      %v3609 = vadd.f32 %v3304, %v3557
      %v3610 = vadd.f32 %v3305, %v3562
      %v3611 = vadd.f32 %v3306, %v3565
      %v3612 = vadd.f32 %v3307, %v3570
      %v3613 = vadd.f32 %v3308, %v3573
      %v3614 = vadd.f32 %v3309, %v3578
      %v3615 = vadd.f32 %v3310, %v3581
      %v3616 = vld [vmem:[%s4] sm:$0x1]
      %v3618 = vlaneseq
      %v3619 = vshrl.u32 %v3618, 7
      %v3620 = vsub.s32 0, %v3619
      %v3621 = vrot.slane %v3616, %v3620
      %v3623 = vadd.f32 %v3584, %v3621
      %v3624 = vadd.f32 %v3585, %v3621
      %v3625 = vadd.f32 %v3586, %v3621
      %v3626 = vadd.f32 %v3587, %v3621
      %v3627 = vadd.f32 %v3588, %v3621
      %v3628 = vadd.f32 %v3589, %v3621
      %v3629 = vadd.f32 %v3590, %v3621
      %v3630 = vadd.f32 %v3591, %v3621
      %v3631 = vadd.f32 %v3592, %v3621
      %v3632 = vadd.f32 %v3593, %v3621
      %v3633 = vadd.f32 %v3594, %v3621
      %v3634 = vadd.f32 %v3595, %v3621
      %v3635 = vadd.f32 %v3596, %v3621
      %v3636 = vadd.f32 %v3597, %v3621
      %v3637 = vadd.f32 %v3598, %v3621
      %v3638 = vadd.f32 %v3599, %v3621
      %v3639 = vadd.f32 %v3600, %v3621
      %v3640 = vadd.f32 %v3601, %v3621
      %v3641 = vadd.f32 %v3602, %v3621
      %v3642 = vadd.f32 %v3603, %v3621
      %v3643 = vadd.f32 %v3604, %v3621
      %v3644 = vadd.f32 %v3605, %v3621
      %v3645 = vadd.f32 %v3606, %v3621
      %v3646 = vadd.f32 %v3607, %v3621
      %v3647 = vadd.f32 %v3608, %v3621
      %v3648 = vadd.f32 %v3609, %v3621
      %v3649 = vadd.f32 %v3610, %v3621
      %v3650 = vadd.f32 %v3611, %v3621
      %v3651 = vadd.f32 %v3612, %v3621
      %v3652 = vadd.f32 %v3613, %v3621
      %v3653 = vadd.f32 %v3614, %v3621
      %v3654 = vadd.f32 %v3615, %v3621
      %v3655 = vpack.c.bf16 %v3624, %v3623
      %v3656 = vpack.c.bf16 %v3626, %v3625
      %v3657 = vpack.c.bf16 %v3628, %v3627
      %v3658 = vpack.c.bf16 %v3630, %v3629
      %v3659 = vpack.c.bf16 %v3632, %v3631
      %v3660 = vpack.c.bf16 %v3634, %v3633
      %v3661 = vpack.c.bf16 %v3636, %v3635
      %v3662 = vpack.c.bf16 %v3638, %v3637
      %v3663 = vpack.c.bf16 %v3640, %v3639
      %v3664 = vpack.c.bf16 %v3642, %v3641
      %v3665 = vpack.c.bf16 %v3644, %v3643
      %v3666 = vpack.c.bf16 %v3646, %v3645
      %v3667 = vpack.c.bf16 %v3648, %v3647
      %v3668 = vpack.c.bf16 %v3650, %v3649
      %v3669 = vpack.c.bf16 %v3652, %v3651
      %v3670 = vpack.c.bf16 %v3654, %v3653
      %v3687 = vunpack.c.l.b16 %v3655
      %v3688 = vunpack.c.h.b16 %v3655
      %v3689 = vunpack.c.l.b16 %v3656
      %v3690 = vunpack.c.h.b16 %v3656
      %v3691 = vunpack.c.l.b16 %v3657
      %v3692 = vunpack.c.h.b16 %v3657
      %v3693 = vunpack.c.l.b16 %v3658
      %v3694 = vunpack.c.h.b16 %v3658
      %v3695 = vunpack.c.l.b16 %v3659
      %v3696 = vunpack.c.h.b16 %v3659
      %v3697 = vunpack.c.l.b16 %v3660
      %v3698 = vunpack.c.h.b16 %v3660
      %v3699 = vunpack.c.l.b16 %v3661
      %v3700 = vunpack.c.h.b16 %v3661
      %v3701 = vunpack.c.l.b16 %v3662
      %v3702 = vunpack.c.h.b16 %v3662
      %v3703 = vunpack.c.l.b16 %v3663
      %v3704 = vunpack.c.h.b16 %v3663
      %v3705 = vunpack.c.l.b16 %v3664
      %v3706 = vunpack.c.h.b16 %v3664
      %v3707 = vunpack.c.l.b16 %v3665
      %v3708 = vunpack.c.h.b16 %v3665
      %v3709 = vunpack.c.l.b16 %v3666
      %v3710 = vunpack.c.h.b16 %v3666
      %v3711 = vunpack.c.l.b16 %v3667
      %v3712 = vunpack.c.h.b16 %v3667
      %v3713 = vunpack.c.l.b16 %v3668
      %v3714 = vunpack.c.h.b16 %v3668
      %v3715 = vunpack.c.l.b16 %v3669
      %v3716 = vunpack.c.h.b16 %v3669
      %v3717 = vunpack.c.l.b16 %v3670
      %v3718 = vunpack.c.h.b16 %v3670
      %v3719 = vpack.c.b16 %v3687, %v3687
      %v3720 = vpack.c.b16 %v3688, %v3688
      %v3721 = vpack.c.b16 %v3689, %v3689
      %v3722 = vpack.c.b16 %v3690, %v3690
      %v3723 = vpack.c.b16 %v3691, %v3691
      %v3724 = vpack.c.b16 %v3692, %v3692
      %v3725 = vpack.c.b16 %v3693, %v3693
      %v3726 = vpack.c.b16 %v3694, %v3694
      %v3727 = vpack.c.b16 %v3695, %v3695
      %v3728 = vpack.c.b16 %v3696, %v3696
      %v3729 = vpack.c.b16 %v3697, %v3697
      %v3730 = vpack.c.b16 %v3698, %v3698
      %v3731 = vpack.c.b16 %v3699, %v3699
      %v3732 = vpack.c.b16 %v3700, %v3700
      %v3733 = vpack.c.b16 %v3701, %v3701
      %v3734 = vpack.c.b16 %v3702, %v3702
      %v3735 = vpack.c.b16 %v3703, %v3703
      %v3736 = vpack.c.b16 %v3704, %v3704
      %v3737 = vpack.c.b16 %v3705, %v3705
      %v3738 = vpack.c.b16 %v3706, %v3706
      %v3739 = vpack.c.b16 %v3707, %v3707
      %v3740 = vpack.c.b16 %v3708, %v3708
      %v3741 = vpack.c.b16 %v3709, %v3709
      %v3742 = vpack.c.b16 %v3710, %v3710
      %v3743 = vpack.c.b16 %v3711, %v3711
      %v3744 = vpack.c.b16 %v3712, %v3712
      %v3745 = vpack.c.b16 %v3713, %v3713
      %v3746 = vpack.c.b16 %v3714, %v3714
      %v3747 = vpack.c.b16 %v3715, %v3715
      %v3748 = vpack.c.b16 %v3716, %v3716
      %v3749 = vpack.c.b16 %v3717, %v3717
      %v3750 = vpack.c.b16 %v3718, %v3718
      %3783 = vst [vmem:[%s288] sm:$0xf] %v3719
      %3784 = vst [vmem:[%s288 + $0x4] sm:$0xf] %v3720
      %3785 = vst [vmem:[%s288 + $0x8] sm:$0xf] %v3721
      %3786 = vst [vmem:[%s288 + $0xc] sm:$0xf] %v3722
      %3787 = vst [vmem:[%s288 + $0x10] sm:$0xf] %v3723
      %3788 = vst [vmem:[%s288 + $0x14] sm:$0xf] %v3724
      %3789 = vst [vmem:[%s288 + $0x18] sm:$0xf] %v3725
      %3790 = vst [vmem:[%s288 + $0x1c] sm:$0xf] %v3726
      %3791 = vst [vmem:[%s288 + $0x20] sm:$0xf] %v3727
      %3792 = vst [vmem:[%s288 + $0x24] sm:$0xf] %v3728
      %3793 = vst [vmem:[%s288 + $0x28] sm:$0xf] %v3729
      %3794 = vst [vmem:[%s288 + $0x2c] sm:$0xf] %v3730
      %3795 = vst [vmem:[%s288 + $0x30] sm:$0xf] %v3731
      %3796 = vst [vmem:[%s288 + $0x34] sm:$0xf] %v3732
      %3797 = vst [vmem:[%s288 + $0x38] sm:$0xf] %v3733
      %3798 = vst [vmem:[%s288 + $0x3c] sm:$0xf] %v3734
      %3799 = vst [vmem:[%s288 + $0x40] sm:$0xf] %v3735
      %3800 = vst [vmem:[%s288 + $0x44] sm:$0xf] %v3736
      %3801 = vst [vmem:[%s288 + $0x48] sm:$0xf] %v3737
      %3802 = vst [vmem:[%s288 + $0x4c] sm:$0xf] %v3738
      %3803 = vst [vmem:[%s288 + $0x50] sm:$0xf] %v3739
      %3804 = vst [vmem:[%s288 + $0x54] sm:$0xf] %v3740
      %3805 = vst [vmem:[%s288 + $0x58] sm:$0xf] %v3741
      %3806 = vst [vmem:[%s288 + $0x5c] sm:$0xf] %v3742
      %3807 = vst [vmem:[%s288 + $0x60] sm:$0xf] %v3743
      %3808 = vst [vmem:[%s288 + $0x64] sm:$0xf] %v3744
      %3809 = vst [vmem:[%s288 + $0x68] sm:$0xf] %v3745
      %3810 = vst [vmem:[%s288 + $0x6c] sm:$0xf] %v3746
      %3811 = vst [vmem:[%s288 + $0x70] sm:$0xf] %v3747
      %3812 = vst [vmem:[%s288 + $0x74] sm:$0xf] %v3748
      %3813 = vst [vmem:[%s288 + $0x78] sm:$0xf] %v3749
      %3814 = vst [vmem:[%s288 + $0x7c] sm:$0xf] %v3750
      %v3815 = vld [vmem:[%s7] sm:$0x1]
      %v3816 = vadd.f32 %v3623, %v3624
      %v3817 = vadd.f32 %v3816, %v3625
      %v3818 = vadd.f32 %v3817, %v3626
      %v3819 = vadd.f32 %v3818, %v3627
      %v3820 = vadd.f32 %v3819, %v3628
      %v3821 = vadd.f32 %v3820, %v3629
      %v3822 = vadd.f32 %v3821, %v3630
      %v3823 = vadd.f32 %v3822, %v3631
      %v3824 = vadd.f32 %v3823, %v3632
      %v3825 = vadd.f32 %v3824, %v3633
      %v3826 = vadd.f32 %v3825, %v3634
      %v3827 = vadd.f32 %v3826, %v3635
      %v3828 = vadd.f32 %v3827, %v3636
      %v3829 = vadd.f32 %v3828, %v3637
      %v3830 = vadd.f32 %v3829, %v3638
      %v3831 = vadd.f32 %v3830, %v3639
      %v3832 = vadd.f32 %v3831, %v3640
      %v3833 = vadd.f32 %v3832, %v3641
      %v3834 = vadd.f32 %v3833, %v3642
      %v3835 = vadd.f32 %v3834, %v3643
      %v3836 = vadd.f32 %v3835, %v3644
      %v3837 = vadd.f32 %v3836, %v3645
      %v3838 = vadd.f32 %v3837, %v3646
      %v3839 = vadd.f32 %v3838, %v3647
      %v3840 = vadd.f32 %v3839, %v3648
      %v3841 = vadd.f32 %v3840, %v3649
      %v3842 = vadd.f32 %v3841, %v3650
      %v3843 = vadd.f32 %v3842, %v3651
      %v3844 = vadd.f32 %v3843, %v3652
      %v3845 = vadd.f32 %v3844, %v3653
      %v3846 = vadd.f32 %v3845, %v3654
      %v3847 = vrot.slane %v3846, 4
      %v3848 = vadd.f32 %v3846, %v3847
      %v3849 = vrot.slane %v3848, 2
      %v3850 = vadd.f32 %v3848, %v3849
      %v3851 = vrot.slane %v3850, 1
      %v3852 = vadd.f32 %v3850, %v3851
      %v3853 = vadd.f32 %v3815, %v3852
      %3854 = vst [vmem:[%s7] sm:$0x1] %v3853
      %v3855 = vld [vmem:[%s7 + $0x1] sm:$0x1]
      %v3856 = vmul.f32 %v3623, %v3623
      %v3857 = vmul.f32 %v3624, %v3624
      %v3858 = vmul.f32 %v3625, %v3625
      %v3859 = vmul.f32 %v3626, %v3626
      %v3860 = vmul.f32 %v3627, %v3627
      %v3861 = vmul.f32 %v3628, %v3628
      %v3862 = vmul.f32 %v3629, %v3629
      %v3863 = vmul.f32 %v3630, %v3630
      %v3864 = vmul.f32 %v3631, %v3631
      %v3865 = vmul.f32 %v3632, %v3632
      %v3866 = vmul.f32 %v3633, %v3633
      %v3867 = vmul.f32 %v3634, %v3634
      %v3868 = vmul.f32 %v3635, %v3635
      %v3869 = vmul.f32 %v3636, %v3636
      %v3870 = vmul.f32 %v3637, %v3637
      %v3871 = vmul.f32 %v3638, %v3638
      %v3872 = vmul.f32 %v3639, %v3639
      %v3873 = vmul.f32 %v3640, %v3640
      %v3874 = vmul.f32 %v3641, %v3641
      %v3875 = vmul.f32 %v3642, %v3642
      %v3876 = vmul.f32 %v3643, %v3643
      %v3877 = vmul.f32 %v3644, %v3644
      %v3878 = vmul.f32 %v3645, %v3645
      %v3879 = vmul.f32 %v3646, %v3646
      %v3880 = vmul.f32 %v3647, %v3647
      %v3881 = vmul.f32 %v3648, %v3648
      %v3882 = vmul.f32 %v3649, %v3649
      %v3883 = vmul.f32 %v3650, %v3650
      %v3884 = vmul.f32 %v3651, %v3651
      %v3885 = vmul.f32 %v3652, %v3652
      %v3886 = vmul.f32 %v3653, %v3653
      %v3887 = vmul.f32 %v3654, %v3654
      %v3888 = vadd.f32 %v3856, %v3857
      %v3889 = vadd.f32 %v3888, %v3858
      %v3890 = vadd.f32 %v3889, %v3859
      %v3891 = vadd.f32 %v3890, %v3860
      %v3892 = vadd.f32 %v3891, %v3861
      %v3893 = vadd.f32 %v3892, %v3862
      %v3894 = vadd.f32 %v3893, %v3863
      %v3895 = vadd.f32 %v3894, %v3864
      %v3896 = vadd.f32 %v3895, %v3865
      %v3897 = vadd.f32 %v3896, %v3866
      %v3898 = vadd.f32 %v3897, %v3867
      %v3899 = vadd.f32 %v3898, %v3868
      %v3900 = vadd.f32 %v3899, %v3869
      %v3901 = vadd.f32 %v3900, %v3870
      %v3902 = vadd.f32 %v3901, %v3871
      %v3903 = vadd.f32 %v3902, %v3872
      %v3904 = vadd.f32 %v3903, %v3873
      %v3905 = vadd.f32 %v3904, %v3874
      %v3906 = vadd.f32 %v3905, %v3875
      %v3907 = vadd.f32 %v3906, %v3876
      %v3908 = vadd.f32 %v3907, %v3877
      %v3909 = vadd.f32 %v3908, %v3878
      %v3910 = vadd.f32 %v3909, %v3879
      %v3911 = vadd.f32 %v3910, %v3880
      %v3912 = vadd.f32 %v3911, %v3881
      %v3913 = vadd.f32 %v3912, %v3882
      %v3914 = vadd.f32 %v3913, %v3883
      %v3915 = vadd.f32 %v3914, %v3884
      %v3916 = vadd.f32 %v3915, %v3885
      %v3917 = vadd.f32 %v3916, %v3886
      %v3918 = vadd.f32 %v3917, %v3887
      %v3919 = vrot.slane %v3918, 4
      %v3920 = vadd.f32 %v3918, %v3919
      %v3921 = vrot.slane %v3920, 2
      %v3922 = vadd.f32 %v3920, %v3921
      %v3923 = vrot.slane %v3922, 1
      %v3924 = vadd.f32 %v3922, %v3923
      %v3925 = vadd.f32 %v3855, %v3924
      %3926 = vst [vmem:[%s7 + $0x1] sm:$0x1] %v3925
      %p3927 = scmp.eq.s32.totalorder %s19, 1
      // Predicated region
      $region45: #{filmed_resblock.2} parent=39 // pred_check
        %p3928 = pneg %p3927
      $region46: #{filmed_resblock.2} parent=39 // pred_check_branch
        %3930 = sbr.rel (%p3928) target = $region48
      $region47: #{filmed_resblock.2} parent=39 // pred_region
        %v3931 = vld [vmem:[%s7] sm:$0x1]
        %v3932 = vmul.f32 %v3931, 0.001953125
        %v3933 = vld [vmem:[%s7 + $0x1] sm:$0x1]
        %v3934 = vmul.f32 %v3933, 0.001953125
        %v3935 = vmul.f32 %v3932, %v3932
        %v3936 = vsub.f32 %v3934, %v3935
        %v3937 = vmax.f32 %v3936, 0.0
        %3938 = vst [vmem:[%s7] sm:$0x1] %v3932
        %v3939 = vadd.f32 %v3937, 1e-05
        %v3940 = vrsqrt.pop %v3939
        %3941 = vst [vmem:[%s7 + $0x1] sm:$0x1] %v3940
      $region48: #{filmed_resblock.2} parent=39 // pred_fallthru
        _
      %p3942 = scmp.lt.s32.totalorder %s19, 1
      %s3943 = scalar_select %p3942, %s19, 1
      %s3944 = smul.addr %s3943, 32
      %s3945 = smul.addr %s3944, 4
      %s3946 = scalar_lea.vmem %s5, %s3945
      %p3947 = scmp.lt.s32.totalorder %s19, 1
      %s3948 = scalar_select %p3947, %s19, 1
      %s3949 = smul.addr %s3948, 32
      %s3950 = smul.addr %s3949, 4
      %s3951 = scalar_lea.vmem %s6, %s3950
      // Predicated region
      $region49: #{filmed_resblock.2} parent=39 // pred_check
        %p3952 = pneg %p147
      $region50: #{filmed_resblock.2} parent=39 // pred_check_branch
        %3954 = sbr.rel (%p3952) target = $region52
      $region51: #{filmed_resblock.2} parent=39 // pred_region
        _
      $region52: #{filmed_resblock.2} parent=39 // pred_fallthru
        _
      // Predicated region
      $region53: #{filmed_resblock.2} parent=39 // pred_check
        %p3955 = pneg %p173
      $region54: #{filmed_resblock.2} parent=39 // pred_check_branch
        %3957 = sbr.rel (%p3955) target = $region56
      $region55: #{filmed_resblock.2} parent=39 // pred_region
        _
      $region56: #{filmed_resblock.2} parent=39 // pred_fallthru
        _
      // Predicated region
      $region57: #{filmed_resblock.2} parent=39 // pred_check
        %p3958 = pneg %p194
      $region58: #{filmed_resblock.2} parent=39 // pred_check_branch
        %3960 = sbr.rel (%p3958) target = $region60
      $region59: #{filmed_resblock.2} parent=39 // pred_region
        _
      $region60: #{filmed_resblock.2} parent=39 // pred_fallthru
        _
      // Predicated region
      $region61: #{filmed_resblock.2} parent=39 // pred_check
        %p3961 = pneg %p194
      $region62: #{filmed_resblock.2} parent=39 // pred_check_branch
        %3963 = sbr.rel (%p3961) target = $region64
      $region63: #{filmed_resblock.2} parent=39 // pred_region
        _
      $region64: #{filmed_resblock.2} parent=39 // pred_fallthru
        _
    $region40: #{filmed_resblock.2} parent=5 // pred_fallthru
      _
    %p3964 = scmp.le.s32.totalorder 2, %s14
    // Predicated region
    $region65: #{filmed_resblock.2} parent=5 // pred_check
      %p3965 = pneg %p3964
    $region66: #{filmed_resblock.2} parent=5 // pred_check_branch
      %3967 = sbr.rel (%p3965) target = $region68
    $region67: #{filmed_resblock.2} parent=5 // pred_region
      %s3968 = ssub.s32 %s14, 2
      // Predicated region
      $region69: #{filmed_resblock.2} parent=67 // pred_check
        %p3969 = pneg %p153
      $region70: #{filmed_resblock.2} parent=67 // pred_check_branch
        %3971 = sbr.rel (%p3969) target = $region72
      $region71: #{filmed_resblock.2} parent=67 // pred_region
        %p3972 = scmp.lt.s32.totalorder %s20, 1
        %s3973 = scalar_select %p3972, %s20, 1
        %s3974 = smul.addr %s3973, 32
        %s3975 = smul.addr %s3974, 4
        %s3976 = scalar_lea.vmem %s5, %s3975
      $region72: #{filmed_resblock.2} parent=67 // pred_fallthru
        _
      // Predicated region
      $region73: #{filmed_resblock.2} parent=67 // pred_check
        %p3977 = pneg %p179
      $region74: #{filmed_resblock.2} parent=67 // pred_check_branch
        %3979 = sbr.rel (%p3977) target = $region76
      $region75: #{filmed_resblock.2} parent=67 // pred_region
        %p3980 = scmp.lt.s32.totalorder %s20, 1
        %s3981 = scalar_select %p3980, %s20, 1
        %s3982 = smul.addr %s3981, 32
        %s3983 = smul.addr %s3982, 4
        %s3984 = scalar_lea.vmem %s6, %s3983
      $region76: #{filmed_resblock.2} parent=67 // pred_fallthru
        _
    $region68: #{filmed_resblock.2} parent=5 // pred_fallthru
      _
  $region6: #{filmed_resblock.2} parent=0 // loop_footer
    %s18 = sadd.s32 1, %s14
  $region7: #{filmed_resblock.2} parent=0 // loop_footer_branch
    %13 = sbr.rel target = $region3
  $region8: #{filmed_resblock.2} parent=0 // loop_exit
    _

</llo_original>
